<compile_context>
chip_gen: v7x
topology: tpu7x:2x2x1
jax: 0.10.0
libtpu: 0.0.40
codegen_flags: <defaults>
</compile_context>

<pallas_src>
import functools
import math

import jax
import jax.numpy as jnp
from jax import lax
from jax.experimental import pallas as pl
from jax.experimental.pallas import tpu as pltpu

LN_EPS = 1e-5  # torch.nn.LayerNorm default


def _layernorm(x2d, gamma, beta):
    # x2d: (N, C); gamma/beta: (1, C)
    mu = jnp.mean(x2d, axis=-1, keepdims=True)
    xc = x2d - mu
    var = jnp.mean(xc * xc, axis=-1, keepdims=True)
    return xc * lax.rsqrt(var + LN_EPS) * gamma + beta


def _block_kernel(x_ref,
                  g1_ref, be1_ref,
                  wq_ref, bq_ref, wk_ref, bk_ref, wv_ref, bv_ref,
                  wp_ref, bp_ref,
                  g2_ref, be2_ref,
                  w1_ref, b1_ref, w2_ref, b2_ref,
                  o_ref, *, n_heads: int):
    _, T, C = x_ref.shape
    H = n_heads
    hs = C // H
    scale = 1.0 / math.sqrt(hs)

    x = x_ref[0]                                   # (T, C)

    # ---------------- ln_1 + causal self-attention -----------------------
    h = _layernorm(x, g1_ref[...], be1_ref[...])   # (T, C)
    hb = jnp.broadcast_to(h[None], (H, T, C))      # one broadcast, hoisted

    # Head-batched q/k/v projections (weights pre-split per head in wrapper,
    # so no activation lane-slicing).  Batch dim is leading -> clean MXU feed.
    q = jnp.einsum('htc,hcd->htd', hb, wq_ref[...],
                   preferred_element_type=jnp.float32) + bq_ref[...]
    k = jnp.einsum('htc,hcd->htd', hb, wk_ref[...],
                   preferred_element_type=jnp.float32) + bk_ref[...]
    v = jnp.einsum('htc,hcd->htd', hb, wv_ref[...],
                   preferred_element_type=jnp.float32) + bv_ref[...]
    q = q * scale                                  # fold scale into q once

    # Scores for all heads at once; K-transpose folded into the contraction.
    s = jnp.einsum('hqd,hkd->hqk', q, k,
                   preferred_element_type=jnp.float32)        # (H, T, T)

    # Additive causal mask, built once, applied once for all heads.
    row = lax.broadcasted_iota(jnp.int32, (T, T), 0)
    col = lax.broadcasted_iota(jnp.int32, (T, T), 1)
    mask_bias = jnp.where(col <= row, 0.0, -1e30).astype(jnp.float32)
    s = s + mask_bias[None]

    # Numerically stable softmax (exact divide for validation tolerance).
    m = jnp.max(s, axis=-1, keepdims=True)
    p = jnp.exp(s - m)
    denom = jnp.sum(p, axis=-1, keepdims=True)
    pn = p / denom                                 # (H, T, T)

    # Context and output projection, still head-batched; sum over heads
    # replaces the concat (pure slab adds, no cross-lane shuffle).
    y = jnp.einsum('hqk,hkd->hqd', pn, v,
                   preferred_element_type=jnp.float32)        # (H, T, hs)
    yp = jnp.einsum('htd,hdc->htc', y, wp_ref[...],
                    preferred_element_type=jnp.float32)       # (H, T, C)
    attn = jnp.sum(yp, axis=0) + bp_ref[...]                  # (T, C)

    x2 = x + attn                                  # residual 1

    # ---------------- ln_2 + MLP ------------------------------------------
    h2 = _layernorm(x2, g2_ref[...], be2_ref[...])
    z = jnp.dot(h2, w1_ref[...], preferred_element_type=jnp.float32) + b1_ref[...]
    # TODO(synk): torch nn.GELU() default is the exact erf GELU; erf has no
    # guaranteed Mosaic lowering, so the tanh approximation is used here.
    z2 = z * z
    c0 = math.sqrt(2.0 / math.pi)
    z = 0.5 * z * (1.0 + jnp.tanh(c0 * (z + 0.044715 * z * z2)))
    mlp_out = jnp.dot(z, w2_ref[...], preferred_element_type=jnp.float32) + b2_ref[...]

    out = x2 + mlp_out                             # residual 2

    # Single full-block store.
    o_ref[...] = out[None].astype(o_ref.dtype)


def block_forward(x, params, *, n_heads: int):
    """x: (B, T, C).  params = (g1, be1, w_kqv, b_kqv, w_proj, b_proj,
                                g2, be2, w1, b1, w2, b2)
    Linear weights are stored as (in_features, out_features): y = x @ W + b."""
    B, T, C = x.shape
    H = n_heads
    hs = C // H
    (g1, be1, w_kqv, b_kqv, w_proj, b_proj, g2, be2, w1, b1, w2, b2) = params

    # Weight-side split of the fused kqv matrix (torch split order: k, q, v)
    # plus per-head layout (H, C, hs) -- done once in the wrapper so the
    # kernel never slices activations at sub-vreg lane offsets.
    def per_head(w, b):
        wh = w.reshape(C, H, hs).transpose(1, 0, 2)   # (H, C, hs)
        bh = b.reshape(H, 1, hs)                      # (H, 1, hs)
        return wh, bh

    w_k_h, b_k_h = per_head(w_kqv[:, 0 * C:1 * C], b_kqv[0 * C:1 * C])
    w_q_h, b_q_h = per_head(w_kqv[:, 1 * C:2 * C], b_kqv[1 * C:2 * C])
    w_v_h, b_v_h = per_head(w_kqv[:, 2 * C:3 * C], b_kqv[2 * C:3 * C])
    w_proj_h = w_proj.reshape(H, hs, C)               # rows are head-major

    operands = (
        x,
        g1.reshape(1, C), be1.reshape(1, C),
        w_q_h, b_q_h, w_k_h, b_k_h, w_v_h, b_v_h,
        w_proj_h, b_proj.reshape(1, C),
        g2.reshape(1, C), be2.reshape(1, C),
        w1, b1.reshape(1, 4 * C),
        w2, b2.reshape(1, C),
    )

    # x / out are blocked over the batch grid axis; every weight/bias gets a
    # full-array block with a constant index map (fetched once, not re-DMA'd).
    def full_spec(a):
        nd = a.ndim
        return pl.BlockSpec(a.shape, lambda b, _nd=nd: (0,) * _nd)

    in_specs = ([pl.BlockSpec((1, T, C), lambda b: (b, 0, 0))]
                + [full_spec(a) for a in operands[1:]])
    out_spec = pl.BlockSpec((1, T, C), lambda b: (b, 0, 0))

    # Advisory cost estimate so XLA schedules the custom call correctly.
    flops = int(
        2 * B * T * C * (3 * C)            # fused qkv projection
        + 2 * B * T * C * C                # output projection
        + 2 * (2 * B * H * T * T * hs)     # scores + context
        + 2 * (2 * B * T * C * (4 * C))    # MLP h1 + h2
    )
    transcendentals = int(B * H * T * T + B * T * 4 * C)   # exp + tanh
    param_bytes = int(sum(int(p.size) for p in params)) * 4
    bytes_accessed = int(2 * x.size * 4 + param_bytes)

    kernel = functools.partial(_block_kernel, n_heads=H)
    return pl.pallas_call(
        kernel,
        out_shape=jax.ShapeDtypeStruct((B, T, C), x.dtype),
        grid_spec=pltpu.PrefetchScalarGridSpec(
            num_scalar_prefetch=0,
            grid=(B,),
            in_specs=in_specs,
            out_specs=out_spec,
        ),
        compiler_params=pltpu.CompilerParams(
            dimension_semantics=("parallel",)),
        cost_estimate=pl.CostEstimate(flops=flops,
                                      transcendentals=transcendentals,
                                      bytes_accessed=bytes_accessed),
    )(*operands)


def _reference(x, params, n_heads):
    (g1, be1, w_kqv, b_kqv, w_proj, b_proj, g2, be2, w1, b1, w2, b2) = params
    B, T, C = x.shape
    hs = C // n_heads

    def ln(t, g, b):
        mu = t.mean(-1, keepdims=True)
        var = ((t - mu) ** 2).mean(-1, keepdims=True)
        return (t - mu) / jnp.sqrt(var + LN_EPS) * g + b

    def gelu_tanh(t):
        return 0.5 * t * (1.0 + jnp.tanh(math.sqrt(2.0 / math.pi)
                                         * (t + 0.044715 * t ** 3)))

    # Attention branch.
    h = ln(x, g1, be1)
    kqv = h @ w_kqv + b_kqv
    k, q, v = kqv[..., :C], kqv[..., C:2 * C], kqv[..., 2 * C:]

    def rs(t):
        return jnp.transpose(t.reshape(B, T, n_heads, hs), (0, 2, 1, 3))

    k, q, v = rs(k), rs(q), rs(v)
    s = jnp.einsum('bhtd,bhsd->bhts', q, k) / math.sqrt(hs)
    mask = jnp.tril(jnp.ones((T, T), dtype=bool))
    s = jnp.where(mask, s, -jnp.inf)
    a = jax.nn.softmax(s, axis=-1)
    y = jnp.einsum('bhts,bhsd->bhtd', a, v)
    y = jnp.transpose(y, (0, 2, 1, 3)).reshape(B, T, C)
    x = x + (y @ w_proj + b_proj)

    # MLP branch.
    h2 = ln(x, g2, be2)
    z = gelu_tanh(h2 @ w1 + b1)
    x = x + (z @ w2 + b2)
    return x


if __name__ == "__main__":
    # Small config consistent with the module: n_embed=32, n_heads=4, seq=8.
    B, T, C, H = 2, 8, 32, 4

    key = jax.random.PRNGKey(0)
    ks = jax.random.split(key, 13)
    x = jax.random.normal(ks[0], (B, T, C), dtype=jnp.float32)

    g1 = 1.0 + 0.05 * jax.random.normal(ks[1], (C,), dtype=jnp.float32)
    be1 = 0.05 * jax.random.normal(ks[2], (C,), dtype=jnp.float32)
    w_kqv = 0.02 * jax.random.normal(ks[3], (C, 3 * C), dtype=jnp.float32)
    b_kqv = 0.02 * jax.random.normal(ks[4], (3 * C,), dtype=jnp.float32)
    w_proj = 0.02 * jax.random.normal(ks[5], (C, C), dtype=jnp.float32)
    b_proj = 0.02 * jax.random.normal(ks[6], (C,), dtype=jnp.float32)
    g2 = 1.0 + 0.05 * jax.random.normal(ks[7], (C,), dtype=jnp.float32)
    be2 = 0.05 * jax.random.normal(ks[8], (C,), dtype=jnp.float32)
    w1 = 0.02 * jax.random.normal(ks[9], (C, 4 * C), dtype=jnp.float32)
    b1 = 0.02 * jax.random.normal(ks[10], (4 * C,), dtype=jnp.float32)
    w2 = 0.02 * jax.random.normal(ks[11], (4 * C, C), dtype=jnp.float32)
    b2 = 0.02 * jax.random.normal(ks[12], (C,), dtype=jnp.float32)

    params = (g1, be1, w_kqv, b_kqv, w_proj, b_proj, g2, be2, w1, b1, w2, b2)

    out = block_forward(x, params, n_heads=H)
    out = jax.block_until_ready(out)

    ref = _reference(x, params, H)
    assert out.shape == (B, T, C)
    assert jnp.allclose(out, ref, atol=1e-4, rtol=1e-4), "mismatch vs reference"

    print("KERNEL_OK")
</pallas_src>

<mosaic_0001>
module attributes {stable_mosaic.version = 11 : i64} {
  func.func @_block_kernel(%arg0: i32, %arg1: memref<1x8x32xf32, #tpu.memory_space<vmem>>, %arg2: memref<1x32xf32, #tpu.memory_space<vmem>>, %arg3: memref<1x32xf32, #tpu.memory_space<vmem>>, %arg4: memref<4x32x8xf32, #tpu.memory_space<vmem>>, %arg5: memref<4x1x8xf32, #tpu.memory_space<vmem>>, %arg6: memref<4x32x8xf32, #tpu.memory_space<vmem>>, %arg7: memref<4x1x8xf32, #tpu.memory_space<vmem>>, %arg8: memref<4x32x8xf32, #tpu.memory_space<vmem>>, %arg9: memref<4x1x8xf32, #tpu.memory_space<vmem>>, %arg10: memref<4x8x32xf32, #tpu.memory_space<vmem>>, %arg11: memref<1x32xf32, #tpu.memory_space<vmem>>, %arg12: memref<1x32xf32, #tpu.memory_space<vmem>>, %arg13: memref<1x32xf32, #tpu.memory_space<vmem>>, %arg14: memref<32x128xf32, #tpu.memory_space<vmem>>, %arg15: memref<1x128xf32, #tpu.memory_space<vmem>>, %arg16: memref<128x32xf32, #tpu.memory_space<vmem>>, %arg17: memref<1x32xf32, #tpu.memory_space<vmem>>, %arg18: memref<1x8x32xf32, #tpu.memory_space<vmem>>) attributes {dimension_semantics = [#tpu.dimension_semantics<parallel>], iteration_bounds = array<i64: 2>, scalar_prefetch = 0 : i64, scratch_operands = 0 : i64, tpu.core_type = #tpu.core_type<tc>, window_params = [{transform_indices = @transform_0, window_bounds = array<i64: 1, 8, 32>}, {pipeline_mode = #tpu.pipeline_mode<synchronous>, transform_indices = @transform_1, window_bounds = array<i64: 1, 32>}, {pipeline_mode = #tpu.pipeline_mode<synchronous>, transform_indices = @transform_2, window_bounds = array<i64: 1, 32>}, {pipeline_mode = #tpu.pipeline_mode<synchronous>, transform_indices = @transform_3, window_bounds = array<i64: 4, 32, 8>}, {pipeline_mode = #tpu.pipeline_mode<synchronous>, transform_indices = @transform_4, window_bounds = array<i64: 4, 1, 8>}, {pipeline_mode = #tpu.pipeline_mode<synchronous>, transform_indices = @transform_5, window_bounds = array<i64: 4, 32, 8>}, {pipeline_mode = #tpu.pipeline_mode<synchronous>, transform_indices = @transform_6, window_bounds = array<i64: 4, 1, 8>}, {pipeline_mode = #tpu.pipeline_mode<synchronous>, transform_indices = @transform_7, window_bounds = array<i64: 4, 32, 8>}, {pipeline_mode = #tpu.pipeline_mode<synchronous>, transform_indices = @transform_8, window_bounds = array<i64: 4, 1, 8>}, {pipeline_mode = #tpu.pipeline_mode<synchronous>, transform_indices = @transform_9, window_bounds = array<i64: 4, 8, 32>}, {pipeline_mode = #tpu.pipeline_mode<synchronous>, transform_indices = @transform_10, window_bounds = array<i64: 1, 32>}, {pipeline_mode = #tpu.pipeline_mode<synchronous>, transform_indices = @transform_11, window_bounds = array<i64: 1, 32>}, {pipeline_mode = #tpu.pipeline_mode<synchronous>, transform_indices = @transform_12, window_bounds = array<i64: 1, 32>}, {pipeline_mode = #tpu.pipeline_mode<synchronous>, transform_indices = @transform_13, window_bounds = array<i64: 32, 128>}, {pipeline_mode = #tpu.pipeline_mode<synchronous>, transform_indices = @transform_14, window_bounds = array<i64: 1, 128>}, {pipeline_mode = #tpu.pipeline_mode<synchronous>, transform_indices = @transform_15, window_bounds = array<i64: 128, 32>}, {pipeline_mode = #tpu.pipeline_mode<synchronous>, transform_indices = @transform_16, window_bounds = array<i64: 1, 32>}, {transform_indices = @transform_17, window_bounds = array<i64: 1, 8, 32>}]} {
    %c0 = arith.constant 0 : index
    %c0_0 = arith.constant 0 : index
    %c0_1 = arith.constant 0 : index
    %0 = vector.load %arg1[%c0, %c0_0, %c0_1] : memref<1x8x32xf32, #tpu.memory_space<vmem>>, vector<1x8x32xf32>
    %1 = vector.shape_cast %0 : vector<1x8x32xf32> to vector<8x32xf32>
    %c0_2 = arith.constant 0 : index
    %c0_3 = arith.constant 0 : index
    %2 = vector.load %arg2[%c0_2, %c0_3] : memref<1x32xf32, #tpu.memory_space<vmem>>, vector<1x32xf32>
    %c0_4 = arith.constant 0 : index
    %c0_5 = arith.constant 0 : index
    %3 = vector.load %arg3[%c0_4, %c0_5] : memref<1x32xf32, #tpu.memory_space<vmem>>, vector<1x32xf32>
    %cst = arith.constant dense<0.000000e+00> : vector<8xf32>
    %4 = vector.multi_reduction <add>, %1, %cst [1] : vector<8x32xf32> to vector<8xf32>
    %5 = vector.shape_cast %4 : vector<8xf32> to vector<8x1xf32>
    %cst_6 = arith.constant 3.200000e+01 : f32
    %6 = vector.broadcast %cst_6 : f32 to vector<8x1xf32>
    %7 = arith.divf %5, %6 : vector<8x1xf32>
    %8 = vector.broadcast %7 : vector<8x1xf32> to vector<8x32xf32>
    %9 = arith.subf %1, %8 : vector<8x32xf32>
    %10 = arith.mulf %9, %9 : vector<8x32xf32>
    %cst_7 = arith.constant dense<0.000000e+00> : vector<8xf32>
    %11 = vector.multi_reduction <add>, %10, %cst_7 [1] : vector<8x32xf32> to vector<8xf32>
    %12 = vector.shape_cast %11 : vector<8xf32> to vector<8x1xf32>
    %cst_8 = arith.constant 3.200000e+01 : f32
    %13 = vector.broadcast %cst_8 : f32 to vector<8x1xf32>
    %14 = arith.divf %12, %13 : vector<8x1xf32>
    %cst_9 = arith.constant 9.99999974E-6 : f32
    %15 = vector.broadcast %cst_9 : f32 to vector<8x1xf32>
    %16 = arith.addf %14, %15 : vector<8x1xf32>
    %17 = math.rsqrt %16 : vector<8x1xf32>
    %18 = vector.broadcast %17 : vector<8x1xf32> to vector<8x32xf32>
    %19 = arith.mulf %9, %18 : vector<8x32xf32>
    %20 = vector.broadcast %2 : vector<1x32xf32> to vector<8x32xf32>
    %21 = arith.mulf %19, %20 : vector<8x32xf32>
    %22 = vector.broadcast %3 : vector<1x32xf32> to vector<8x32xf32>
    %23 = arith.addf %21, %22 : vector<8x32xf32>
    %24 = vector.shape_cast %23 : vector<8x32xf32> to vector<1x8x32xf32>
    %25 = vector.shape_cast %24 : vector<1x8x32xf32> to vector<1x8x32xf32>
    %26 = vector.broadcast %25 : vector<1x8x32xf32> to vector<4x8x32xf32>
    %c0_10 = arith.constant 0 : index
    %c0_11 = arith.constant 0 : index
    %c0_12 = arith.constant 0 : index
    %27 = vector.load %arg4[%c0_10, %c0_11, %c0_12] : memref<4x32x8xf32, #tpu.memory_space<vmem>>, vector<4x32x8xf32>
    "tpu.trace_start"() <{level = 10 : i32, message = "htc,hcd->htd"}> : () -> ()
    %cst_13 = arith.constant dense<0.000000e+00> : vector<4x8x8xf32>
    %28 = tpu.matmul %26, %27, %cst_13 {dimension_numbers = #tpu.dot_dimension_numbers<[2], [1], [1], [2], [0, 0, 0, 1, 1, 2], [0], [0]>} : vector<4x8x32xf32>, vector<4x32x8xf32>, vector<4x8x8xf32> -> vector<4x8x8xf32>
    "tpu.trace_stop"() : () -> ()
    %c0_14 = arith.constant 0 : index
    %c0_15 = arith.constant 0 : index
    %c0_16 = arith.constant 0 : index
    %29 = vector.load %arg5[%c0_14, %c0_15, %c0_16] : memref<4x1x8xf32, #tpu.memory_space<vmem>>, vector<4x1x8xf32>
    %30 = vector.broadcast %29 : vector<4x1x8xf32> to vector<4x8x8xf32>
    %31 = arith.addf %28, %30 : vector<4x8x8xf32>
    %c0_17 = arith.constant 0 : index
    %c0_18 = arith.constant 0 : index
    %c0_19 = arith.constant 0 : index
    %32 = vector.load %arg6[%c0_17, %c0_18, %c0_19] : memref<4x32x8xf32, #tpu.memory_space<vmem>>, vector<4x32x8xf32>
    "tpu.trace_start"() <{level = 10 : i32, message = "htc,hcd->htd"}> : () -> ()
    %cst_20 = arith.constant dense<0.000000e+00> : vector<4x8x8xf32>
    %33 = tpu.matmul %26, %32, %cst_20 {dimension_numbers = #tpu.dot_dimension_numbers<[2], [1], [1], [2], [0, 0, 0, 1, 1, 2], [0], [0]>} : vector<4x8x32xf32>, vector<4x32x8xf32>, vector<4x8x8xf32> -> vector<4x8x8xf32>
    "tpu.trace_stop"() : () -> ()
    %c0_21 = arith.constant 0 : index
    %c0_22 = arith.constant 0 : index
    %c0_23 = arith.constant 0 : index
    %34 = vector.load %arg7[%c0_21, %c0_22, %c0_23] : memref<4x1x8xf32, #tpu.memory_space<vmem>>, vector<4x1x8xf32>
    %35 = vector.broadcast %34 : vector<4x1x8xf32> to vector<4x8x8xf32>
    %36 = arith.addf %33, %35 : vector<4x8x8xf32>
    %c0_24 = arith.constant 0 : index
    %c0_25 = arith.constant 0 : index
    %c0_26 = arith.constant 0 : index
    %37 = vector.load %arg8[%c0_24, %c0_25, %c0_26] : memref<4x32x8xf32, #tpu.memory_space<vmem>>, vector<4x32x8xf32>
    "tpu.trace_start"() <{level = 10 : i32, message = "htc,hcd->htd"}> : () -> ()
    %cst_27 = arith.constant dense<0.000000e+00> : vector<4x8x8xf32>
    %38 = tpu.matmul %26, %37, %cst_27 {dimension_numbers = #tpu.dot_dimension_numbers<[2], [1], [1], [2], [0, 0, 0, 1, 1, 2], [0], [0]>} : vector<4x8x32xf32>, vector<4x32x8xf32>, vector<4x8x8xf32> -> vector<4x8x8xf32>
    "tpu.trace_stop"() : () -> ()
    %c0_28 = arith.constant 0 : index
    %c0_29 = arith.constant 0 : index
    %c0_30 = arith.constant 0 : index
    %39 = vector.load %arg9[%c0_28, %c0_29, %c0_30] : memref<4x1x8xf32, #tpu.memory_space<vmem>>, vector<4x1x8xf32>
    %40 = vector.broadcast %39 : vector<4x1x8xf32> to vector<4x8x8xf32>
    %41 = arith.addf %38, %40 : vector<4x8x8xf32>
    %cst_31 = arith.constant 0.353553385 : f32
    %42 = vector.broadcast %cst_31 : f32 to vector<4x8x8xf32>
    %43 = arith.mulf %31, %42 : vector<4x8x8xf32>
    "tpu.trace_start"() <{level = 10 : i32, message = "hqd,hkd->hqk"}> : () -> ()
    %cst_32 = arith.constant dense<0.000000e+00> : vector<4x8x8xf32>
    %44 = tpu.matmul %43, %36, %cst_32 {dimension_numbers = #tpu.dot_dimension_numbers<[2], [2], [1], [1], [0, 0, 0, 1, 1, 1], [0], [0]>} : vector<4x8x8xf32>, vector<4x8x8xf32>, vector<4x8x8xf32> -> vector<4x8x8xf32>
    "tpu.trace_stop"() : () -> ()
    %45 = tpu.iota {dimensions = array<i32: 0>} : vector<8x8xi32>
    %46 = tpu.iota {dimensions = array<i32: 1>} : vector<8x8xi32>
    %47 = arith.cmpi sle, %46, %45 : vector<8x8xi32>
    %cst_33 = arith.constant 0.000000e+00 : f32
    %cst_34 = arith.constant -1.000000e+30 : f32
    %48 = vector.broadcast %cst_33 : f32 to vector<8x8xf32>
    %49 = vector.broadcast %cst_34 : f32 to vector<8x8xf32>
    %50 = arith.select %47, %48, %49 : vector<8x8xi1>, vector<8x8xf32>
    %51 = vector.shape_cast %50 : vector<8x8xf32> to vector<1x8x8xf32>
    %52 = vector.broadcast %51 : vector<1x8x8xf32> to vector<4x8x8xf32>
    %53 = arith.addf %44, %52 : vector<4x8x8xf32>
    %cst_35 = arith.constant dense<0xFF800000> : vector<4x8xf32>
    %54 = vector.multi_reduction <maximumf>, %53, %cst_35 [2] : vector<4x8x8xf32> to vector<4x8xf32>
    %55 = vector.shape_cast %54 : vector<4x8xf32> to vector<4x8x1xf32>
    %56 = vector.broadcast %55 : vector<4x8x1xf32> to vector<4x8x8xf32>
    %57 = arith.subf %53, %56 : vector<4x8x8xf32>
    %58 = math.exp %57 : vector<4x8x8xf32>
    %cst_36 = arith.constant dense<0.000000e+00> : vector<4x8xf32>
    %59 = vector.multi_reduction <add>, %58, %cst_36 [2] : vector<4x8x8xf32> to vector<4x8xf32>
    %60 = vector.shape_cast %59 : vector<4x8xf32> to vector<4x8x1xf32>
    %61 = vector.broadcast %60 : vector<4x8x1xf32> to vector<4x8x8xf32>
    %62 = arith.divf %58, %61 : vector<4x8x8xf32>
    "tpu.trace_start"() <{level = 10 : i32, message = "hqk,hkd->hqd"}> : () -> ()
    %cst_37 = arith.constant dense<0.000000e+00> : vector<4x8x8xf32>
    %63 = tpu.matmul %62, %41, %cst_37 {dimension_numbers = #tpu.dot_dimension_numbers<[2], [1], [1], [2], [0, 0, 0, 1, 1, 2], [0], [0]>} : vector<4x8x8xf32>, vector<4x8x8xf32>, vector<4x8x8xf32> -> vector<4x8x8xf32>
    "tpu.trace_stop"() : () -> ()
    %c0_38 = arith.constant 0 : index
    %c0_39 = arith.constant 0 : index
    %c0_40 = arith.constant 0 : index
    %64 = vector.load %arg10[%c0_38, %c0_39, %c0_40] : memref<4x8x32xf32, #tpu.memory_space<vmem>>, vector<4x8x32xf32>
    "tpu.trace_start"() <{level = 10 : i32, message = "htd,hdc->htc"}> : () -> ()
    %cst_41 = arith.constant dense<0.000000e+00> : vector<4x8x32xf32>
    %65 = tpu.matmul %63, %64, %cst_41 {dimension_numbers = #tpu.dot_dimension_numbers<[2], [1], [1], [2], [0, 0, 0, 1, 1, 2], [0], [0]>} : vector<4x8x8xf32>, vector<4x8x32xf32>, vector<4x8x32xf32> -> vector<4x8x32xf32>
    "tpu.trace_stop"() : () -> ()
    %cst_42 = arith.constant dense<0.000000e+00> : vector<8x32xf32>
    %66 = vector.multi_reduction <add>, %65, %cst_42 [0] : vector<4x8x32xf32> to vector<8x32xf32>
    %c0_43 = arith.constant 0 : index
    %c0_44 = arith.constant 0 : index
    %67 = vector.load %arg11[%c0_43, %c0_44] : memref<1x32xf32, #tpu.memory_space<vmem>>, vector<1x32xf32>
    %68 = vector.broadcast %67 : vector<1x32xf32> to vector<8x32xf32>
    %69 = arith.addf %66, %68 : vector<8x32xf32>
    %70 = arith.addf %1, %69 : vector<8x32xf32>
    %c0_45 = arith.constant 0 : index
    %c0_46 = arith.constant 0 : index
    %71 = vector.load %arg12[%c0_45, %c0_46] : memref<1x32xf32, #tpu.memory_space<vmem>>, vector<1x32xf32>
    %c0_47 = arith.constant 0 : index
    %c0_48 = arith.constant 0 : index
    %72 = vector.load %arg13[%c0_47, %c0_48] : memref<1x32xf32, #tpu.memory_space<vmem>>, vector<1x32xf32>
    %cst_49 = arith.constant dense<0.000000e+00> : vector<8xf32>
    %73 = vector.multi_reduction <add>, %70, %cst_49 [1] : vector<8x32xf32> to vector<8xf32>
    %74 = vector.shape_cast %73 : vector<8xf32> to vector<8x1xf32>
    %cst_50 = arith.constant 3.200000e+01 : f32
    %75 = vector.broadcast %cst_50 : f32 to vector<8x1xf32>
    %76 = arith.divf %74, %75 : vector<8x1xf32>
    %77 = vector.broadcast %76 : vector<8x1xf32> to vector<8x32xf32>
    %78 = arith.subf %70, %77 : vector<8x32xf32>
    %79 = arith.mulf %78, %78 : vector<8x32xf32>
    %cst_51 = arith.constant dense<0.000000e+00> : vector<8xf32>
    %80 = vector.multi_reduction <add>, %79, %cst_51 [1] : vector<8x32xf32> to vector<8xf32>
    %81 = vector.shape_cast %80 : vector<8xf32> to vector<8x1xf32>
    %cst_52 = arith.constant 3.200000e+01 : f32
    %82 = vector.broadcast %cst_52 : f32 to vector<8x1xf32>
    %83 = arith.divf %81, %82 : vector<8x1xf32>
    %cst_53 = arith.constant 9.99999974E-6 : f32
    %84 = vector.broadcast %cst_53 : f32 to vector<8x1xf32>
    %85 = arith.addf %83, %84 : vector<8x1xf32>
    %86 = math.rsqrt %85 : vector<8x1xf32>
    %87 = vector.broadcast %86 : vector<8x1xf32> to vector<8x32xf32>
    %88 = arith.mulf %78, %87 : vector<8x32xf32>
    %89 = vector.broadcast %71 : vector<1x32xf32> to vector<8x32xf32>
    %90 = arith.mulf %88, %89 : vector<8x32xf32>
    %91 = vector.broadcast %72 : vector<1x32xf32> to vector<8x32xf32>
    %92 = arith.addf %90, %91 : vector<8x32xf32>
    %c0_54 = arith.constant 0 : index
    %c0_55 = arith.constant 0 : index
    %93 = vector.load %arg14[%c0_54, %c0_55] : memref<32x128xf32, #tpu.memory_space<vmem>>, vector<32x128xf32>
    %cst_56 = arith.constant dense<0.000000e+00> : vector<8x128xf32>
    %94 = tpu.matmul %92, %93, %cst_56 {dimension_numbers = #tpu.dot_dimension_numbers<[1], [0], [0], [1], [0, 0, 1, 1], [], []>} : vector<8x32xf32>, vector<32x128xf32>, vector<8x128xf32> -> vector<8x128xf32>
    %c0_57 = arith.constant 0 : index
    %c0_58 = arith.constant 0 : index
    %95 = vector.load %arg15[%c0_57, %c0_58] : memref<1x128xf32, #tpu.memory_space<vmem>>, vector<1x128xf32>
    %96 = vector.broadcast %95 : vector<1x128xf32> to vector<8x128xf32>
    %97 = arith.addf %94, %96 : vector<8x128xf32>
    %98 = arith.mulf %97, %97 : vector<8x128xf32>
    %cst_59 = arith.constant 5.000000e-01 : f32
    %99 = vector.broadcast %cst_59 : f32 to vector<8x128xf32>
    %100 = arith.mulf %99, %97 : vector<8x128xf32>
    %cst_60 = arith.constant 4.471500e-02 : f32
    %101 = vector.broadcast %cst_60 : f32 to vector<8x128xf32>
    %102 = arith.mulf %101, %97 : vector<8x128xf32>
    %103 = arith.mulf %102, %98 : vector<8x128xf32>
    %104 = arith.addf %97, %103 : vector<8x128xf32>
    %cst_61 = arith.constant 0.797884583 : f32
    %105 = vector.broadcast %cst_61 : f32 to vector<8x128xf32>
    %106 = arith.mulf %105, %104 : vector<8x128xf32>
    %107 = math.tanh %106 : vector<8x128xf32>
    %cst_62 = arith.constant 1.000000e+00 : f32
    %108 = vector.broadcast %cst_62 : f32 to vector<8x128xf32>
    %109 = arith.addf %108, %107 : vector<8x128xf32>
    %110 = arith.mulf %100, %109 : vector<8x128xf32>
    %c0_63 = arith.constant 0 : index
    %c0_64 = arith.constant 0 : index
    %111 = vector.load %arg16[%c0_63, %c0_64] : memref<128x32xf32, #tpu.memory_space<vmem>>, vector<128x32xf32>
    %cst_65 = arith.constant dense<0.000000e+00> : vector<8x32xf32>
    %112 = tpu.matmul %110, %111, %cst_65 {dimension_numbers = #tpu.dot_dimension_numbers<[1], [0], [0], [1], [0, 0, 1, 1], [], []>} : vector<8x128xf32>, vector<128x32xf32>, vector<8x32xf32> -> vector<8x32xf32>
    %c0_66 = arith.constant 0 : index
    %c0_67 = arith.constant 0 : index
    %113 = vector.load %arg17[%c0_66, %c0_67] : memref<1x32xf32, #tpu.memory_space<vmem>>, vector<1x32xf32>
    %114 = vector.broadcast %113 : vector<1x32xf32> to vector<8x32xf32>
    %115 = arith.addf %112, %114 : vector<8x32xf32>
    %116 = arith.addf %70, %115 : vector<8x32xf32>
    %117 = vector.shape_cast %116 : vector<8x32xf32> to vector<1x8x32xf32>
    %c0_68 = arith.constant 0 : index
    %c0_69 = arith.constant 0 : index
    %c0_70 = arith.constant 0 : index
    %118 = vector.load %arg18[%c0_68, %c0_69, %c0_70] : memref<1x8x32xf32, #tpu.memory_space<vmem>>, vector<1x8x32xf32>
    tpu.vector_store %arg18[%c0_68, %c0_69, %c0_70], %117 {strides = array<i32>} : memref<1x8x32xf32, #tpu.memory_space<vmem>>, vector<1x8x32xf32>,
    return
  }
  func.func @transform_0(%arg0: i32) -> (i32, i32, i32) {
    %c0_i32 = arith.constant 0 : i32
    %c0_i32_0 = arith.constant 0 : i32
    %c0_i32_1 = arith.constant 0 : i32
    return %arg0, %c0_i32, %c0_i32_0 : i32, i32, i32
  }
  func.func @transform_1(%arg0: i32) -> (i32, i32) {
    %c0_i32 = arith.constant 0 : i32
    %c0_i32_0 = arith.constant 0 : i32
    %c0_i32_1 = arith.constant 0 : i32
    return %c0_i32, %c0_i32_0 : i32, i32
  }
  func.func @transform_2(%arg0: i32) -> (i32, i32) {
    %c0_i32 = arith.constant 0 : i32
    %c0_i32_0 = arith.constant 0 : i32
    %c0_i32_1 = arith.constant 0 : i32
    return %c0_i32, %c0_i32_0 : i32, i32
  }
  func.func @transform_3(%arg0: i32) -> (i32, i32, i32) {
    %c0_i32 = arith.constant 0 : i32
    %c0_i32_0 = arith.constant 0 : i32
    %c0_i32_1 = arith.constant 0 : i32
    %c0_i32_2 = arith.constant 0 : i32
    return %c0_i32, %c0_i32_0, %c0_i32_1 : i32, i32, i32
  }
  func.func @transform_4(%arg0: i32) -> (i32, i32, i32) {
    %c0_i32 = arith.constant 0 : i32
    %c0_i32_0 = arith.constant 0 : i32
    %c0_i32_1 = arith.constant 0 : i32
    %c0_i32_2 = arith.constant 0 : i32
    return %c0_i32, %c0_i32_0, %c0_i32_1 : i32, i32, i32
  }
  func.func @transform_5(%arg0: i32) -> (i32, i32, i32) {
    %c0_i32 = arith.constant 0 : i32
    %c0_i32_0 = arith.constant 0 : i32
    %c0_i32_1 = arith.constant 0 : i32
    %c0_i32_2 = arith.constant 0 : i32
    return %c0_i32, %c0_i32_0, %c0_i32_1 : i32, i32, i32
  }
  func.func @transform_6(%arg0: i32) -> (i32, i32, i32) {
    %c0_i32 = arith.constant 0 : i32
    %c0_i32_0 = arith.constant 0 : i32
    %c0_i32_1 = arith.constant 0 : i32
    %c0_i32_2 = arith.constant 0 : i32
    return %c0_i32, %c0_i32_0, %c0_i32_1 : i32, i32, i32
  }
  func.func @transform_7(%arg0: i32) -> (i32, i32, i32) {
    %c0_i32 = arith.constant 0 : i32
    %c0_i32_0 = arith.constant 0 : i32
    %c0_i32_1 = arith.constant 0 : i32
    %c0_i32_2 = arith.constant 0 : i32
    return %c0_i32, %c0_i32_0, %c0_i32_1 : i32, i32, i32
  }
  func.func @transform_8(%arg0: i32) -> (i32, i32, i32) {
    %c0_i32 = arith.constant 0 : i32
    %c0_i32_0 = arith.constant 0 : i32
    %c0_i32_1 = arith.constant 0 : i32
    %c0_i32_2 = arith.constant 0 : i32
    return %c0_i32, %c0_i32_0, %c0_i32_1 : i32, i32, i32
  }
  func.func @transform_9(%arg0: i32) -> (i32, i32, i32) {
    %c0_i32 = arith.constant 0 : i32
    %c0_i32_0 = arith.constant 0 : i32
    %c0_i32_1 = arith.constant 0 : i32
    %c0_i32_2 = arith.constant 0 : i32
    return %c0_i32, %c0_i32_0, %c0_i32_1 : i32, i32, i32
  }
  func.func @transform_10(%arg0: i32) -> (i32, i32) {
    %c0_i32 = arith.constant 0 : i32
    %c0_i32_0 = arith.constant 0 : i32
    %c0_i32_1 = arith.constant 0 : i32
    return %c0_i32, %c0_i32_0 : i32, i32
  }
  func.func @transform_11(%arg0: i32) -> (i32, i32) {
    %c0_i32 = arith.constant 0 : i32
    %c0_i32_0 = arith.constant 0 : i32
    %c0_i32_1 = arith.constant 0 : i32
    return %c0_i32, %c0_i32_0 : i32, i32
  }
  func.func @transform_12(%arg0: i32) -> (i32, i32) {
    %c0_i32 = arith.constant 0 : i32
    %c0_i32_0 = arith.constant 0 : i32
    %c0_i32_1 = arith.constant 0 : i32
    return %c0_i32, %c0_i32_0 : i32, i32
  }
  func.func @transform_13(%arg0: i32) -> (i32, i32) {
    %c0_i32 = arith.constant 0 : i32
    %c0_i32_0 = arith.constant 0 : i32
    %c0_i32_1 = arith.constant 0 : i32
    return %c0_i32, %c0_i32_0 : i32, i32
  }
  func.func @transform_14(%arg0: i32) -> (i32, i32) {
    %c0_i32 = arith.constant 0 : i32
    %c0_i32_0 = arith.constant 0 : i32
    %c0_i32_1 = arith.constant 0 : i32
    return %c0_i32, %c0_i32_0 : i32, i32
  }
  func.func @transform_15(%arg0: i32) -> (i32, i32) {
    %c0_i32 = arith.constant 0 : i32
    %c0_i32_0 = arith.constant 0 : i32
    %c0_i32_1 = arith.constant 0 : i32
    return %c0_i32, %c0_i32_0 : i32, i32
  }
  func.func @transform_16(%arg0: i32) -> (i32, i32) {
    %c0_i32 = arith.constant 0 : i32
    %c0_i32_0 = arith.constant 0 : i32
    %c0_i32_1 = arith.constant 0 : i32
    return %c0_i32, %c0_i32_0 : i32, i32
  }
  func.func @transform_17(%arg0: i32) -> (i32, i32, i32) {
    %c0_i32 = arith.constant 0 : i32
    %c0_i32_0 = arith.constant 0 : i32
    %c0_i32_1 = arith.constant 0 : i32
    return %arg0, %c0_i32, %c0_i32_0 : i32, i32, i32
  }
}

</mosaic_0001>

<llo_original>
// kernel: tpu_custom_call.1
$region0: #{tpu_custom_call.1}
  #allocation0 [shape = 'u32[]', space=smem, size = 0x4, offset = 0x4, fixed_abs, tag = 'smem constant byte address 0x4 - core index']
  #allocation1 [shape = 'u32[144,128]{1,0:T(1,128)}', space=vmem, size = 0x12000, scoped, tag = 'internal scratch']
  %s0 = inlined_call_operand.vmem [shape: f32[2,8,32], index: 0, kind: input, shape index: {}]
  %s1 = inlined_call_operand.vmem [shape: f32[1,32], index: 1, kind: input, shape index: {}]
  %s2 = inlined_call_operand.vmem [shape: f32[1,32], index: 2, kind: input, shape index: {}]
  %s3 = inlined_call_operand.vmem [shape: f32[4,32,8], index: 3, kind: input, shape index: {}]
  %s4 = inlined_call_operand.vmem [shape: f32[4,1,8], index: 4, kind: input, shape index: {}]
  %s5 = inlined_call_operand.vmem [shape: f32[4,32,8], index: 5, kind: input, shape index: {}]
  %s6 = inlined_call_operand.vmem [shape: f32[4,1,8], index: 6, kind: input, shape index: {}]
  %s7 = inlined_call_operand.vmem [shape: f32[4,32,8], index: 7, kind: input, shape index: {}]
  %s8 = inlined_call_operand.vmem [shape: f32[4,1,8], index: 8, kind: input, shape index: {}]
  %s9 = inlined_call_operand.vmem [shape: f32[4,8,32], index: 9, kind: input, shape index: {}]
  %s10 = inlined_call_operand.vmem [shape: f32[1,32], index: 10, kind: input, shape index: {}]
  %s11 = inlined_call_operand.vmem [shape: f32[1,32], index: 11, kind: input, shape index: {}]
  %s12 = inlined_call_operand.vmem [shape: f32[1,32], index: 12, kind: input, shape index: {}]
  %s13 = inlined_call_operand.vmem [shape: f32[32,128], index: 13, kind: input, shape index: {}]
  %s14 = inlined_call_operand.vmem [shape: f32[1,128], index: 14, kind: input, shape index: {}]
  %s15 = inlined_call_operand.vmem [shape: f32[128,32], index: 15, kind: input, shape index: {}]
  %s16 = inlined_call_operand.vmem [shape: f32[1,32], index: 16, kind: input, shape index: {}]
  %s17 = inlined_call_operand.hbm [shape: f32[2,8,32], index: 17, kind: output, shape index: {}]
  %s18 = sld [smem:[#allocation0]]
  $region101: #{tpu_custom_call.1} parent=0
    _
  %s20 = ssub.s32 1, %s18
  %s21 = scalar_select 0, %s20, %s18
  $region1: #{tpu_custom_call.1} parent=0
    #allocation2 [shape = 'u8[8192]{0}', space=vmem, size = 0x2000, scoped, tag = 'output window, operand 0']
    #allocation3 [shape = 's32[2]{0}', space=sflag, size = 0x8, scoped, tag = 'scoped memory for tpu_custom_call.1']
    %22 = vsyncpa [#allocation3], 0
    %s23 = scalar_lea.sflag [#allocation3], 1
    %24 = vsyncpa %s23, 0
    loop: start=0, step=1, limit=4
    $region2: #{tpu_custom_call.1} parent=1 // loop_pre_header
      _
    $region3: #{tpu_custom_call.1} parent=1 // loop_header
      %s26 = sphi 0, %s30
      %p27 = scmp.ge.s32.totalorder %s26, 4
      %s36 = sphi 0, %s38
      %s39 = sphi 0, %s36
      %s40 = sphi 0, %s39
      %s56 = sphi 0, %s40
      %s60 = sphi 0, %s60
      %s62 = sphi 0, %s60
      %s63 = sphi 0, %s62
      %s77 = sphi 0, %s63
      %s81 = sphi 0, %s81
      %s83 = sphi 0, %s81
      %s84 = sphi 0, %s83
      %s98 = sphi 0, %s84
      %s102 = sphi 0, %s102
      %s104 = sphi 0, %s102
      %s105 = sphi 0, %s104
      %s119 = sphi 0, %s105
      %s123 = sphi 0, %s123
      %s125 = sphi 0, %s123
      %s126 = sphi 0, %s125
      %s140 = sphi 0, %s126
      %s144 = sphi 0, %s144
      %s146 = sphi 0, %s144
      %s147 = sphi 0, %s146
      %s161 = sphi 0, %s147
      %s165 = sphi 0, %s165
      %s167 = sphi 0, %s165
      %s168 = sphi 0, %s167
      %s182 = sphi 0, %s168
      %s186 = sphi 0, %s186
      %s188 = sphi 0, %s186
      %s189 = sphi 0, %s188
      %s203 = sphi 0, %s189
      %s207 = sphi 0, %s207
      %s209 = sphi 0, %s207
      %s210 = sphi 0, %s209
      %s224 = sphi 0, %s210
      %s228 = sphi 0, %s228
      %s230 = sphi 0, %s228
      %s231 = sphi 0, %s230
      %s245 = sphi 0, %s231
      %s249 = sphi 0, %s249
      %s251 = sphi 0, %s249
      %s252 = sphi 0, %s251
      %s266 = sphi 0, %s252
      %s270 = sphi 0, %s270
      %s272 = sphi 0, %s270
      %s273 = sphi 0, %s272
      %s287 = sphi 0, %s273
      %s291 = sphi 0, %s291
      %s293 = sphi 0, %s291
      %s294 = sphi 0, %s293
      %s308 = sphi 0, %s294
      %s312 = sphi 0, %s312
      %s314 = sphi 0, %s312
      %s315 = sphi 0, %s314
      %s329 = sphi 0, %s315
      %s333 = sphi 0, %s333
      %s335 = sphi 0, %s333
      %s336 = sphi 0, %s335
      %s350 = sphi 0, %s336
      %s354 = sphi 0, %s354
      %s356 = sphi 0, %s354
      %s357 = sphi 0, %s356
      %s371 = sphi 0, %s357
      %s375 = sphi 0, %s375
      %s377 = sphi 0, %s375
      %s378 = sphi 0, %s377
      %s392 = sphi 0, %s378
      %s398 = sphi 0, %s400
      %s401 = sphi 0, %s398
      %s402 = sphi 0, %s401
      %s418 = sphi 0, %s402
    $region4: #{tpu_custom_call.1} parent=1 // loop_header_branch
      %29 = sbr.rel (%p27) target = $region8
    $region5: #{tpu_custom_call.1} parent=1 // loop_body
      %s31 = ssub.s32 %s26, 1
      %s32 = ssub.s32 %s26, 2
      %s33 = sadd.s32 %s26, 1
      %s34 = ssub.s32 %s26, %s33
      %p35 = scmp.eq.s32.totalorder %s34, 0
      %s37 = sadd.s32 %s36, 1
      %s38 = scalar_select %p35, %s36, %s37
      %p41 = pneg %p35
      %p42 = scmp.eq.s32.totalorder %s26, 1
      %p43 = por %p41, %p42
      %p44 = scmp.ne.s32.totalorder %s36, %s39
      %p45 = scmp.eq.s32.totalorder %s26, 0
      %p46 = por %p44, %p45
      %p47 = scmp.ne.s32.totalorder %s36, %s39
      %p48 = scmp.eq.s32.totalorder %s31, 1
      %p49 = por %p47, %p48
      %p50 = scmp.ne.s32.totalorder %s39, %s40
      %p51 = scmp.eq.s32.totalorder %s31, 0
      %p52 = por %p50, %p51
      %p53 = scmp.ne.s32.totalorder %s39, %s40
      %p54 = scmp.eq.s32.totalorder %s32, 1
      %p55 = por %p53, %p54
      %p57 = scmp.ne.s32.totalorder %s40, %s56
      %p58 = scmp.eq.s32.totalorder %s32, 0
      %p59 = por %p57, %p58
      %s61 = sadd.s32 %s60, 1
      %p64 = scmp.eq.s32.totalorder %s26, 1
      %p65 = scmp.ne.s32.totalorder %s60, %s62
      %p66 = scmp.eq.s32.totalorder %s26, 0
      %p67 = por %p65, %p66
      %p68 = scmp.ne.s32.totalorder %s60, %s62
      %p69 = scmp.eq.s32.totalorder %s31, 1
      %p70 = por %p68, %p69
      %p71 = scmp.ne.s32.totalorder %s62, %s63
      %p72 = scmp.eq.s32.totalorder %s31, 0
      %p73 = por %p71, %p72
      %p74 = scmp.ne.s32.totalorder %s62, %s63
      %p75 = scmp.eq.s32.totalorder %s32, 1
      %p76 = por %p74, %p75
      %p78 = scmp.ne.s32.totalorder %s63, %s77
      %p79 = scmp.eq.s32.totalorder %s32, 0
      %p80 = por %p78, %p79
      %s82 = sadd.s32 %s81, 1
      %p85 = scmp.eq.s32.totalorder %s26, 1
      %p86 = scmp.ne.s32.totalorder %s81, %s83
      %p87 = scmp.eq.s32.totalorder %s26, 0
      %p88 = por %p86, %p87
      %p89 = scmp.ne.s32.totalorder %s81, %s83
      %p90 = scmp.eq.s32.totalorder %s31, 1
      %p91 = por %p89, %p90
      %p92 = scmp.ne.s32.totalorder %s83, %s84
      %p93 = scmp.eq.s32.totalorder %s31, 0
      %p94 = por %p92, %p93
      %p95 = scmp.ne.s32.totalorder %s83, %s84
      %p96 = scmp.eq.s32.totalorder %s32, 1
      %p97 = por %p95, %p96
      %p99 = scmp.ne.s32.totalorder %s84, %s98
      %p100 = scmp.eq.s32.totalorder %s32, 0
      %p101 = por %p99, %p100
      %s103 = sadd.s32 %s102, 1
      %p106 = scmp.eq.s32.totalorder %s26, 1
      %p107 = scmp.ne.s32.totalorder %s102, %s104
      %p108 = scmp.eq.s32.totalorder %s26, 0
      %p109 = por %p107, %p108
      %p110 = scmp.ne.s32.totalorder %s102, %s104
      %p111 = scmp.eq.s32.totalorder %s31, 1
      %p112 = por %p110, %p111
      %p113 = scmp.ne.s32.totalorder %s104, %s105
      %p114 = scmp.eq.s32.totalorder %s31, 0
      %p115 = por %p113, %p114
      %p116 = scmp.ne.s32.totalorder %s104, %s105
      %p117 = scmp.eq.s32.totalorder %s32, 1
      %p118 = por %p116, %p117
      %p120 = scmp.ne.s32.totalorder %s105, %s119
      %p121 = scmp.eq.s32.totalorder %s32, 0
      %p122 = por %p120, %p121
      %s124 = sadd.s32 %s123, 1
      %p127 = scmp.eq.s32.totalorder %s26, 1
      %p128 = scmp.ne.s32.totalorder %s123, %s125
      %p129 = scmp.eq.s32.totalorder %s26, 0
      %p130 = por %p128, %p129
      %p131 = scmp.ne.s32.totalorder %s123, %s125
      %p132 = scmp.eq.s32.totalorder %s31, 1
      %p133 = por %p131, %p132
      %p134 = scmp.ne.s32.totalorder %s125, %s126
      %p135 = scmp.eq.s32.totalorder %s31, 0
      %p136 = por %p134, %p135
      %p137 = scmp.ne.s32.totalorder %s125, %s126
      %p138 = scmp.eq.s32.totalorder %s32, 1
      %p139 = por %p137, %p138
      %p141 = scmp.ne.s32.totalorder %s126, %s140
      %p142 = scmp.eq.s32.totalorder %s32, 0
      %p143 = por %p141, %p142
      %s145 = sadd.s32 %s144, 1
      %p148 = scmp.eq.s32.totalorder %s26, 1
      %p149 = scmp.ne.s32.totalorder %s144, %s146
      %p150 = scmp.eq.s32.totalorder %s26, 0
      %p151 = por %p149, %p150
      %p152 = scmp.ne.s32.totalorder %s144, %s146
      %p153 = scmp.eq.s32.totalorder %s31, 1
      %p154 = por %p152, %p153
      %p155 = scmp.ne.s32.totalorder %s146, %s147
      %p156 = scmp.eq.s32.totalorder %s31, 0
      %p157 = por %p155, %p156
      %p158 = scmp.ne.s32.totalorder %s146, %s147
      %p159 = scmp.eq.s32.totalorder %s32, 1
      %p160 = por %p158, %p159
      %p162 = scmp.ne.s32.totalorder %s147, %s161
      %p163 = scmp.eq.s32.totalorder %s32, 0
      %p164 = por %p162, %p163
      %s166 = sadd.s32 %s165, 1
      %p169 = scmp.eq.s32.totalorder %s26, 1
      %p170 = scmp.ne.s32.totalorder %s165, %s167
      %p171 = scmp.eq.s32.totalorder %s26, 0
      %p172 = por %p170, %p171
      %p173 = scmp.ne.s32.totalorder %s165, %s167
      %p174 = scmp.eq.s32.totalorder %s31, 1
      %p175 = por %p173, %p174
      %p176 = scmp.ne.s32.totalorder %s167, %s168
      %p177 = scmp.eq.s32.totalorder %s31, 0
      %p178 = por %p176, %p177
      %p179 = scmp.ne.s32.totalorder %s167, %s168
      %p180 = scmp.eq.s32.totalorder %s32, 1
      %p181 = por %p179, %p180
      %p183 = scmp.ne.s32.totalorder %s168, %s182
      %p184 = scmp.eq.s32.totalorder %s32, 0
      %p185 = por %p183, %p184
      %s187 = sadd.s32 %s186, 1
      %p190 = scmp.eq.s32.totalorder %s26, 1
      %p191 = scmp.ne.s32.totalorder %s186, %s188
      %p192 = scmp.eq.s32.totalorder %s26, 0
      %p193 = por %p191, %p192
      %p194 = scmp.ne.s32.totalorder %s186, %s188
      %p195 = scmp.eq.s32.totalorder %s31, 1
      %p196 = por %p194, %p195
      %p197 = scmp.ne.s32.totalorder %s188, %s189
      %p198 = scmp.eq.s32.totalorder %s31, 0
      %p199 = por %p197, %p198
      %p200 = scmp.ne.s32.totalorder %s188, %s189
      %p201 = scmp.eq.s32.totalorder %s32, 1
      %p202 = por %p200, %p201
      %p204 = scmp.ne.s32.totalorder %s189, %s203
      %p205 = scmp.eq.s32.totalorder %s32, 0
      %p206 = por %p204, %p205
      %s208 = sadd.s32 %s207, 1
      %p211 = scmp.eq.s32.totalorder %s26, 1
      %p212 = scmp.ne.s32.totalorder %s207, %s209
      %p213 = scmp.eq.s32.totalorder %s26, 0
      %p214 = por %p212, %p213
      %p215 = scmp.ne.s32.totalorder %s207, %s209
      %p216 = scmp.eq.s32.totalorder %s31, 1
      %p217 = por %p215, %p216
      %p218 = scmp.ne.s32.totalorder %s209, %s210
      %p219 = scmp.eq.s32.totalorder %s31, 0
      %p220 = por %p218, %p219
      %p221 = scmp.ne.s32.totalorder %s209, %s210
      %p222 = scmp.eq.s32.totalorder %s32, 1
      %p223 = por %p221, %p222
      %p225 = scmp.ne.s32.totalorder %s210, %s224
      %p226 = scmp.eq.s32.totalorder %s32, 0
      %p227 = por %p225, %p226
      %s229 = sadd.s32 %s228, 1
      %p232 = scmp.eq.s32.totalorder %s26, 1
      %p233 = scmp.ne.s32.totalorder %s228, %s230
      %p234 = scmp.eq.s32.totalorder %s26, 0
      %p235 = por %p233, %p234
      %p236 = scmp.ne.s32.totalorder %s228, %s230
      %p237 = scmp.eq.s32.totalorder %s31, 1
      %p238 = por %p236, %p237
      %p239 = scmp.ne.s32.totalorder %s230, %s231
      %p240 = scmp.eq.s32.totalorder %s31, 0
      %p241 = por %p239, %p240
      %p242 = scmp.ne.s32.totalorder %s230, %s231
      %p243 = scmp.eq.s32.totalorder %s32, 1
      %p244 = por %p242, %p243
      %p246 = scmp.ne.s32.totalorder %s231, %s245
      %p247 = scmp.eq.s32.totalorder %s32, 0
      %p248 = por %p246, %p247
      %s250 = sadd.s32 %s249, 1
      %p253 = scmp.eq.s32.totalorder %s26, 1
      %p254 = scmp.ne.s32.totalorder %s249, %s251
      %p255 = scmp.eq.s32.totalorder %s26, 0
      %p256 = por %p254, %p255
      %p257 = scmp.ne.s32.totalorder %s249, %s251
      %p258 = scmp.eq.s32.totalorder %s31, 1
      %p259 = por %p257, %p258
      %p260 = scmp.ne.s32.totalorder %s251, %s252
      %p261 = scmp.eq.s32.totalorder %s31, 0
      %p262 = por %p260, %p261
      %p263 = scmp.ne.s32.totalorder %s251, %s252
      %p264 = scmp.eq.s32.totalorder %s32, 1
      %p265 = por %p263, %p264
      %p267 = scmp.ne.s32.totalorder %s252, %s266
      %p268 = scmp.eq.s32.totalorder %s32, 0
      %p269 = por %p267, %p268
      %s271 = sadd.s32 %s270, 1
      %p274 = scmp.eq.s32.totalorder %s26, 1
      %p275 = scmp.ne.s32.totalorder %s270, %s272
      %p276 = scmp.eq.s32.totalorder %s26, 0
      %p277 = por %p275, %p276
      %p278 = scmp.ne.s32.totalorder %s270, %s272
      %p279 = scmp.eq.s32.totalorder %s31, 1
      %p280 = por %p278, %p279
      %p281 = scmp.ne.s32.totalorder %s272, %s273
      %p282 = scmp.eq.s32.totalorder %s31, 0
      %p283 = por %p281, %p282
      %p284 = scmp.ne.s32.totalorder %s272, %s273
      %p285 = scmp.eq.s32.totalorder %s32, 1
      %p286 = por %p284, %p285
      %p288 = scmp.ne.s32.totalorder %s273, %s287
      %p289 = scmp.eq.s32.totalorder %s32, 0
      %p290 = por %p288, %p289
      %s292 = sadd.s32 %s291, 1
      %p295 = scmp.eq.s32.totalorder %s26, 1
      %p296 = scmp.ne.s32.totalorder %s291, %s293
      %p297 = scmp.eq.s32.totalorder %s26, 0
      %p298 = por %p296, %p297
      %p299 = scmp.ne.s32.totalorder %s291, %s293
      %p300 = scmp.eq.s32.totalorder %s31, 1
      %p301 = por %p299, %p300
      %p302 = scmp.ne.s32.totalorder %s293, %s294
      %p303 = scmp.eq.s32.totalorder %s31, 0
      %p304 = por %p302, %p303
      %p305 = scmp.ne.s32.totalorder %s293, %s294
      %p306 = scmp.eq.s32.totalorder %s32, 1
      %p307 = por %p305, %p306
      %p309 = scmp.ne.s32.totalorder %s294, %s308
      %p310 = scmp.eq.s32.totalorder %s32, 0
      %p311 = por %p309, %p310
      %s313 = sadd.s32 %s312, 1
      %p316 = scmp.eq.s32.totalorder %s26, 1
      %p317 = scmp.ne.s32.totalorder %s312, %s314
      %p318 = scmp.eq.s32.totalorder %s26, 0
      %p319 = por %p317, %p318
      %p320 = scmp.ne.s32.totalorder %s312, %s314
      %p321 = scmp.eq.s32.totalorder %s31, 1
      %p322 = por %p320, %p321
      %p323 = scmp.ne.s32.totalorder %s314, %s315
      %p324 = scmp.eq.s32.totalorder %s31, 0
      %p325 = por %p323, %p324
      %p326 = scmp.ne.s32.totalorder %s314, %s315
      %p327 = scmp.eq.s32.totalorder %s32, 1
      %p328 = por %p326, %p327
      %p330 = scmp.ne.s32.totalorder %s315, %s329
      %p331 = scmp.eq.s32.totalorder %s32, 0
      %p332 = por %p330, %p331
      %s334 = sadd.s32 %s333, 1
      %p337 = scmp.eq.s32.totalorder %s26, 1
      %p338 = scmp.ne.s32.totalorder %s333, %s335
      %p339 = scmp.eq.s32.totalorder %s26, 0
      %p340 = por %p338, %p339
      %p341 = scmp.ne.s32.totalorder %s333, %s335
      %p342 = scmp.eq.s32.totalorder %s31, 1
      %p343 = por %p341, %p342
      %p344 = scmp.ne.s32.totalorder %s335, %s336
      %p345 = scmp.eq.s32.totalorder %s31, 0
      %p346 = por %p344, %p345
      %p347 = scmp.ne.s32.totalorder %s335, %s336
      %p348 = scmp.eq.s32.totalorder %s32, 1
      %p349 = por %p347, %p348
      %p351 = scmp.ne.s32.totalorder %s336, %s350
      %p352 = scmp.eq.s32.totalorder %s32, 0
      %p353 = por %p351, %p352
      %s355 = sadd.s32 %s354, 1
      %p358 = scmp.eq.s32.totalorder %s26, 1
      %p359 = scmp.ne.s32.totalorder %s354, %s356
      %p360 = scmp.eq.s32.totalorder %s26, 0
      %p361 = por %p359, %p360
      %p362 = scmp.ne.s32.totalorder %s354, %s356
      %p363 = scmp.eq.s32.totalorder %s31, 1
      %p364 = por %p362, %p363
      %p365 = scmp.ne.s32.totalorder %s356, %s357
      %p366 = scmp.eq.s32.totalorder %s31, 0
      %p367 = por %p365, %p366
      %p368 = scmp.ne.s32.totalorder %s356, %s357
      %p369 = scmp.eq.s32.totalorder %s32, 1
      %p370 = por %p368, %p369
      %p372 = scmp.ne.s32.totalorder %s357, %s371
      %p373 = scmp.eq.s32.totalorder %s32, 0
      %p374 = por %p372, %p373
      %s376 = sadd.s32 %s375, 1
      %p379 = scmp.eq.s32.totalorder %s26, 1
      %p380 = scmp.ne.s32.totalorder %s375, %s377
      %p381 = scmp.eq.s32.totalorder %s26, 0
      %p382 = por %p380, %p381
      %p383 = scmp.ne.s32.totalorder %s375, %s377
      %p384 = scmp.eq.s32.totalorder %s31, 1
      %p385 = por %p383, %p384
      %p386 = scmp.ne.s32.totalorder %s377, %s378
      %p387 = scmp.eq.s32.totalorder %s31, 0
      %p388 = por %p386, %p387
      %p389 = scmp.ne.s32.totalorder %s377, %s378
      %p390 = scmp.eq.s32.totalorder %s32, 1
      %p391 = por %p389, %p390
      %p393 = scmp.ne.s32.totalorder %s378, %s392
      %p394 = scmp.eq.s32.totalorder %s32, 0
      %p395 = por %p393, %p394
      %s396 = ssub.s32 %s26, %s33
      %p397 = scmp.eq.s32.totalorder %s396, 0
      %s399 = sadd.s32 %s398, 1
      %s400 = scalar_select %p397, %s398, %s399
      %p403 = pneg %p397
      %p404 = scmp.eq.s32.totalorder %s26, 1
      %p405 = por %p403, %p404
      %p406 = scmp.ne.s32.totalorder %s398, %s401
      %p407 = scmp.eq.s32.totalorder %s26, 0
      %p408 = por %p406, %p407
      %p409 = scmp.ne.s32.totalorder %s398, %s401
      %p410 = scmp.eq.s32.totalorder %s31, 1
      %p411 = por %p409, %p410
      %p412 = scmp.ne.s32.totalorder %s401, %s402
      %p413 = scmp.eq.s32.totalorder %s31, 0
      %p414 = por %p412, %p413
      %p415 = scmp.ne.s32.totalorder %s401, %s402
      %p416 = scmp.eq.s32.totalorder %s32, 1
      %p417 = por %p415, %p416
      %p419 = scmp.ne.s32.totalorder %s402, %s418
      %p420 = scmp.eq.s32.totalorder %s32, 0
      %p421 = por %p419, %p420
      %p422 = scmp.le.s32.totalorder 1, %s26
      %p423 = scmp.lt.s32.totalorder %s26, 3
      %p424 = pnand %p422, %p423
      %p425 = pneg %p424
      // Predicated region
      $region9: #{tpu_custom_call.1} parent=5 // pred_check
        _
      $region10: #{tpu_custom_call.1} parent=5 // pred_check_branch
        %427 = sbr.rel (%p424) target = $region12
      $region11: #{tpu_custom_call.1} parent=5 // pred_region
        %s428 = ssub.s32 %s26, 1
        // Predicated region
        $region13: #{tpu_custom_call.1} parent=11 // pred_check
          %p429 = pneg %p73
        $region14: #{tpu_custom_call.1} parent=11 // pred_check_branch
          %431 = sbr.rel (%p429) target = $region16
        $region15: #{tpu_custom_call.1} parent=11 // pred_region
          _
        $region16: #{tpu_custom_call.1} parent=11 // pred_fallthru
          _
        // Predicated region
        $region17: #{tpu_custom_call.1} parent=11 // pred_check
          %p432 = pneg %p94
        $region18: #{tpu_custom_call.1} parent=11 // pred_check_branch
          %434 = sbr.rel (%p432) target = $region20
        $region19: #{tpu_custom_call.1} parent=11 // pred_region
          _
        $region20: #{tpu_custom_call.1} parent=11 // pred_fallthru
          _
        // Predicated region
        $region21: #{tpu_custom_call.1} parent=11 // pred_check
          %p435 = pneg %p115
        $region22: #{tpu_custom_call.1} parent=11 // pred_check_branch
          %437 = sbr.rel (%p435) target = $region24
        $region23: #{tpu_custom_call.1} parent=11 // pred_region
          _
        $region24: #{tpu_custom_call.1} parent=11 // pred_fallthru
          _
        // Predicated region
        $region25: #{tpu_custom_call.1} parent=11 // pred_check
          %p438 = pneg %p136
        $region26: #{tpu_custom_call.1} parent=11 // pred_check_branch
          %440 = sbr.rel (%p438) target = $region28
        $region27: #{tpu_custom_call.1} parent=11 // pred_region
          _
        $region28: #{tpu_custom_call.1} parent=11 // pred_fallthru
          _
        // Predicated region
        $region29: #{tpu_custom_call.1} parent=11 // pred_check
          %p441 = pneg %p157
        $region30: #{tpu_custom_call.1} parent=11 // pred_check_branch
          %443 = sbr.rel (%p441) target = $region32
        $region31: #{tpu_custom_call.1} parent=11 // pred_region
          _
        $region32: #{tpu_custom_call.1} parent=11 // pred_fallthru
          _
        // Predicated region
        $region33: #{tpu_custom_call.1} parent=11 // pred_check
          %p444 = pneg %p178
        $region34: #{tpu_custom_call.1} parent=11 // pred_check_branch
          %446 = sbr.rel (%p444) target = $region36
        $region35: #{tpu_custom_call.1} parent=11 // pred_region
          _
        $region36: #{tpu_custom_call.1} parent=11 // pred_fallthru
          _
        // Predicated region
        $region37: #{tpu_custom_call.1} parent=11 // pred_check
          %p447 = pneg %p199
        $region38: #{tpu_custom_call.1} parent=11 // pred_check_branch
          %449 = sbr.rel (%p447) target = $region40
        $region39: #{tpu_custom_call.1} parent=11 // pred_region
          _
        $region40: #{tpu_custom_call.1} parent=11 // pred_fallthru
          _
        // Predicated region
        $region41: #{tpu_custom_call.1} parent=11 // pred_check
          %p450 = pneg %p220
        $region42: #{tpu_custom_call.1} parent=11 // pred_check_branch
          %452 = sbr.rel (%p450) target = $region44
        $region43: #{tpu_custom_call.1} parent=11 // pred_region
          _
        $region44: #{tpu_custom_call.1} parent=11 // pred_fallthru
          _
        // Predicated region
        $region45: #{tpu_custom_call.1} parent=11 // pred_check
          %p453 = pneg %p241
        $region46: #{tpu_custom_call.1} parent=11 // pred_check_branch
          %455 = sbr.rel (%p453) target = $region48
        $region47: #{tpu_custom_call.1} parent=11 // pred_region
          _
        $region48: #{tpu_custom_call.1} parent=11 // pred_fallthru
          _
        // Predicated region
        $region49: #{tpu_custom_call.1} parent=11 // pred_check
          %p456 = pneg %p262
        $region50: #{tpu_custom_call.1} parent=11 // pred_check_branch
          %458 = sbr.rel (%p456) target = $region52
        $region51: #{tpu_custom_call.1} parent=11 // pred_region
          _
        $region52: #{tpu_custom_call.1} parent=11 // pred_fallthru
          _
        // Predicated region
        $region53: #{tpu_custom_call.1} parent=11 // pred_check
          %p459 = pneg %p283
        $region54: #{tpu_custom_call.1} parent=11 // pred_check_branch
          %461 = sbr.rel (%p459) target = $region56
        $region55: #{tpu_custom_call.1} parent=11 // pred_region
          _
        $region56: #{tpu_custom_call.1} parent=11 // pred_fallthru
          _
        // Predicated region
        $region57: #{tpu_custom_call.1} parent=11 // pred_check
          %p462 = pneg %p304
        $region58: #{tpu_custom_call.1} parent=11 // pred_check_branch
          %464 = sbr.rel (%p462) target = $region60
        $region59: #{tpu_custom_call.1} parent=11 // pred_region
          _
        $region60: #{tpu_custom_call.1} parent=11 // pred_fallthru
          _
        // Predicated region
        $region61: #{tpu_custom_call.1} parent=11 // pred_check
          %p465 = pneg %p325
        $region62: #{tpu_custom_call.1} parent=11 // pred_check_branch
          %467 = sbr.rel (%p465) target = $region64
        $region63: #{tpu_custom_call.1} parent=11 // pred_region
          _
        $region64: #{tpu_custom_call.1} parent=11 // pred_fallthru
          _
        // Predicated region
        $region65: #{tpu_custom_call.1} parent=11 // pred_check
          %p468 = pneg %p346
        $region66: #{tpu_custom_call.1} parent=11 // pred_check_branch
          %470 = sbr.rel (%p468) target = $region68
        $region67: #{tpu_custom_call.1} parent=11 // pred_region
          _
        $region68: #{tpu_custom_call.1} parent=11 // pred_fallthru
          _
        // Predicated region
        $region69: #{tpu_custom_call.1} parent=11 // pred_check
          %p471 = pneg %p367
        $region70: #{tpu_custom_call.1} parent=11 // pred_check_branch
          %473 = sbr.rel (%p471) target = $region72
        $region71: #{tpu_custom_call.1} parent=11 // pred_region
          _
        $region72: #{tpu_custom_call.1} parent=11 // pred_fallthru
          _
        // Predicated region
        $region73: #{tpu_custom_call.1} parent=11 // pred_check
          %p474 = pneg %p388
        $region74: #{tpu_custom_call.1} parent=11 // pred_check_branch
          %476 = sbr.rel (%p474) target = $region76
        $region75: #{tpu_custom_call.1} parent=11 // pred_region
          _
        $region76: #{tpu_custom_call.1} parent=11 // pred_fallthru
          _
      $region12: #{tpu_custom_call.1} parent=5 // pred_fallthru
        _
      %p477 = scmp.lt.s32.totalorder %s26, 2
      // Predicated region
      $region77: #{tpu_custom_call.1} parent=5 // pred_check
        %p478 = pneg %p477
      $region78: #{tpu_custom_call.1} parent=5 // pred_check_branch
        %480 = sbr.rel (%p478) target = $region80
      $region79: #{tpu_custom_call.1} parent=5 // pred_region
        // Predicated region
        $region81: #{tpu_custom_call.1} parent=79 // pred_check
          %p481 = pneg %p46
        $region82: #{tpu_custom_call.1} parent=79 // pred_check_branch
          %483 = sbr.rel (%p481) target = $region84
        $region83: #{tpu_custom_call.1} parent=79 // pred_region
          %p484 = scmp.lt.s32.totalorder %s26, 1
          %s485 = scalar_select %p484, %s26, 1
          %s486 = smul.addr %s485, 8
          %s487 = scalar_lea.vmem %s0, %s486
        $region84: #{tpu_custom_call.1} parent=79 // pred_fallthru
          _
      $region80: #{tpu_custom_call.1} parent=5 // pred_fallthru
        _
      %p488 = scmp.le.s32.totalorder 1, %s26
      %p489 = scmp.lt.s32.totalorder %s26, 3
      %p490 = pnand %p488, %p489
      %p491 = pneg %p490
      // Predicated region
      $region85: #{tpu_custom_call.1} parent=5 // pred_check
        _
      $region86: #{tpu_custom_call.1} parent=5 // pred_check_branch
        %493 = sbr.rel (%p490) target = $region88
      $region87: #{tpu_custom_call.1} parent=5 // pred_region
        %s494 = ssub.s32 %s26, 1
        %p495 = scmp.lt.s32.totalorder %s31, 1
        %s496 = scalar_select %p495, %s31, 1
        %s497 = smul.addr %s496, 8
        %s498 = scalar_lea.vmem %s0, %s497
        %p499 = pneg %p52
        %p500 = pneg %p49
        %p501 = pneg %p73
        %p502 = pneg %p70
        %p503 = pneg %p94
        %p504 = pneg %p91
        %p505 = pneg %p115
        %p506 = pneg %p112
        %p507 = pneg %p136
        %p508 = pneg %p133
        %p509 = pneg %p157
        %p510 = pneg %p154
        %p511 = pneg %p178
        %p512 = pneg %p175
        %p513 = pneg %p199
        %p514 = pneg %p196
        %p515 = pneg %p220
        %p516 = pneg %p217
        %p517 = pneg %p241
        %p518 = pneg %p238
        %p519 = pneg %p262
        %p520 = pneg %p259
        %p521 = pneg %p283
        %p522 = pneg %p280
        %p523 = pneg %p304
        %p524 = pneg %p301
        %p525 = pneg %p325
        %p526 = pneg %p322
        %p527 = pneg %p346
        %p528 = pneg %p343
        %p529 = pneg %p367
        %p530 = pneg %p364
        %p531 = pneg %p388
        %p532 = pneg %p385
        %p533 = pneg %p414
        %p534 = pneg %p411
        %s535 = sand.u32 %s401, 1
        %s536 = scalar_lea.sflag [#allocation3], %s535
        %s537 = sand.u32 %s401, 1
        %s538 = smul.addr %s537, 8
        %s539 = scalar_lea.vmem [#allocation2], %s538
        %p540 = scmp.lt.s32.totalorder %s31, 1
        %s541 = scalar_select %p540, %s31, 1
        %s542 = smul.addr %s541, 8
        %s543 = scalar_lea.vmem %s0, %s542
        %v544 = vld [vmem:[%s543] sm:$0xff]
        %v545 = vld [vmem:[%s1] sm:$0x1]
        %v546 = vld [vmem:[%s2] sm:$0x1]
        %vm547 = vcmask 261120
        %v548 = vsel %vm547, %v544, 0.0
        %549 = vadd.xlane.f32.xlu0 %v548
        %v550 = vpop.xlane.xlu0 %549
        %v551 = vrcp.pop 32.0
        %v552 = vmul.f32 %v550, %v551
        %v553 = vsub.f32 %v544, %v552
        %v554 = vmul.f32 %v553, %v553
        %v555 = vsel %vm547, %v554, 0.0
        %556 = vadd.xlane.f32.xlu0 %v555
        %v557 = vpop.xlane.xlu0 %556
        %v558 = vmul.f32 %v557, %v551
        %v559 = vadd.f32 %v558, 1e-05
        %v560 = vrsqrt.pop %v559
        %v561 = vmul.f32 %v553, %v560
        %v563 = vlaneseq
        %v564 = vshrl.u32 %v563, 7
        %v565 = vsub.s32 0, %v564
        %v566 = vrot.slane %v545, %v565
        %v568 = vmul.f32 %v561, %v566
        %v570 = vlaneseq
        %v571 = vshrl.u32 %v570, 7
        %v572 = vsub.s32 0, %v571
        %v573 = vrot.slane %v546, %v572
        %v575 = vadd.f32 %v568, %v573
        %v576 = vld [vmem:[%s3] sm:$0xff]
        %v577 = vld [vmem:[%s3 + $0x8] sm:$0xff]
        %v578 = vld [vmem:[%s3 + $0x10] sm:$0xff]
        %v579 = vld [vmem:[%s3 + $0x18] sm:$0xff]
        %v580 = vld [vmem:[%s3 + $0x20] sm:$0xff]
        %v581 = vld [vmem:[%s3 + $0x28] sm:$0xff]
        %v582 = vld [vmem:[%s3 + $0x30] sm:$0xff]
        %v583 = vld [vmem:[%s3 + $0x38] sm:$0xff]
        %v584 = vld [vmem:[%s3 + $0x40] sm:$0xff]
        %v585 = vld [vmem:[%s3 + $0x48] sm:$0xff]
        %v586 = vld [vmem:[%s3 + $0x50] sm:$0xff]
        %v587 = vld [vmem:[%s3 + $0x58] sm:$0xff]
        %v588 = vld [vmem:[%s3 + $0x60] sm:$0xff]
        %v589 = vld [vmem:[%s3 + $0x68] sm:$0xff]
        %v590 = vld [vmem:[%s3 + $0x70] sm:$0xff]
        %v591 = vld [vmem:[%s3 + $0x78] sm:$0xff]
        %v592 = vld [vmem:[%s4] sm:$0x1]
        %v593 = vld [vmem:[%s4 + $0x1] sm:$0x1]
        %v594 = vld [vmem:[%s4 + $0x2] sm:$0x1]
        %v595 = vld [vmem:[%s4 + $0x3] sm:$0x1]
        %v600 = vlaneseq
        %v601 = vshrl.u32 %v600, 7
        %v602 = vsub.s32 0, %v601
        %v603 = vrot.slane %v592, %v602
        %v604 = vlaneseq
        %v605 = vshrl.u32 %v604, 7
        %v606 = vsub.s32 0, %v605
        %v607 = vrot.slane %v593, %v606
        %v608 = vlaneseq
        %v609 = vshrl.u32 %v608, 7
        %v610 = vsub.s32 0, %v609
        %v611 = vrot.slane %v594, %v610
        %v612 = vlaneseq
        %v613 = vshrl.u32 %v612, 7
        %v614 = vsub.s32 0, %v613
        %v615 = vrot.slane %v595, %v614
        %v621 = vsel %vm547, %v575, 0
        %623 = vmatprep.subr.mxu0 0.0
        %624 = vmatpush1.msra.mxu0 %v576
        %625 = vmatprep.subr.mxu0 0.0
        %626 = vmatpush1.msra.mxu0 %v577
        %627 = vmatprep.subr.mxu0 0.0
        %628 = vmatpush1.msra.mxu0 %v578
        %629 = vmatprep.subr.mxu0 0.0
        %630 = vmatpush1.msra.mxu0 %v579
        %631 = vmatprep.subr.mxu0 0.0
        %632 = vmatpush1.msra.mxu0 0.0
        %633 = vmatprep.subr.mxu0 0.0
        %634 = vmatpush1.msra.mxu0 0.0
        %635 = vmatprep.subr.mxu0 0.0
        %636 = vmatpush1.msra.mxu0 0.0
        %637 = vmatprep.subr.mxu0 0.0
        %638 = vmatpush1.msra.mxu0 0.0
        %639 = vmatprep.subr.mxu0 0.0
        %640 = vmatpush1.msra.mxu0 0.0
        %641 = vmatprep.subr.mxu0 0.0
        %642 = vmatpush1.msra.mxu0 0.0
        %643 = vmatprep.subr.mxu0 0.0
        %644 = vmatpush1.msra.mxu0 0.0
        %645 = vmatprep.subr.mxu0 0.0
        %646 = vmatpush1.msra.mxu0 0.0
        %647 = vmatprep.subr.mxu0 0.0
        %648 = vmatpush1.msra.mxu0 0.0
        %649 = vmatprep.subr.mxu0 0.0
        %650 = vmatpush1.msra.mxu0 0.0
        %651 = vmatprep.subr.mxu0 0.0
        %652 = vmatpush1.msra.mxu0 0.0
        %653 = vmatprep.subr.mxu0 0.0
        %654 = vmatpush1.msra.mxu0 0.0
        %655 = vmatprep.subr.mxu0 0.0
        %656 = vmatpush1.msra.mxu0 0.0
        %657 = vmatprep.subr.mxu0 0.0
        %658 = vmatpush1.msra.mxu0 0.0
        %659 = vmatprep.subr.mxu0 0.0
        %660 = vmatpush1.msra.mxu0 0.0
        %661 = vmatprep.subr.mxu0 0.0
        %662 = vmatpush1.msra.mxu0 0.0
        %663 = vmatprep.subr.mxu0 0.0
        %664 = vmatpush1.msra.mxu0 0.0
        %665 = vmatprep.subr.mxu0 0.0
        %666 = vmatpush1.msra.mxu0 0.0
        %667 = vmatprep.subr.mxu0 0.0
        %668 = vmatpush1.msra.mxu0 0.0
        %669 = vmatprep.subr.mxu0 0.0
        %670 = vmatpush1.msra.mxu0 0.0
        %671 = vmatprep.subr.mxu0 0.0
        %672 = vmatpush1.msra.mxu0 0.0
        %673 = vmatprep.subr.mxu0 0.0
        %674 = vmatpush1.msra.mxu0 0.0
        %675 = vmatprep.subr.mxu0 0.0
        %676 = vmatpush1.msra.mxu0 0.0
        %677 = vmatprep.subr.mxu0 0.0
        %678 = vmatpush1.msra.mxu0 0.0
        %679 = vmatprep.subr.mxu0 0.0
        %680 = vmatpush1.msra.mxu0 0.0
        %681 = vmatprep.subr.mxu0 0.0
        %682 = vmatpush1.msra.mxu0 0.0
        %683 = vmatprep.subr.mxu0 0.0
        %684 = vmatpush1.msra.mxu0 0.0
        %685 = vmatprep.subr.mxu0 0.0
        %686 = vmatpush1.msra.mxu0 0.0
        %687 = vmatprep.mubr.f32.mxu0 0.0
        %688 = vmatmul.mubr.f32.gmra.mrb[0].mxu0 %v621
        %v689 = vpop.f32.mrb[0].mxu0
        %v690 = vadd.f32 %v603, %v689
        %v691 = vpop.f32.mrb[0].mxu0
        %692 = vdwg.mxu0
        %693 = vmatprep.subr.mxu0 0.0
        %694 = vmatpush1.msra.mxu0 %v580
        %695 = vmatprep.subr.mxu0 0.0
        %696 = vmatpush1.msra.mxu0 %v581
        %697 = vmatprep.subr.mxu0 0.0
        %698 = vmatpush1.msra.mxu0 %v582
        %699 = vmatprep.subr.mxu0 0.0
        %700 = vmatpush1.msra.mxu0 %v583
        %701 = vmatprep.subr.mxu0 0.0
        %702 = vmatpush1.msra.mxu0 0.0
        %703 = vmatprep.subr.mxu0 0.0
        %704 = vmatpush1.msra.mxu0 0.0
        %705 = vmatprep.subr.mxu0 0.0
        %706 = vmatpush1.msra.mxu0 0.0
        %707 = vmatprep.subr.mxu0 0.0
        %708 = vmatpush1.msra.mxu0 0.0
        %709 = vmatprep.subr.mxu0 0.0
        %710 = vmatpush1.msra.mxu0 0.0
        %711 = vmatprep.subr.mxu0 0.0
        %712 = vmatpush1.msra.mxu0 0.0
        %713 = vmatprep.subr.mxu0 0.0
        %714 = vmatpush1.msra.mxu0 0.0
        %715 = vmatprep.subr.mxu0 0.0
        %716 = vmatpush1.msra.mxu0 0.0
        %717 = vmatprep.subr.mxu0 0.0
        %718 = vmatpush1.msra.mxu0 0.0
        %719 = vmatprep.subr.mxu0 0.0
        %720 = vmatpush1.msra.mxu0 0.0
        %721 = vmatprep.subr.mxu0 0.0
        %722 = vmatpush1.msra.mxu0 0.0
        %723 = vmatprep.subr.mxu0 0.0
        %724 = vmatpush1.msra.mxu0 0.0
        %725 = vmatprep.subr.mxu0 0.0
        %726 = vmatpush1.msra.mxu0 0.0
        %727 = vmatprep.subr.mxu0 0.0
        %728 = vmatpush1.msra.mxu0 0.0
        %729 = vmatprep.subr.mxu0 0.0
        %730 = vmatpush1.msra.mxu0 0.0
        %731 = vmatprep.subr.mxu0 0.0
        %732 = vmatpush1.msra.mxu0 0.0
        %733 = vmatprep.subr.mxu0 0.0
        %734 = vmatpush1.msra.mxu0 0.0
        %735 = vmatprep.subr.mxu0 0.0
        %736 = vmatpush1.msra.mxu0 0.0
        %737 = vmatprep.subr.mxu0 0.0
        %738 = vmatpush1.msra.mxu0 0.0
        %739 = vmatprep.subr.mxu0 0.0
        %740 = vmatpush1.msra.mxu0 0.0
        %741 = vmatprep.subr.mxu0 0.0
        %742 = vmatpush1.msra.mxu0 0.0
        %743 = vmatprep.subr.mxu0 0.0
        %744 = vmatpush1.msra.mxu0 0.0
        %745 = vmatprep.subr.mxu0 0.0
        %746 = vmatpush1.msra.mxu0 0.0
        %747 = vmatprep.subr.mxu0 0.0
        %748 = vmatpush1.msra.mxu0 0.0
        %749 = vmatprep.subr.mxu0 0.0
        %750 = vmatpush1.msra.mxu0 0.0
        %751 = vmatprep.subr.mxu0 0.0
        %752 = vmatpush1.msra.mxu0 0.0
        %753 = vmatprep.subr.mxu0 0.0
        %754 = vmatpush1.msra.mxu0 0.0
        %755 = vmatprep.subr.mxu0 0.0
        %756 = vmatpush1.msra.mxu0 0.0
        %757 = vmatprep.mubr.f32.mxu0 0.0
        %758 = vmatmul.mubr.f32.gmra.mrb[0].mxu0 %v621
        %v759 = vpop.f32.mrb[0].mxu0
        %v760 = vadd.f32 %v607, %v759
        %v761 = vpop.f32.mrb[0].mxu0
        %762 = vdwg.mxu0
        %763 = vmatprep.subr.mxu0 0.0
        %764 = vmatpush1.msra.mxu0 %v584
        %765 = vmatprep.subr.mxu0 0.0
        %766 = vmatpush1.msra.mxu0 %v585
        %767 = vmatprep.subr.mxu0 0.0
        %768 = vmatpush1.msra.mxu0 %v586
        %769 = vmatprep.subr.mxu0 0.0
        %770 = vmatpush1.msra.mxu0 %v587
        %771 = vmatprep.subr.mxu0 0.0
        %772 = vmatpush1.msra.mxu0 0.0
        %773 = vmatprep.subr.mxu0 0.0
        %774 = vmatpush1.msra.mxu0 0.0
        %775 = vmatprep.subr.mxu0 0.0
        %776 = vmatpush1.msra.mxu0 0.0
        %777 = vmatprep.subr.mxu0 0.0
        %778 = vmatpush1.msra.mxu0 0.0
        %779 = vmatprep.subr.mxu0 0.0
        %780 = vmatpush1.msra.mxu0 0.0
        %781 = vmatprep.subr.mxu0 0.0
        %782 = vmatpush1.msra.mxu0 0.0
        %783 = vmatprep.subr.mxu0 0.0
        %784 = vmatpush1.msra.mxu0 0.0
        %785 = vmatprep.subr.mxu0 0.0
        %786 = vmatpush1.msra.mxu0 0.0
        %787 = vmatprep.subr.mxu0 0.0
        %788 = vmatpush1.msra.mxu0 0.0
        %789 = vmatprep.subr.mxu0 0.0
        %790 = vmatpush1.msra.mxu0 0.0
        %791 = vmatprep.subr.mxu0 0.0
        %792 = vmatpush1.msra.mxu0 0.0
        %793 = vmatprep.subr.mxu0 0.0
        %794 = vmatpush1.msra.mxu0 0.0
        %795 = vmatprep.subr.mxu0 0.0
        %796 = vmatpush1.msra.mxu0 0.0
        %797 = vmatprep.subr.mxu0 0.0
        %798 = vmatpush1.msra.mxu0 0.0
        %799 = vmatprep.subr.mxu0 0.0
        %800 = vmatpush1.msra.mxu0 0.0
        %801 = vmatprep.subr.mxu0 0.0
        %802 = vmatpush1.msra.mxu0 0.0
        %803 = vmatprep.subr.mxu0 0.0
        %804 = vmatpush1.msra.mxu0 0.0
        %805 = vmatprep.subr.mxu0 0.0
        %806 = vmatpush1.msra.mxu0 0.0
        %807 = vmatprep.subr.mxu0 0.0
        %808 = vmatpush1.msra.mxu0 0.0
        %809 = vmatprep.subr.mxu0 0.0
        %810 = vmatpush1.msra.mxu0 0.0
        %811 = vmatprep.subr.mxu0 0.0
        %812 = vmatpush1.msra.mxu0 0.0
        %813 = vmatprep.subr.mxu0 0.0
        %814 = vmatpush1.msra.mxu0 0.0
        %815 = vmatprep.subr.mxu0 0.0
        %816 = vmatpush1.msra.mxu0 0.0
        %817 = vmatprep.subr.mxu0 0.0
        %818 = vmatpush1.msra.mxu0 0.0
        %819 = vmatprep.subr.mxu0 0.0
        %820 = vmatpush1.msra.mxu0 0.0
        %821 = vmatprep.subr.mxu0 0.0
        %822 = vmatpush1.msra.mxu0 0.0
        %823 = vmatprep.subr.mxu0 0.0
        %824 = vmatpush1.msra.mxu0 0.0
        %825 = vmatprep.subr.mxu0 0.0
        %826 = vmatpush1.msra.mxu0 0.0
        %827 = vmatprep.mubr.f32.mxu0 0.0
        %828 = vmatmul.mubr.f32.gmra.mrb[0].mxu0 %v621
        %v829 = vpop.f32.mrb[0].mxu0
        %v830 = vadd.f32 %v611, %v829
        %v831 = vpop.f32.mrb[0].mxu0
        %832 = vdwg.mxu0
        %833 = vmatprep.subr.mxu0 0.0
        %834 = vmatpush1.msra.mxu0 %v588
        %835 = vmatprep.subr.mxu0 0.0
        %836 = vmatpush1.msra.mxu0 %v589
        %837 = vmatprep.subr.mxu0 0.0
        %838 = vmatpush1.msra.mxu0 %v590
        %839 = vmatprep.subr.mxu0 0.0
        %840 = vmatpush1.msra.mxu0 %v591
        %841 = vmatprep.subr.mxu0 0.0
        %842 = vmatpush1.msra.mxu0 0.0
        %843 = vmatprep.subr.mxu0 0.0
        %844 = vmatpush1.msra.mxu0 0.0
        %845 = vmatprep.subr.mxu0 0.0
        %846 = vmatpush1.msra.mxu0 0.0
        %847 = vmatprep.subr.mxu0 0.0
        %848 = vmatpush1.msra.mxu0 0.0
        %849 = vmatprep.subr.mxu0 0.0
        %850 = vmatpush1.msra.mxu0 0.0
        %851 = vmatprep.subr.mxu0 0.0
        %852 = vmatpush1.msra.mxu0 0.0
        %853 = vmatprep.subr.mxu0 0.0
        %854 = vmatpush1.msra.mxu0 0.0
        %855 = vmatprep.subr.mxu0 0.0
        %856 = vmatpush1.msra.mxu0 0.0
        %857 = vmatprep.subr.mxu0 0.0
        %858 = vmatpush1.msra.mxu0 0.0
        %859 = vmatprep.subr.mxu0 0.0
        %860 = vmatpush1.msra.mxu0 0.0
        %861 = vmatprep.subr.mxu0 0.0
        %862 = vmatpush1.msra.mxu0 0.0
        %863 = vmatprep.subr.mxu0 0.0
        %864 = vmatpush1.msra.mxu0 0.0
        %865 = vmatprep.subr.mxu0 0.0
        %866 = vmatpush1.msra.mxu0 0.0
        %867 = vmatprep.subr.mxu0 0.0
        %868 = vmatpush1.msra.mxu0 0.0
        %869 = vmatprep.subr.mxu0 0.0
        %870 = vmatpush1.msra.mxu0 0.0
        %871 = vmatprep.subr.mxu0 0.0
        %872 = vmatpush1.msra.mxu0 0.0
        %873 = vmatprep.subr.mxu0 0.0
        %874 = vmatpush1.msra.mxu0 0.0
        %875 = vmatprep.subr.mxu0 0.0
        %876 = vmatpush1.msra.mxu0 0.0
        %877 = vmatprep.subr.mxu0 0.0
        %878 = vmatpush1.msra.mxu0 0.0
        %879 = vmatprep.subr.mxu0 0.0
        %880 = vmatpush1.msra.mxu0 0.0
        %881 = vmatprep.subr.mxu0 0.0
        %882 = vmatpush1.msra.mxu0 0.0
        %883 = vmatprep.subr.mxu0 0.0
        %884 = vmatpush1.msra.mxu0 0.0
        %885 = vmatprep.subr.mxu0 0.0
        %886 = vmatpush1.msra.mxu0 0.0
        %887 = vmatprep.subr.mxu0 0.0
        %888 = vmatpush1.msra.mxu0 0.0
        %889 = vmatprep.subr.mxu0 0.0
        %890 = vmatpush1.msra.mxu0 0.0
        %891 = vmatprep.subr.mxu0 0.0
        %892 = vmatpush1.msra.mxu0 0.0
        %893 = vmatprep.subr.mxu0 0.0
        %894 = vmatpush1.msra.mxu0 0.0
        %895 = vmatprep.subr.mxu0 0.0
        %896 = vmatpush1.msra.mxu0 0.0
        %897 = vmatprep.mubr.f32.mxu0 0.0
        %898 = vmatmul.mubr.f32.gmra.mrb[0].mxu0 %v621
        %v899 = vpop.f32.mrb[0].mxu0
        %v900 = vadd.f32 %v615, %v899
        %v901 = vpop.f32.mrb[0].mxu0
        %902 = vdwg.mxu0
        %v903 = vld [vmem:[%s5] sm:$0xff]
        %v904 = vld [vmem:[%s5 + $0x8] sm:$0xff]
        %v905 = vld [vmem:[%s5 + $0x10] sm:$0xff]
        %v906 = vld [vmem:[%s5 + $0x18] sm:$0xff]
        %v907 = vld [vmem:[%s5 + $0x20] sm:$0xff]
        %v908 = vld [vmem:[%s5 + $0x28] sm:$0xff]
        %v909 = vld [vmem:[%s5 + $0x30] sm:$0xff]
        %v910 = vld [vmem:[%s5 + $0x38] sm:$0xff]
        %v911 = vld [vmem:[%s5 + $0x40] sm:$0xff]
        %v912 = vld [vmem:[%s5 + $0x48] sm:$0xff]
        %v913 = vld [vmem:[%s5 + $0x50] sm:$0xff]
        %v914 = vld [vmem:[%s5 + $0x58] sm:$0xff]
        %v915 = vld [vmem:[%s5 + $0x60] sm:$0xff]
        %v916 = vld [vmem:[%s5 + $0x68] sm:$0xff]
        %v917 = vld [vmem:[%s5 + $0x70] sm:$0xff]
        %v918 = vld [vmem:[%s5 + $0x78] sm:$0xff]
        %v919 = vld [vmem:[%s6] sm:$0x1]
        %v920 = vld [vmem:[%s6 + $0x1] sm:$0x1]
        %v921 = vld [vmem:[%s6 + $0x2] sm:$0x1]
        %v922 = vld [vmem:[%s6 + $0x3] sm:$0x1]
        %v927 = vlaneseq
        %v928 = vshrl.u32 %v927, 7
        %v929 = vsub.s32 0, %v928
        %v930 = vrot.slane %v919, %v929
        %v931 = vlaneseq
        %v932 = vshrl.u32 %v931, 7
        %v933 = vsub.s32 0, %v932
        %v934 = vrot.slane %v920, %v933
        %v935 = vlaneseq
        %v936 = vshrl.u32 %v935, 7
        %v937 = vsub.s32 0, %v936
        %v938 = vrot.slane %v921, %v937
        %v939 = vlaneseq
        %v940 = vshrl.u32 %v939, 7
        %v941 = vsub.s32 0, %v940
        %v942 = vrot.slane %v922, %v941
        %947 = vmatprep.subr.mxu0 0.0
        %948 = vmatpush1.msra.mxu0 %v903
        %949 = vmatprep.subr.mxu0 0.0
        %950 = vmatpush1.msra.mxu0 %v904
        %951 = vmatprep.subr.mxu0 0.0
        %952 = vmatpush1.msra.mxu0 %v905
        %953 = vmatprep.subr.mxu0 0.0
        %954 = vmatpush1.msra.mxu0 %v906
        %955 = vmatprep.subr.mxu0 0.0
        %956 = vmatpush1.msra.mxu0 0.0
        %957 = vmatprep.subr.mxu0 0.0
        %958 = vmatpush1.msra.mxu0 0.0
        %959 = vmatprep.subr.mxu0 0.0
        %960 = vmatpush1.msra.mxu0 0.0
        %961 = vmatprep.subr.mxu0 0.0
        %962 = vmatpush1.msra.mxu0 0.0
        %963 = vmatprep.subr.mxu0 0.0
        %964 = vmatpush1.msra.mxu0 0.0
        %965 = vmatprep.subr.mxu0 0.0
        %966 = vmatpush1.msra.mxu0 0.0
        %967 = vmatprep.subr.mxu0 0.0
        %968 = vmatpush1.msra.mxu0 0.0
        %969 = vmatprep.subr.mxu0 0.0
        %970 = vmatpush1.msra.mxu0 0.0
        %971 = vmatprep.subr.mxu0 0.0
        %972 = vmatpush1.msra.mxu0 0.0
        %973 = vmatprep.subr.mxu0 0.0
        %974 = vmatpush1.msra.mxu0 0.0
        %975 = vmatprep.subr.mxu0 0.0
        %976 = vmatpush1.msra.mxu0 0.0
        %977 = vmatprep.subr.mxu0 0.0
        %978 = vmatpush1.msra.mxu0 0.0
        %979 = vmatprep.subr.mxu0 0.0
        %980 = vmatpush1.msra.mxu0 0.0
        %981 = vmatprep.subr.mxu0 0.0
        %982 = vmatpush1.msra.mxu0 0.0
        %983 = vmatprep.subr.mxu0 0.0
        %984 = vmatpush1.msra.mxu0 0.0
        %985 = vmatprep.subr.mxu0 0.0
        %986 = vmatpush1.msra.mxu0 0.0
        %987 = vmatprep.subr.mxu0 0.0
        %988 = vmatpush1.msra.mxu0 0.0
        %989 = vmatprep.subr.mxu0 0.0
        %990 = vmatpush1.msra.mxu0 0.0
        %991 = vmatprep.subr.mxu0 0.0
        %992 = vmatpush1.msra.mxu0 0.0
        %993 = vmatprep.subr.mxu0 0.0
        %994 = vmatpush1.msra.mxu0 0.0
        %995 = vmatprep.subr.mxu0 0.0
        %996 = vmatpush1.msra.mxu0 0.0
        %997 = vmatprep.subr.mxu0 0.0
        %998 = vmatpush1.msra.mxu0 0.0
        %999 = vmatprep.subr.mxu0 0.0
        %1000 = vmatpush1.msra.mxu0 0.0
        %1001 = vmatprep.subr.mxu0 0.0
        %1002 = vmatpush1.msra.mxu0 0.0
        %1003 = vmatprep.subr.mxu0 0.0
        %1004 = vmatpush1.msra.mxu0 0.0
        %1005 = vmatprep.subr.mxu0 0.0
        %1006 = vmatpush1.msra.mxu0 0.0
        %1007 = vmatprep.subr.mxu0 0.0
        %1008 = vmatpush1.msra.mxu0 0.0
        %1009 = vmatprep.subr.mxu0 0.0
        %1010 = vmatpush1.msra.mxu0 0.0
        %1011 = vmatprep.mubr.f32.mxu0 0.0
        %1012 = vmatmul.mubr.f32.gmra.mrb[0].mxu0 %v621
        %v1013 = vpop.f32.mrb[0].mxu0
        %v1014 = vadd.f32 %v930, %v1013
        %v1015 = vpop.f32.mrb[0].mxu0
        %1016 = vdwg.mxu0
        %1017 = vmatprep.subr.mxu0 0.0
        %1018 = vmatpush1.msra.mxu0 %v907
        %1019 = vmatprep.subr.mxu0 0.0
        %1020 = vmatpush1.msra.mxu0 %v908
        %1021 = vmatprep.subr.mxu0 0.0
        %1022 = vmatpush1.msra.mxu0 %v909
        %1023 = vmatprep.subr.mxu0 0.0
        %1024 = vmatpush1.msra.mxu0 %v910
        %1025 = vmatprep.subr.mxu0 0.0
        %1026 = vmatpush1.msra.mxu0 0.0
        %1027 = vmatprep.subr.mxu0 0.0
        %1028 = vmatpush1.msra.mxu0 0.0
        %1029 = vmatprep.subr.mxu0 0.0
        %1030 = vmatpush1.msra.mxu0 0.0
        %1031 = vmatprep.subr.mxu0 0.0
        %1032 = vmatpush1.msra.mxu0 0.0
        %1033 = vmatprep.subr.mxu0 0.0
        %1034 = vmatpush1.msra.mxu0 0.0
        %1035 = vmatprep.subr.mxu0 0.0
        %1036 = vmatpush1.msra.mxu0 0.0
        %1037 = vmatprep.subr.mxu0 0.0
        %1038 = vmatpush1.msra.mxu0 0.0
        %1039 = vmatprep.subr.mxu0 0.0
        %1040 = vmatpush1.msra.mxu0 0.0
        %1041 = vmatprep.subr.mxu0 0.0
        %1042 = vmatpush1.msra.mxu0 0.0
        %1043 = vmatprep.subr.mxu0 0.0
        %1044 = vmatpush1.msra.mxu0 0.0
        %1045 = vmatprep.subr.mxu0 0.0
        %1046 = vmatpush1.msra.mxu0 0.0
        %1047 = vmatprep.subr.mxu0 0.0
        %1048 = vmatpush1.msra.mxu0 0.0
        %1049 = vmatprep.subr.mxu0 0.0
        %1050 = vmatpush1.msra.mxu0 0.0
        %1051 = vmatprep.subr.mxu0 0.0
        %1052 = vmatpush1.msra.mxu0 0.0
        %1053 = vmatprep.subr.mxu0 0.0
        %1054 = vmatpush1.msra.mxu0 0.0
        %1055 = vmatprep.subr.mxu0 0.0
        %1056 = vmatpush1.msra.mxu0 0.0
        %1057 = vmatprep.subr.mxu0 0.0
        %1058 = vmatpush1.msra.mxu0 0.0
        %1059 = vmatprep.subr.mxu0 0.0
        %1060 = vmatpush1.msra.mxu0 0.0
        %1061 = vmatprep.subr.mxu0 0.0
        %1062 = vmatpush1.msra.mxu0 0.0
        %1063 = vmatprep.subr.mxu0 0.0
        %1064 = vmatpush1.msra.mxu0 0.0
        %1065 = vmatprep.subr.mxu0 0.0
        %1066 = vmatpush1.msra.mxu0 0.0
        %1067 = vmatprep.subr.mxu0 0.0
        %1068 = vmatpush1.msra.mxu0 0.0
        %1069 = vmatprep.subr.mxu0 0.0
        %1070 = vmatpush1.msra.mxu0 0.0
        %1071 = vmatprep.subr.mxu0 0.0
        %1072 = vmatpush1.msra.mxu0 0.0
        %1073 = vmatprep.subr.mxu0 0.0
        %1074 = vmatpush1.msra.mxu0 0.0
        %1075 = vmatprep.subr.mxu0 0.0
        %1076 = vmatpush1.msra.mxu0 0.0
        %1077 = vmatprep.subr.mxu0 0.0
        %1078 = vmatpush1.msra.mxu0 0.0
        %1079 = vmatprep.subr.mxu0 0.0
        %1080 = vmatpush1.msra.mxu0 0.0
        %1081 = vmatprep.mubr.f32.mxu0 0.0
        %1082 = vmatmul.mubr.f32.gmra.mrb[0].mxu0 %v621
        %v1083 = vpop.f32.mrb[0].mxu0
        %v1084 = vadd.f32 %v934, %v1083
        %v1085 = vpop.f32.mrb[0].mxu0
        %1086 = vdwg.mxu0
        %1087 = vmatprep.subr.mxu0 0.0
        %1088 = vmatpush1.msra.mxu0 %v911
        %1089 = vmatprep.subr.mxu0 0.0
        %1090 = vmatpush1.msra.mxu0 %v912
        %1091 = vmatprep.subr.mxu0 0.0
        %1092 = vmatpush1.msra.mxu0 %v913
        %1093 = vmatprep.subr.mxu0 0.0
        %1094 = vmatpush1.msra.mxu0 %v914
        %1095 = vmatprep.subr.mxu0 0.0
        %1096 = vmatpush1.msra.mxu0 0.0
        %1097 = vmatprep.subr.mxu0 0.0
        %1098 = vmatpush1.msra.mxu0 0.0
        %1099 = vmatprep.subr.mxu0 0.0
        %1100 = vmatpush1.msra.mxu0 0.0
        %1101 = vmatprep.subr.mxu0 0.0
        %1102 = vmatpush1.msra.mxu0 0.0
        %1103 = vmatprep.subr.mxu0 0.0
        %1104 = vmatpush1.msra.mxu0 0.0
        %1105 = vmatprep.subr.mxu0 0.0
        %1106 = vmatpush1.msra.mxu0 0.0
        %1107 = vmatprep.subr.mxu0 0.0
        %1108 = vmatpush1.msra.mxu0 0.0
        %1109 = vmatprep.subr.mxu0 0.0
        %1110 = vmatpush1.msra.mxu0 0.0
        %1111 = vmatprep.subr.mxu0 0.0
        %1112 = vmatpush1.msra.mxu0 0.0
        %1113 = vmatprep.subr.mxu0 0.0
        %1114 = vmatpush1.msra.mxu0 0.0
        %1115 = vmatprep.subr.mxu0 0.0
        %1116 = vmatpush1.msra.mxu0 0.0
        %1117 = vmatprep.subr.mxu0 0.0
        %1118 = vmatpush1.msra.mxu0 0.0
        %1119 = vmatprep.subr.mxu0 0.0
        %1120 = vmatpush1.msra.mxu0 0.0
        %1121 = vmatprep.subr.mxu0 0.0
        %1122 = vmatpush1.msra.mxu0 0.0
        %1123 = vmatprep.subr.mxu0 0.0
        %1124 = vmatpush1.msra.mxu0 0.0
        %1125 = vmatprep.subr.mxu0 0.0
        %1126 = vmatpush1.msra.mxu0 0.0
        %1127 = vmatprep.subr.mxu0 0.0
        %1128 = vmatpush1.msra.mxu0 0.0
        %1129 = vmatprep.subr.mxu0 0.0
        %1130 = vmatpush1.msra.mxu0 0.0
        %1131 = vmatprep.subr.mxu0 0.0
        %1132 = vmatpush1.msra.mxu0 0.0
        %1133 = vmatprep.subr.mxu0 0.0
        %1134 = vmatpush1.msra.mxu0 0.0
        %1135 = vmatprep.subr.mxu0 0.0
        %1136 = vmatpush1.msra.mxu0 0.0
        %1137 = vmatprep.subr.mxu0 0.0
        %1138 = vmatpush1.msra.mxu0 0.0
        %1139 = vmatprep.subr.mxu0 0.0
        %1140 = vmatpush1.msra.mxu0 0.0
        %1141 = vmatprep.subr.mxu0 0.0
        %1142 = vmatpush1.msra.mxu0 0.0
        %1143 = vmatprep.subr.mxu0 0.0
        %1144 = vmatpush1.msra.mxu0 0.0
        %1145 = vmatprep.subr.mxu0 0.0
        %1146 = vmatpush1.msra.mxu0 0.0
        %1147 = vmatprep.subr.mxu0 0.0
        %1148 = vmatpush1.msra.mxu0 0.0
        %1149 = vmatprep.subr.mxu0 0.0
        %1150 = vmatpush1.msra.mxu0 0.0
        %1151 = vmatprep.mubr.f32.mxu0 0.0
        %1152 = vmatmul.mubr.f32.gmra.mrb[0].mxu0 %v621
        %v1153 = vpop.f32.mrb[0].mxu0
        %v1154 = vadd.f32 %v938, %v1153
        %v1155 = vpop.f32.mrb[0].mxu0
        %1156 = vdwg.mxu0
        %1157 = vmatprep.subr.mxu0 0.0
        %1158 = vmatpush1.msra.mxu0 %v915
        %1159 = vmatprep.subr.mxu0 0.0
        %1160 = vmatpush1.msra.mxu0 %v916
        %1161 = vmatprep.subr.mxu0 0.0
        %1162 = vmatpush1.msra.mxu0 %v917
        %1163 = vmatprep.subr.mxu0 0.0
        %1164 = vmatpush1.msra.mxu0 %v918
        %1165 = vmatprep.subr.mxu0 0.0
        %1166 = vmatpush1.msra.mxu0 0.0
        %1167 = vmatprep.subr.mxu0 0.0
        %1168 = vmatpush1.msra.mxu0 0.0
        %1169 = vmatprep.subr.mxu0 0.0
        %1170 = vmatpush1.msra.mxu0 0.0
        %1171 = vmatprep.subr.mxu0 0.0
        %1172 = vmatpush1.msra.mxu0 0.0
        %1173 = vmatprep.subr.mxu0 0.0
        %1174 = vmatpush1.msra.mxu0 0.0
        %1175 = vmatprep.subr.mxu0 0.0
        %1176 = vmatpush1.msra.mxu0 0.0
        %1177 = vmatprep.subr.mxu0 0.0
        %1178 = vmatpush1.msra.mxu0 0.0
        %1179 = vmatprep.subr.mxu0 0.0
        %1180 = vmatpush1.msra.mxu0 0.0
        %1181 = vmatprep.subr.mxu0 0.0
        %1182 = vmatpush1.msra.mxu0 0.0
        %1183 = vmatprep.subr.mxu0 0.0
        %1184 = vmatpush1.msra.mxu0 0.0
        %1185 = vmatprep.subr.mxu0 0.0
        %1186 = vmatpush1.msra.mxu0 0.0
        %1187 = vmatprep.subr.mxu0 0.0
        %1188 = vmatpush1.msra.mxu0 0.0
        %1189 = vmatprep.subr.mxu0 0.0
        %1190 = vmatpush1.msra.mxu0 0.0
        %1191 = vmatprep.subr.mxu0 0.0
        %1192 = vmatpush1.msra.mxu0 0.0
        %1193 = vmatprep.subr.mxu0 0.0
        %1194 = vmatpush1.msra.mxu0 0.0
        %1195 = vmatprep.subr.mxu0 0.0
        %1196 = vmatpush1.msra.mxu0 0.0
        %1197 = vmatprep.subr.mxu0 0.0
        %1198 = vmatpush1.msra.mxu0 0.0
        %1199 = vmatprep.subr.mxu0 0.0
        %1200 = vmatpush1.msra.mxu0 0.0
        %1201 = vmatprep.subr.mxu0 0.0
        %1202 = vmatpush1.msra.mxu0 0.0
        %1203 = vmatprep.subr.mxu0 0.0
        %1204 = vmatpush1.msra.mxu0 0.0
        %1205 = vmatprep.subr.mxu0 0.0
        %1206 = vmatpush1.msra.mxu0 0.0
        %1207 = vmatprep.subr.mxu0 0.0
        %1208 = vmatpush1.msra.mxu0 0.0
        %1209 = vmatprep.subr.mxu0 0.0
        %1210 = vmatpush1.msra.mxu0 0.0
        %1211 = vmatprep.subr.mxu0 0.0
        %1212 = vmatpush1.msra.mxu0 0.0
        %1213 = vmatprep.subr.mxu0 0.0
        %1214 = vmatpush1.msra.mxu0 0.0
        %1215 = vmatprep.subr.mxu0 0.0
        %1216 = vmatpush1.msra.mxu0 0.0
        %1217 = vmatprep.subr.mxu0 0.0
        %1218 = vmatpush1.msra.mxu0 0.0
        %1219 = vmatprep.subr.mxu0 0.0
        %1220 = vmatpush1.msra.mxu0 0.0
        %1221 = vmatprep.mubr.f32.mxu0 0.0
        %1222 = vmatmul.mubr.f32.gmra.mrb[0].mxu0 %v621
        %v1223 = vpop.f32.mrb[0].mxu0
        %v1224 = vadd.f32 %v942, %v1223
        %v1225 = vpop.f32.mrb[0].mxu0
        %1226 = vdwg.mxu0
        %v1227 = vld [vmem:[%s7] sm:$0xff]
        %v1228 = vld [vmem:[%s7 + $0x8] sm:$0xff]
        %v1229 = vld [vmem:[%s7 + $0x10] sm:$0xff]
        %v1230 = vld [vmem:[%s7 + $0x18] sm:$0xff]
        %v1231 = vld [vmem:[%s7 + $0x20] sm:$0xff]
        %v1232 = vld [vmem:[%s7 + $0x28] sm:$0xff]
        %v1233 = vld [vmem:[%s7 + $0x30] sm:$0xff]
        %v1234 = vld [vmem:[%s7 + $0x38] sm:$0xff]
        %v1235 = vld [vmem:[%s7 + $0x40] sm:$0xff]
        %v1236 = vld [vmem:[%s7 + $0x48] sm:$0xff]
        %v1237 = vld [vmem:[%s7 + $0x50] sm:$0xff]
        %v1238 = vld [vmem:[%s7 + $0x58] sm:$0xff]
        %v1239 = vld [vmem:[%s7 + $0x60] sm:$0xff]
        %v1240 = vld [vmem:[%s7 + $0x68] sm:$0xff]
        %v1241 = vld [vmem:[%s7 + $0x70] sm:$0xff]
        %v1242 = vld [vmem:[%s7 + $0x78] sm:$0xff]
        %v1243 = vld [vmem:[%s8] sm:$0x1]
        %v1244 = vld [vmem:[%s8 + $0x1] sm:$0x1]
        %v1245 = vld [vmem:[%s8 + $0x2] sm:$0x1]
        %v1246 = vld [vmem:[%s8 + $0x3] sm:$0x1]
        %v1251 = vlaneseq
        %v1252 = vshrl.u32 %v1251, 7
        %v1253 = vsub.s32 0, %v1252
        %v1254 = vrot.slane %v1243, %v1253
        %v1255 = vlaneseq
        %v1256 = vshrl.u32 %v1255, 7
        %v1257 = vsub.s32 0, %v1256
        %v1258 = vrot.slane %v1244, %v1257
        %v1259 = vlaneseq
        %v1260 = vshrl.u32 %v1259, 7
        %v1261 = vsub.s32 0, %v1260
        %v1262 = vrot.slane %v1245, %v1261
        %v1263 = vlaneseq
        %v1264 = vshrl.u32 %v1263, 7
        %v1265 = vsub.s32 0, %v1264
        %v1266 = vrot.slane %v1246, %v1265
        %1271 = vmatprep.subr.mxu0 0.0
        %1272 = vmatpush1.msra.mxu0 %v1227
        %1273 = vmatprep.subr.mxu0 0.0
        %1274 = vmatpush1.msra.mxu0 %v1228
        %1275 = vmatprep.subr.mxu0 0.0
        %1276 = vmatpush1.msra.mxu0 %v1229
        %1277 = vmatprep.subr.mxu0 0.0
        %1278 = vmatpush1.msra.mxu0 %v1230
        %1279 = vmatprep.subr.mxu0 0.0
        %1280 = vmatpush1.msra.mxu0 0.0
        %1281 = vmatprep.subr.mxu0 0.0
        %1282 = vmatpush1.msra.mxu0 0.0
        %1283 = vmatprep.subr.mxu0 0.0
        %1284 = vmatpush1.msra.mxu0 0.0
        %1285 = vmatprep.subr.mxu0 0.0
        %1286 = vmatpush1.msra.mxu0 0.0
        %1287 = vmatprep.subr.mxu0 0.0
        %1288 = vmatpush1.msra.mxu0 0.0
        %1289 = vmatprep.subr.mxu0 0.0
        %1290 = vmatpush1.msra.mxu0 0.0
        %1291 = vmatprep.subr.mxu0 0.0
        %1292 = vmatpush1.msra.mxu0 0.0
        %1293 = vmatprep.subr.mxu0 0.0
        %1294 = vmatpush1.msra.mxu0 0.0
        %1295 = vmatprep.subr.mxu0 0.0
        %1296 = vmatpush1.msra.mxu0 0.0
        %1297 = vmatprep.subr.mxu0 0.0
        %1298 = vmatpush1.msra.mxu0 0.0
        %1299 = vmatprep.subr.mxu0 0.0
        %1300 = vmatpush1.msra.mxu0 0.0
        %1301 = vmatprep.subr.mxu0 0.0
        %1302 = vmatpush1.msra.mxu0 0.0
        %1303 = vmatprep.subr.mxu0 0.0
        %1304 = vmatpush1.msra.mxu0 0.0
        %1305 = vmatprep.subr.mxu0 0.0
        %1306 = vmatpush1.msra.mxu0 0.0
        %1307 = vmatprep.subr.mxu0 0.0
        %1308 = vmatpush1.msra.mxu0 0.0
        %1309 = vmatprep.subr.mxu0 0.0
        %1310 = vmatpush1.msra.mxu0 0.0
        %1311 = vmatprep.subr.mxu0 0.0
        %1312 = vmatpush1.msra.mxu0 0.0
        %1313 = vmatprep.subr.mxu0 0.0
        %1314 = vmatpush1.msra.mxu0 0.0
        %1315 = vmatprep.subr.mxu0 0.0
        %1316 = vmatpush1.msra.mxu0 0.0
        %1317 = vmatprep.subr.mxu0 0.0
        %1318 = vmatpush1.msra.mxu0 0.0
        %1319 = vmatprep.subr.mxu0 0.0
        %1320 = vmatpush1.msra.mxu0 0.0
        %1321 = vmatprep.subr.mxu0 0.0
        %1322 = vmatpush1.msra.mxu0 0.0
        %1323 = vmatprep.subr.mxu0 0.0
        %1324 = vmatpush1.msra.mxu0 0.0
        %1325 = vmatprep.subr.mxu0 0.0
        %1326 = vmatpush1.msra.mxu0 0.0
        %1327 = vmatprep.subr.mxu0 0.0
        %1328 = vmatpush1.msra.mxu0 0.0
        %1329 = vmatprep.subr.mxu0 0.0
        %1330 = vmatpush1.msra.mxu0 0.0
        %1331 = vmatprep.subr.mxu0 0.0
        %1332 = vmatpush1.msra.mxu0 0.0
        %1333 = vmatprep.subr.mxu0 0.0
        %1334 = vmatpush1.msra.mxu0 0.0
        %1335 = vmatprep.mubr.f32.mxu0 0.0
        %1336 = vmatmul.mubr.f32.gmra.mrb[0].mxu0 %v621
        %v1337 = vpop.f32.mrb[0].mxu0
        %v1338 = vadd.f32 %v1254, %v1337
        %v1339 = vpop.f32.mrb[0].mxu0
        %1340 = vdwg.mxu0
        %1341 = vmatprep.subr.mxu0 0.0
        %1342 = vmatpush1.msra.mxu0 %v1231
        %1343 = vmatprep.subr.mxu0 0.0
        %1344 = vmatpush1.msra.mxu0 %v1232
        %1345 = vmatprep.subr.mxu0 0.0
        %1346 = vmatpush1.msra.mxu0 %v1233
        %1347 = vmatprep.subr.mxu0 0.0
        %1348 = vmatpush1.msra.mxu0 %v1234
        %1349 = vmatprep.subr.mxu0 0.0
        %1350 = vmatpush1.msra.mxu0 0.0
        %1351 = vmatprep.subr.mxu0 0.0
        %1352 = vmatpush1.msra.mxu0 0.0
        %1353 = vmatprep.subr.mxu0 0.0
        %1354 = vmatpush1.msra.mxu0 0.0
        %1355 = vmatprep.subr.mxu0 0.0
        %1356 = vmatpush1.msra.mxu0 0.0
        %1357 = vmatprep.subr.mxu0 0.0
        %1358 = vmatpush1.msra.mxu0 0.0
        %1359 = vmatprep.subr.mxu0 0.0
        %1360 = vmatpush1.msra.mxu0 0.0
        %1361 = vmatprep.subr.mxu0 0.0
        %1362 = vmatpush1.msra.mxu0 0.0
        %1363 = vmatprep.subr.mxu0 0.0
        %1364 = vmatpush1.msra.mxu0 0.0
        %1365 = vmatprep.subr.mxu0 0.0
        %1366 = vmatpush1.msra.mxu0 0.0
        %1367 = vmatprep.subr.mxu0 0.0
        %1368 = vmatpush1.msra.mxu0 0.0
        %1369 = vmatprep.subr.mxu0 0.0
        %1370 = vmatpush1.msra.mxu0 0.0
        %1371 = vmatprep.subr.mxu0 0.0
        %1372 = vmatpush1.msra.mxu0 0.0
        %1373 = vmatprep.subr.mxu0 0.0
        %1374 = vmatpush1.msra.mxu0 0.0
        %1375 = vmatprep.subr.mxu0 0.0
        %1376 = vmatpush1.msra.mxu0 0.0
        %1377 = vmatprep.subr.mxu0 0.0
        %1378 = vmatpush1.msra.mxu0 0.0
        %1379 = vmatprep.subr.mxu0 0.0
        %1380 = vmatpush1.msra.mxu0 0.0
        %1381 = vmatprep.subr.mxu0 0.0
        %1382 = vmatpush1.msra.mxu0 0.0
        %1383 = vmatprep.subr.mxu0 0.0
        %1384 = vmatpush1.msra.mxu0 0.0
        %1385 = vmatprep.subr.mxu0 0.0
        %1386 = vmatpush1.msra.mxu0 0.0
        %1387 = vmatprep.subr.mxu0 0.0
        %1388 = vmatpush1.msra.mxu0 0.0
        %1389 = vmatprep.subr.mxu0 0.0
        %1390 = vmatpush1.msra.mxu0 0.0
        %1391 = vmatprep.subr.mxu0 0.0
        %1392 = vmatpush1.msra.mxu0 0.0
        %1393 = vmatprep.subr.mxu0 0.0
        %1394 = vmatpush1.msra.mxu0 0.0
        %1395 = vmatprep.subr.mxu0 0.0
        %1396 = vmatpush1.msra.mxu0 0.0
        %1397 = vmatprep.subr.mxu0 0.0
        %1398 = vmatpush1.msra.mxu0 0.0
        %1399 = vmatprep.subr.mxu0 0.0
        %1400 = vmatpush1.msra.mxu0 0.0
        %1401 = vmatprep.subr.mxu0 0.0
        %1402 = vmatpush1.msra.mxu0 0.0
        %1403 = vmatprep.subr.mxu0 0.0
        %1404 = vmatpush1.msra.mxu0 0.0
        %1405 = vmatprep.mubr.f32.mxu0 0.0
        %1406 = vmatmul.mubr.f32.gmra.mrb[0].mxu0 %v621
        %v1407 = vpop.f32.mrb[0].mxu0
        %v1408 = vadd.f32 %v1258, %v1407
        %v1409 = vpop.f32.mrb[0].mxu0
        %1410 = vdwg.mxu0
        %1411 = vmatprep.subr.mxu0 0.0
        %1412 = vmatpush1.msra.mxu0 %v1235
        %1413 = vmatprep.subr.mxu0 0.0
        %1414 = vmatpush1.msra.mxu0 %v1236
        %1415 = vmatprep.subr.mxu0 0.0
        %1416 = vmatpush1.msra.mxu0 %v1237
        %1417 = vmatprep.subr.mxu0 0.0
        %1418 = vmatpush1.msra.mxu0 %v1238
        %1419 = vmatprep.subr.mxu0 0.0
        %1420 = vmatpush1.msra.mxu0 0.0
        %1421 = vmatprep.subr.mxu0 0.0
        %1422 = vmatpush1.msra.mxu0 0.0
        %1423 = vmatprep.subr.mxu0 0.0
        %1424 = vmatpush1.msra.mxu0 0.0
        %1425 = vmatprep.subr.mxu0 0.0
        %1426 = vmatpush1.msra.mxu0 0.0
        %1427 = vmatprep.subr.mxu0 0.0
        %1428 = vmatpush1.msra.mxu0 0.0
        %1429 = vmatprep.subr.mxu0 0.0
        %1430 = vmatpush1.msra.mxu0 0.0
        %1431 = vmatprep.subr.mxu0 0.0
        %1432 = vmatpush1.msra.mxu0 0.0
        %1433 = vmatprep.subr.mxu0 0.0
        %1434 = vmatpush1.msra.mxu0 0.0
        %1435 = vmatprep.subr.mxu0 0.0
        %1436 = vmatpush1.msra.mxu0 0.0
        %1437 = vmatprep.subr.mxu0 0.0
        %1438 = vmatpush1.msra.mxu0 0.0
        %1439 = vmatprep.subr.mxu0 0.0
        %1440 = vmatpush1.msra.mxu0 0.0
        %1441 = vmatprep.subr.mxu0 0.0
        %1442 = vmatpush1.msra.mxu0 0.0
        %1443 = vmatprep.subr.mxu0 0.0
        %1444 = vmatpush1.msra.mxu0 0.0
        %1445 = vmatprep.subr.mxu0 0.0
        %1446 = vmatpush1.msra.mxu0 0.0
        %1447 = vmatprep.subr.mxu0 0.0
        %1448 = vmatpush1.msra.mxu0 0.0
        %1449 = vmatprep.subr.mxu0 0.0
        %1450 = vmatpush1.msra.mxu0 0.0
        %1451 = vmatprep.subr.mxu0 0.0
        %1452 = vmatpush1.msra.mxu0 0.0
        %1453 = vmatprep.subr.mxu0 0.0
        %1454 = vmatpush1.msra.mxu0 0.0
        %1455 = vmatprep.subr.mxu0 0.0
        %1456 = vmatpush1.msra.mxu0 0.0
        %1457 = vmatprep.subr.mxu0 0.0
        %1458 = vmatpush1.msra.mxu0 0.0
        %1459 = vmatprep.subr.mxu0 0.0
        %1460 = vmatpush1.msra.mxu0 0.0
        %1461 = vmatprep.subr.mxu0 0.0
        %1462 = vmatpush1.msra.mxu0 0.0
        %1463 = vmatprep.subr.mxu0 0.0
        %1464 = vmatpush1.msra.mxu0 0.0
        %1465 = vmatprep.subr.mxu0 0.0
        %1466 = vmatpush1.msra.mxu0 0.0
        %1467 = vmatprep.subr.mxu0 0.0
        %1468 = vmatpush1.msra.mxu0 0.0
        %1469 = vmatprep.subr.mxu0 0.0
        %1470 = vmatpush1.msra.mxu0 0.0
        %1471 = vmatprep.subr.mxu0 0.0
        %1472 = vmatpush1.msra.mxu0 0.0
        %1473 = vmatprep.subr.mxu0 0.0
        %1474 = vmatpush1.msra.mxu0 0.0
        %1475 = vmatprep.mubr.f32.mxu0 0.0
        %1476 = vmatmul.mubr.f32.gmra.mrb[0].mxu0 %v621
        %v1477 = vpop.f32.mrb[0].mxu0
        %v1478 = vadd.f32 %v1262, %v1477
        %v1479 = vpop.f32.mrb[0].mxu0
        %1480 = vdwg.mxu0
        %1481 = vmatprep.subr.mxu0 0.0
        %1482 = vmatpush1.msra.mxu0 %v1239
        %1483 = vmatprep.subr.mxu0 0.0
        %1484 = vmatpush1.msra.mxu0 %v1240
        %1485 = vmatprep.subr.mxu0 0.0
        %1486 = vmatpush1.msra.mxu0 %v1241
        %1487 = vmatprep.subr.mxu0 0.0
        %1488 = vmatpush1.msra.mxu0 %v1242
        %1489 = vmatprep.subr.mxu0 0.0
        %1490 = vmatpush1.msra.mxu0 0.0
        %1491 = vmatprep.subr.mxu0 0.0
        %1492 = vmatpush1.msra.mxu0 0.0
        %1493 = vmatprep.subr.mxu0 0.0
        %1494 = vmatpush1.msra.mxu0 0.0
        %1495 = vmatprep.subr.mxu0 0.0
        %1496 = vmatpush1.msra.mxu0 0.0
        %1497 = vmatprep.subr.mxu0 0.0
        %1498 = vmatpush1.msra.mxu0 0.0
        %1499 = vmatprep.subr.mxu0 0.0
        %1500 = vmatpush1.msra.mxu0 0.0
        %1501 = vmatprep.subr.mxu0 0.0
        %1502 = vmatpush1.msra.mxu0 0.0
        %1503 = vmatprep.subr.mxu0 0.0
        %1504 = vmatpush1.msra.mxu0 0.0
        %1505 = vmatprep.subr.mxu0 0.0
        %1506 = vmatpush1.msra.mxu0 0.0
        %1507 = vmatprep.subr.mxu0 0.0
        %1508 = vmatpush1.msra.mxu0 0.0
        %1509 = vmatprep.subr.mxu0 0.0
        %1510 = vmatpush1.msra.mxu0 0.0
        %1511 = vmatprep.subr.mxu0 0.0
        %1512 = vmatpush1.msra.mxu0 0.0
        %1513 = vmatprep.subr.mxu0 0.0
        %1514 = vmatpush1.msra.mxu0 0.0
        %1515 = vmatprep.subr.mxu0 0.0
        %1516 = vmatpush1.msra.mxu0 0.0
        %1517 = vmatprep.subr.mxu0 0.0
        %1518 = vmatpush1.msra.mxu0 0.0
        %1519 = vmatprep.subr.mxu0 0.0
        %1520 = vmatpush1.msra.mxu0 0.0
        %1521 = vmatprep.subr.mxu0 0.0
        %1522 = vmatpush1.msra.mxu0 0.0
        %1523 = vmatprep.subr.mxu0 0.0
        %1524 = vmatpush1.msra.mxu0 0.0
        %1525 = vmatprep.subr.mxu0 0.0
        %1526 = vmatpush1.msra.mxu0 0.0
        %1527 = vmatprep.subr.mxu0 0.0
        %1528 = vmatpush1.msra.mxu0 0.0
        %1529 = vmatprep.subr.mxu0 0.0
        %1530 = vmatpush1.msra.mxu0 0.0
        %1531 = vmatprep.subr.mxu0 0.0
        %1532 = vmatpush1.msra.mxu0 0.0
        %1533 = vmatprep.subr.mxu0 0.0
        %1534 = vmatpush1.msra.mxu0 0.0
        %1535 = vmatprep.subr.mxu0 0.0
        %1536 = vmatpush1.msra.mxu0 0.0
        %1537 = vmatprep.subr.mxu0 0.0
        %1538 = vmatpush1.msra.mxu0 0.0
        %1539 = vmatprep.subr.mxu0 0.0
        %1540 = vmatpush1.msra.mxu0 0.0
        %1541 = vmatprep.subr.mxu0 0.0
        %1542 = vmatpush1.msra.mxu0 0.0
        %1543 = vmatprep.subr.mxu0 0.0
        %1544 = vmatpush1.msra.mxu0 0.0
        %1545 = vmatprep.mubr.f32.mxu0 0.0
        %1546 = vmatmul.mubr.f32.gmra.mrb[0].mxu0 %v621
        %v1547 = vpop.f32.mrb[0].mxu0
        %v1548 = vadd.f32 %v1266, %v1547
        %v1549 = vpop.f32.mrb[0].mxu0
        %1550 = vdwg.mxu0
        %v1551 = vmul.f32 %v690, 0.35355338
        %v1552 = vmul.f32 %v760, 0.35355338
        %v1553 = vmul.f32 %v830, 0.35355338
        %v1554 = vmul.f32 %v900, 0.35355338
        %v1555 = vlaneseq
        %v1556 = vshrl.u32 %v1555, 7
        %v1557 = vlaneseq
        %v1558 = vand.u32 %v1557, 127
        %vm1559 = vcmp.le.s32.totalorder %v1558, %v1556
        %v1560 = vsel %vm1559, 0.0, -1e+30
        %vm1561 = vcmask 64512
        %v1563 = vsel %vm1561, %v1551, 0
        %v1566 = vsel %vm1561, %v1014, 0
        %1568 = vmatprep.subr.mxu0 0.0
        %1569 = vmatpush1.xpose.msra.mxu0 %v1566
        %1570 = vmatprep.subr.mxu0 0.0
        %1571 = vmatpush1.xpose.msra.mxu0 0.0
        %1572 = vmatprep.subr.mxu0 0.0
        %1573 = vmatpush1.xpose.msra.mxu0 0.0
        %1574 = vmatprep.subr.mxu0 0.0
        %1575 = vmatpush1.xpose.msra.mxu0 0.0
        %1576 = vmatprep.subr.mxu0 0.0
        %1577 = vmatpush1.xpose.msra.mxu0 0.0
        %1578 = vmatprep.subr.mxu0 0.0
        %1579 = vmatpush1.xpose.msra.mxu0 0.0
        %1580 = vmatprep.subr.mxu0 0.0
        %1581 = vmatpush1.xpose.msra.mxu0 0.0
        %1582 = vmatprep.subr.mxu0 0.0
        %1583 = vmatpush1.xpose.msra.mxu0 0.0
        %1584 = vmatprep.subr.mxu0 0.0
        %1585 = vmatpush1.xpose.msra.mxu0 0.0
        %1586 = vmatprep.subr.mxu0 0.0
        %1587 = vmatpush1.xpose.msra.mxu0 0.0
        %1588 = vmatprep.subr.mxu0 0.0
        %1589 = vmatpush1.xpose.msra.mxu0 0.0
        %1590 = vmatprep.subr.mxu0 0.0
        %1591 = vmatpush1.xpose.msra.mxu0 0.0
        %1592 = vmatprep.subr.mxu0 0.0
        %1593 = vmatpush1.xpose.msra.mxu0 0.0
        %1594 = vmatprep.subr.mxu0 0.0
        %1595 = vmatpush1.xpose.msra.mxu0 0.0
        %1596 = vmatprep.subr.mxu0 0.0
        %1597 = vmatpush1.xpose.msra.mxu0 0.0
        %1598 = vmatprep.subr.mxu0 0.0
        %1599 = vmatpush1.xpose.msra.mxu0 0.0
        %1600 = vmatprep.subr.mxu0 0.0
        %1601 = vmatpush1.xpose.msra.mxu0 0.0
        %1602 = vmatprep.subr.mxu0 0.0
        %1603 = vmatpush1.xpose.msra.mxu0 0.0
        %1604 = vmatprep.subr.mxu0 0.0
        %1605 = vmatpush1.xpose.msra.mxu0 0.0
        %1606 = vmatprep.subr.mxu0 0.0
        %1607 = vmatpush1.xpose.msra.mxu0 0.0
        %1608 = vmatprep.subr.mxu0 0.0
        %1609 = vmatpush1.xpose.msra.mxu0 0.0
        %1610 = vmatprep.subr.mxu0 0.0
        %1611 = vmatpush1.xpose.msra.mxu0 0.0
        %1612 = vmatprep.subr.mxu0 0.0
        %1613 = vmatpush1.xpose.msra.mxu0 0.0
        %1614 = vmatprep.subr.mxu0 0.0
        %1615 = vmatpush1.xpose.msra.mxu0 0.0
        %1616 = vmatprep.subr.mxu0 0.0
        %1617 = vmatpush1.xpose.msra.mxu0 0.0
        %1618 = vmatprep.subr.mxu0 0.0
        %1619 = vmatpush1.xpose.msra.mxu0 0.0
        %1620 = vmatprep.subr.mxu0 0.0
        %1621 = vmatpush1.xpose.msra.mxu0 0.0
        %1622 = vmatprep.subr.mxu0 0.0
        %1623 = vmatpush1.xpose.msra.mxu0 0.0
        %1624 = vmatprep.subr.mxu0 0.0
        %1625 = vmatpush1.xpose.msra.mxu0 0.0
        %1626 = vmatprep.subr.mxu0 0.0
        %1627 = vmatpush1.xpose.msra.mxu0 0.0
        %1628 = vmatprep.subr.mxu0 0.0
        %1629 = vmatpush1.xpose.msra.mxu0 0.0
        %1630 = vmatprep.subr.mxu0 0.0
        %1631 = vmatpush1.xpose.msra.mxu0 0.0
        %1632 = vmatprep.mubr.f32.mxu0 0.0
        %1633 = vmatmul.mubr.f32.gmra.mrb[0].mxu0 %v1563
        %v1634 = vpop.f32.mrb[0].mxu0
        %v1635 = vadd.f32 %v1560, %v1634
        %v1636 = vpop.f32.mrb[0].mxu0
        %1637 = vdwg.mxu0
        %v1639 = vsel %vm1561, %v1552, 0
        %v1642 = vsel %vm1561, %v1084, 0
        %1644 = vmatprep.subr.mxu0 0.0
        %1645 = vmatpush1.xpose.msra.mxu0 %v1642
        %1646 = vmatprep.subr.mxu0 0.0
        %1647 = vmatpush1.xpose.msra.mxu0 0.0
        %1648 = vmatprep.subr.mxu0 0.0
        %1649 = vmatpush1.xpose.msra.mxu0 0.0
        %1650 = vmatprep.subr.mxu0 0.0
        %1651 = vmatpush1.xpose.msra.mxu0 0.0
        %1652 = vmatprep.subr.mxu0 0.0
        %1653 = vmatpush1.xpose.msra.mxu0 0.0
        %1654 = vmatprep.subr.mxu0 0.0
        %1655 = vmatpush1.xpose.msra.mxu0 0.0
        %1656 = vmatprep.subr.mxu0 0.0
        %1657 = vmatpush1.xpose.msra.mxu0 0.0
        %1658 = vmatprep.subr.mxu0 0.0
        %1659 = vmatpush1.xpose.msra.mxu0 0.0
        %1660 = vmatprep.subr.mxu0 0.0
        %1661 = vmatpush1.xpose.msra.mxu0 0.0
        %1662 = vmatprep.subr.mxu0 0.0
        %1663 = vmatpush1.xpose.msra.mxu0 0.0
        %1664 = vmatprep.subr.mxu0 0.0
        %1665 = vmatpush1.xpose.msra.mxu0 0.0
        %1666 = vmatprep.subr.mxu0 0.0
        %1667 = vmatpush1.xpose.msra.mxu0 0.0
        %1668 = vmatprep.subr.mxu0 0.0
        %1669 = vmatpush1.xpose.msra.mxu0 0.0
        %1670 = vmatprep.subr.mxu0 0.0
        %1671 = vmatpush1.xpose.msra.mxu0 0.0
        %1672 = vmatprep.subr.mxu0 0.0
        %1673 = vmatpush1.xpose.msra.mxu0 0.0
        %1674 = vmatprep.subr.mxu0 0.0
        %1675 = vmatpush1.xpose.msra.mxu0 0.0
        %1676 = vmatprep.subr.mxu0 0.0
        %1677 = vmatpush1.xpose.msra.mxu0 0.0
        %1678 = vmatprep.subr.mxu0 0.0
        %1679 = vmatpush1.xpose.msra.mxu0 0.0
        %1680 = vmatprep.subr.mxu0 0.0
        %1681 = vmatpush1.xpose.msra.mxu0 0.0
        %1682 = vmatprep.subr.mxu0 0.0
        %1683 = vmatpush1.xpose.msra.mxu0 0.0
        %1684 = vmatprep.subr.mxu0 0.0
        %1685 = vmatpush1.xpose.msra.mxu0 0.0
        %1686 = vmatprep.subr.mxu0 0.0
        %1687 = vmatpush1.xpose.msra.mxu0 0.0
        %1688 = vmatprep.subr.mxu0 0.0
        %1689 = vmatpush1.xpose.msra.mxu0 0.0
        %1690 = vmatprep.subr.mxu0 0.0
        %1691 = vmatpush1.xpose.msra.mxu0 0.0
        %1692 = vmatprep.subr.mxu0 0.0
        %1693 = vmatpush1.xpose.msra.mxu0 0.0
        %1694 = vmatprep.subr.mxu0 0.0
        %1695 = vmatpush1.xpose.msra.mxu0 0.0
        %1696 = vmatprep.subr.mxu0 0.0
        %1697 = vmatpush1.xpose.msra.mxu0 0.0
        %1698 = vmatprep.subr.mxu0 0.0
        %1699 = vmatpush1.xpose.msra.mxu0 0.0
        %1700 = vmatprep.subr.mxu0 0.0
        %1701 = vmatpush1.xpose.msra.mxu0 0.0
        %1702 = vmatprep.subr.mxu0 0.0
        %1703 = vmatpush1.xpose.msra.mxu0 0.0
        %1704 = vmatprep.subr.mxu0 0.0
        %1705 = vmatpush1.xpose.msra.mxu0 0.0
        %1706 = vmatprep.subr.mxu0 0.0
        %1707 = vmatpush1.xpose.msra.mxu0 0.0
        %1708 = vmatprep.mubr.f32.mxu0 0.0
        %1709 = vmatmul.mubr.f32.gmra.mrb[0].mxu0 %v1639
        %v1710 = vpop.f32.mrb[0].mxu0
        %v1711 = vadd.f32 %v1560, %v1710
        %v1712 = vpop.f32.mrb[0].mxu0
        %1713 = vdwg.mxu0
        %v1715 = vsel %vm1561, %v1553, 0
        %v1718 = vsel %vm1561, %v1154, 0
        %1720 = vmatprep.subr.mxu0 0.0
        %1721 = vmatpush1.xpose.msra.mxu0 %v1718
        %1722 = vmatprep.subr.mxu0 0.0
        %1723 = vmatpush1.xpose.msra.mxu0 0.0
        %1724 = vmatprep.subr.mxu0 0.0
        %1725 = vmatpush1.xpose.msra.mxu0 0.0
        %1726 = vmatprep.subr.mxu0 0.0
        %1727 = vmatpush1.xpose.msra.mxu0 0.0
        %1728 = vmatprep.subr.mxu0 0.0
        %1729 = vmatpush1.xpose.msra.mxu0 0.0
        %1730 = vmatprep.subr.mxu0 0.0
        %1731 = vmatpush1.xpose.msra.mxu0 0.0
        %1732 = vmatprep.subr.mxu0 0.0
        %1733 = vmatpush1.xpose.msra.mxu0 0.0
        %1734 = vmatprep.subr.mxu0 0.0
        %1735 = vmatpush1.xpose.msra.mxu0 0.0
        %1736 = vmatprep.subr.mxu0 0.0
        %1737 = vmatpush1.xpose.msra.mxu0 0.0
        %1738 = vmatprep.subr.mxu0 0.0
        %1739 = vmatpush1.xpose.msra.mxu0 0.0
        %1740 = vmatprep.subr.mxu0 0.0
        %1741 = vmatpush1.xpose.msra.mxu0 0.0
        %1742 = vmatprep.subr.mxu0 0.0
        %1743 = vmatpush1.xpose.msra.mxu0 0.0
        %1744 = vmatprep.subr.mxu0 0.0
        %1745 = vmatpush1.xpose.msra.mxu0 0.0
        %1746 = vmatprep.subr.mxu0 0.0
        %1747 = vmatpush1.xpose.msra.mxu0 0.0
        %1748 = vmatprep.subr.mxu0 0.0
        %1749 = vmatpush1.xpose.msra.mxu0 0.0
        %1750 = vmatprep.subr.mxu0 0.0
        %1751 = vmatpush1.xpose.msra.mxu0 0.0
        %1752 = vmatprep.subr.mxu0 0.0
        %1753 = vmatpush1.xpose.msra.mxu0 0.0
        %1754 = vmatprep.subr.mxu0 0.0
        %1755 = vmatpush1.xpose.msra.mxu0 0.0
        %1756 = vmatprep.subr.mxu0 0.0
        %1757 = vmatpush1.xpose.msra.mxu0 0.0
        %1758 = vmatprep.subr.mxu0 0.0
        %1759 = vmatpush1.xpose.msra.mxu0 0.0
        %1760 = vmatprep.subr.mxu0 0.0
        %1761 = vmatpush1.xpose.msra.mxu0 0.0
        %1762 = vmatprep.subr.mxu0 0.0
        %1763 = vmatpush1.xpose.msra.mxu0 0.0
        %1764 = vmatprep.subr.mxu0 0.0
        %1765 = vmatpush1.xpose.msra.mxu0 0.0
        %1766 = vmatprep.subr.mxu0 0.0
        %1767 = vmatpush1.xpose.msra.mxu0 0.0
        %1768 = vmatprep.subr.mxu0 0.0
        %1769 = vmatpush1.xpose.msra.mxu0 0.0
        %1770 = vmatprep.subr.mxu0 0.0
        %1771 = vmatpush1.xpose.msra.mxu0 0.0
        %1772 = vmatprep.subr.mxu0 0.0
        %1773 = vmatpush1.xpose.msra.mxu0 0.0
        %1774 = vmatprep.subr.mxu0 0.0
        %1775 = vmatpush1.xpose.msra.mxu0 0.0
        %1776 = vmatprep.subr.mxu0 0.0
        %1777 = vmatpush1.xpose.msra.mxu0 0.0
        %1778 = vmatprep.subr.mxu0 0.0
        %1779 = vmatpush1.xpose.msra.mxu0 0.0
        %1780 = vmatprep.subr.mxu0 0.0
        %1781 = vmatpush1.xpose.msra.mxu0 0.0
        %1782 = vmatprep.subr.mxu0 0.0
        %1783 = vmatpush1.xpose.msra.mxu0 0.0
        %1784 = vmatprep.mubr.f32.mxu0 0.0
        %1785 = vmatmul.mubr.f32.gmra.mrb[0].mxu0 %v1715
        %v1786 = vpop.f32.mrb[0].mxu0
        %v1787 = vadd.f32 %v1560, %v1786
        %v1788 = vpop.f32.mrb[0].mxu0
        %1789 = vdwg.mxu0
        %v1791 = vsel %vm1561, %v1554, 0
        %v1794 = vsel %vm1561, %v1224, 0
        %1796 = vmatprep.subr.mxu0 0.0
        %1797 = vmatpush1.xpose.msra.mxu0 %v1794
        %1798 = vmatprep.subr.mxu0 0.0
        %1799 = vmatpush1.xpose.msra.mxu0 0.0
        %1800 = vmatprep.subr.mxu0 0.0
        %1801 = vmatpush1.xpose.msra.mxu0 0.0
        %1802 = vmatprep.subr.mxu0 0.0
        %1803 = vmatpush1.xpose.msra.mxu0 0.0
        %1804 = vmatprep.subr.mxu0 0.0
        %1805 = vmatpush1.xpose.msra.mxu0 0.0
        %1806 = vmatprep.subr.mxu0 0.0
        %1807 = vmatpush1.xpose.msra.mxu0 0.0
        %1808 = vmatprep.subr.mxu0 0.0
        %1809 = vmatpush1.xpose.msra.mxu0 0.0
        %1810 = vmatprep.subr.mxu0 0.0
        %1811 = vmatpush1.xpose.msra.mxu0 0.0
        %1812 = vmatprep.subr.mxu0 0.0
        %1813 = vmatpush1.xpose.msra.mxu0 0.0
        %1814 = vmatprep.subr.mxu0 0.0
        %1815 = vmatpush1.xpose.msra.mxu0 0.0
        %1816 = vmatprep.subr.mxu0 0.0
        %1817 = vmatpush1.xpose.msra.mxu0 0.0
        %1818 = vmatprep.subr.mxu0 0.0
        %1819 = vmatpush1.xpose.msra.mxu0 0.0
        %1820 = vmatprep.subr.mxu0 0.0
        %1821 = vmatpush1.xpose.msra.mxu0 0.0
        %1822 = vmatprep.subr.mxu0 0.0
        %1823 = vmatpush1.xpose.msra.mxu0 0.0
        %1824 = vmatprep.subr.mxu0 0.0
        %1825 = vmatpush1.xpose.msra.mxu0 0.0
        %1826 = vmatprep.subr.mxu0 0.0
        %1827 = vmatpush1.xpose.msra.mxu0 0.0
        %1828 = vmatprep.subr.mxu0 0.0
        %1829 = vmatpush1.xpose.msra.mxu0 0.0
        %1830 = vmatprep.subr.mxu0 0.0
        %1831 = vmatpush1.xpose.msra.mxu0 0.0
        %1832 = vmatprep.subr.mxu0 0.0
        %1833 = vmatpush1.xpose.msra.mxu0 0.0
        %1834 = vmatprep.subr.mxu0 0.0
        %1835 = vmatpush1.xpose.msra.mxu0 0.0
        %1836 = vmatprep.subr.mxu0 0.0
        %1837 = vmatpush1.xpose.msra.mxu0 0.0
        %1838 = vmatprep.subr.mxu0 0.0
        %1839 = vmatpush1.xpose.msra.mxu0 0.0
        %1840 = vmatprep.subr.mxu0 0.0
        %1841 = vmatpush1.xpose.msra.mxu0 0.0
        %1842 = vmatprep.subr.mxu0 0.0
        %1843 = vmatpush1.xpose.msra.mxu0 0.0
        %1844 = vmatprep.subr.mxu0 0.0
        %1845 = vmatpush1.xpose.msra.mxu0 0.0
        %1846 = vmatprep.subr.mxu0 0.0
        %1847 = vmatpush1.xpose.msra.mxu0 0.0
        %1848 = vmatprep.subr.mxu0 0.0
        %1849 = vmatpush1.xpose.msra.mxu0 0.0
        %1850 = vmatprep.subr.mxu0 0.0
        %1851 = vmatpush1.xpose.msra.mxu0 0.0
        %1852 = vmatprep.subr.mxu0 0.0
        %1853 = vmatpush1.xpose.msra.mxu0 0.0
        %1854 = vmatprep.subr.mxu0 0.0
        %1855 = vmatpush1.xpose.msra.mxu0 0.0
        %1856 = vmatprep.subr.mxu0 0.0
        %1857 = vmatpush1.xpose.msra.mxu0 0.0
        %1858 = vmatprep.subr.mxu0 0.0
        %1859 = vmatpush1.xpose.msra.mxu0 0.0
        %1860 = vmatprep.mubr.f32.mxu0 0.0
        %1861 = vmatmul.mubr.f32.gmra.mrb[0].mxu0 %v1791
        %v1862 = vpop.f32.mrb[0].mxu0
        %v1863 = vadd.f32 %v1560, %v1862
        %v1864 = vpop.f32.mrb[0].mxu0
        %1865 = vdwg.mxu0
        %v1866 = vsel %vm1561, %v1635, -inf
        %1867 = vmax.xlane.f32.xlu0 %v1866
        %v1868 = vpop.xlane.xlu0 %1867
        %v1869 = vsel %vm1561, %v1711, -inf
        %1870 = vmax.xlane.f32.xlu0 %v1869
        %v1871 = vpop.xlane.xlu0 %1870
        %v1872 = vsel %vm1561, %v1787, -inf
        %1873 = vmax.xlane.f32.xlu0 %v1872
        %v1874 = vpop.xlane.xlu0 %1873
        %v1875 = vsel %vm1561, %v1863, -inf
        %1876 = vmax.xlane.f32.xlu0 %v1875
        %v1877 = vpop.xlane.xlu0 %1876
        %v1878 = vsub.f32 %v1635, %v1868
        %v1879 = vsub.f32 %v1711, %v1871
        %v1880 = vsub.f32 %v1787, %v1874
        %v1881 = vsub.f32 %v1863, %v1877
        %v1882 = vmul.f32 %v1878, 1.442695
        %v1883 = vpow.pop %v1882
        %v1884 = vmul.f32 %v1879, 1.442695
        %v1885 = vpow.pop %v1884
        %v1886 = vmul.f32 %v1880, 1.442695
        %v1887 = vpow.pop %v1886
        %v1888 = vmul.f32 %v1881, 1.442695
        %v1889 = vpow.pop %v1888
        %v1890 = vsel %vm1561, %v1883, 0.0
        %1891 = vadd.xlane.f32.xlu0 %v1890
        %v1892 = vpop.xlane.xlu0 %1891
        %v1893 = vsel %vm1561, %v1885, 0.0
        %1894 = vadd.xlane.f32.xlu0 %v1893
        %v1895 = vpop.xlane.xlu0 %1894
        %v1896 = vsel %vm1561, %v1887, 0.0
        %1897 = vadd.xlane.f32.xlu0 %v1896
        %v1898 = vpop.xlane.xlu0 %1897
        %v1899 = vsel %vm1561, %v1889, 0.0
        %1900 = vadd.xlane.f32.xlu0 %v1899
        %v1901 = vpop.xlane.xlu0 %1900
        %v1902 = vrcp.pop %v1892
        %v1903 = vmul.f32 %v1883, %v1902
        %v1904 = vrcp.pop %v1895
        %v1905 = vmul.f32 %v1885, %v1904
        %v1906 = vrcp.pop %v1898
        %v1907 = vmul.f32 %v1887, %v1906
        %v1908 = vrcp.pop %v1901
        %v1909 = vmul.f32 %v1889, %v1908
        %v1911 = vsel %vm1561, %v1903, 0
        %1913 = vmatprep.subr.mxu0 0.0
        %1914 = vmatpush1.msra.mxu0 %v1338
        %1915 = vmatprep.subr.mxu0 0.0
        %1916 = vmatpush1.msra.mxu0 0.0
        %1917 = vmatprep.subr.mxu0 0.0
        %1918 = vmatpush1.msra.mxu0 0.0
        %1919 = vmatprep.subr.mxu0 0.0
        %1920 = vmatpush1.msra.mxu0 0.0
        %1921 = vmatprep.subr.mxu0 0.0
        %1922 = vmatpush1.msra.mxu0 0.0
        %1923 = vmatprep.subr.mxu0 0.0
        %1924 = vmatpush1.msra.mxu0 0.0
        %1925 = vmatprep.subr.mxu0 0.0
        %1926 = vmatpush1.msra.mxu0 0.0
        %1927 = vmatprep.subr.mxu0 0.0
        %1928 = vmatpush1.msra.mxu0 0.0
        %1929 = vmatprep.subr.mxu0 0.0
        %1930 = vmatpush1.msra.mxu0 0.0
        %1931 = vmatprep.subr.mxu0 0.0
        %1932 = vmatpush1.msra.mxu0 0.0
        %1933 = vmatprep.subr.mxu0 0.0
        %1934 = vmatpush1.msra.mxu0 0.0
        %1935 = vmatprep.subr.mxu0 0.0
        %1936 = vmatpush1.msra.mxu0 0.0
        %1937 = vmatprep.subr.mxu0 0.0
        %1938 = vmatpush1.msra.mxu0 0.0
        %1939 = vmatprep.subr.mxu0 0.0
        %1940 = vmatpush1.msra.mxu0 0.0
        %1941 = vmatprep.subr.mxu0 0.0
        %1942 = vmatpush1.msra.mxu0 0.0
        %1943 = vmatprep.subr.mxu0 0.0
        %1944 = vmatpush1.msra.mxu0 0.0
        %1945 = vmatprep.subr.mxu0 0.0
        %1946 = vmatpush1.msra.mxu0 0.0
        %1947 = vmatprep.subr.mxu0 0.0
        %1948 = vmatpush1.msra.mxu0 0.0
        %1949 = vmatprep.subr.mxu0 0.0
        %1950 = vmatpush1.msra.mxu0 0.0
        %1951 = vmatprep.subr.mxu0 0.0
        %1952 = vmatpush1.msra.mxu0 0.0
        %1953 = vmatprep.subr.mxu0 0.0
        %1954 = vmatpush1.msra.mxu0 0.0
        %1955 = vmatprep.subr.mxu0 0.0
        %1956 = vmatpush1.msra.mxu0 0.0
        %1957 = vmatprep.subr.mxu0 0.0
        %1958 = vmatpush1.msra.mxu0 0.0
        %1959 = vmatprep.subr.mxu0 0.0
        %1960 = vmatpush1.msra.mxu0 0.0
        %1961 = vmatprep.subr.mxu0 0.0
        %1962 = vmatpush1.msra.mxu0 0.0
        %1963 = vmatprep.subr.mxu0 0.0
        %1964 = vmatpush1.msra.mxu0 0.0
        %1965 = vmatprep.subr.mxu0 0.0
        %1966 = vmatpush1.msra.mxu0 0.0
        %1967 = vmatprep.subr.mxu0 0.0
        %1968 = vmatpush1.msra.mxu0 0.0
        %1969 = vmatprep.subr.mxu0 0.0
        %1970 = vmatpush1.msra.mxu0 0.0
        %1971 = vmatprep.subr.mxu0 0.0
        %1972 = vmatpush1.msra.mxu0 0.0
        %1973 = vmatprep.subr.mxu0 0.0
        %1974 = vmatpush1.msra.mxu0 0.0
        %1975 = vmatprep.subr.mxu0 0.0
        %1976 = vmatpush1.msra.mxu0 0.0
        %1977 = vmatprep.mubr.f32.mxu0 0.0
        %1978 = vmatmul.mubr.f32.gmra.mrb[0].mxu0 %v1911
        %v1979 = vpop.f32.mrb[0].mxu0
        %v1980 = vadd.f32 0.0, %v1979
        %v1981 = vpop.f32.mrb[0].mxu0
        %1982 = vdwg.mxu0
        %v1984 = vsel %vm1561, %v1905, 0
        %1986 = vmatprep.subr.mxu0 0.0
        %1987 = vmatpush1.msra.mxu0 %v1408
        %1988 = vmatprep.subr.mxu0 0.0
        %1989 = vmatpush1.msra.mxu0 0.0
        %1990 = vmatprep.subr.mxu0 0.0
        %1991 = vmatpush1.msra.mxu0 0.0
        %1992 = vmatprep.subr.mxu0 0.0
        %1993 = vmatpush1.msra.mxu0 0.0
        %1994 = vmatprep.subr.mxu0 0.0
        %1995 = vmatpush1.msra.mxu0 0.0
        %1996 = vmatprep.subr.mxu0 0.0
        %1997 = vmatpush1.msra.mxu0 0.0
        %1998 = vmatprep.subr.mxu0 0.0
        %1999 = vmatpush1.msra.mxu0 0.0
        %2000 = vmatprep.subr.mxu0 0.0
        %2001 = vmatpush1.msra.mxu0 0.0
        %2002 = vmatprep.subr.mxu0 0.0
        %2003 = vmatpush1.msra.mxu0 0.0
        %2004 = vmatprep.subr.mxu0 0.0
        %2005 = vmatpush1.msra.mxu0 0.0
        %2006 = vmatprep.subr.mxu0 0.0
        %2007 = vmatpush1.msra.mxu0 0.0
        %2008 = vmatprep.subr.mxu0 0.0
        %2009 = vmatpush1.msra.mxu0 0.0
        %2010 = vmatprep.subr.mxu0 0.0
        %2011 = vmatpush1.msra.mxu0 0.0
        %2012 = vmatprep.subr.mxu0 0.0
        %2013 = vmatpush1.msra.mxu0 0.0
        %2014 = vmatprep.subr.mxu0 0.0
        %2015 = vmatpush1.msra.mxu0 0.0
        %2016 = vmatprep.subr.mxu0 0.0
        %2017 = vmatpush1.msra.mxu0 0.0
        %2018 = vmatprep.subr.mxu0 0.0
        %2019 = vmatpush1.msra.mxu0 0.0
        %2020 = vmatprep.subr.mxu0 0.0
        %2021 = vmatpush1.msra.mxu0 0.0
        %2022 = vmatprep.subr.mxu0 0.0
        %2023 = vmatpush1.msra.mxu0 0.0
        %2024 = vmatprep.subr.mxu0 0.0
        %2025 = vmatpush1.msra.mxu0 0.0
        %2026 = vmatprep.subr.mxu0 0.0
        %2027 = vmatpush1.msra.mxu0 0.0
        %2028 = vmatprep.subr.mxu0 0.0
        %2029 = vmatpush1.msra.mxu0 0.0
        %2030 = vmatprep.subr.mxu0 0.0
        %2031 = vmatpush1.msra.mxu0 0.0
        %2032 = vmatprep.subr.mxu0 0.0
        %2033 = vmatpush1.msra.mxu0 0.0
        %2034 = vmatprep.subr.mxu0 0.0
        %2035 = vmatpush1.msra.mxu0 0.0
        %2036 = vmatprep.subr.mxu0 0.0
        %2037 = vmatpush1.msra.mxu0 0.0
        %2038 = vmatprep.subr.mxu0 0.0
        %2039 = vmatpush1.msra.mxu0 0.0
        %2040 = vmatprep.subr.mxu0 0.0
        %2041 = vmatpush1.msra.mxu0 0.0
        %2042 = vmatprep.subr.mxu0 0.0
        %2043 = vmatpush1.msra.mxu0 0.0
        %2044 = vmatprep.subr.mxu0 0.0
        %2045 = vmatpush1.msra.mxu0 0.0
        %2046 = vmatprep.subr.mxu0 0.0
        %2047 = vmatpush1.msra.mxu0 0.0
        %2048 = vmatprep.subr.mxu0 0.0
        %2049 = vmatpush1.msra.mxu0 0.0
        %2050 = vmatprep.mubr.f32.mxu0 0.0
        %2051 = vmatmul.mubr.f32.gmra.mrb[0].mxu0 %v1984
        %v2052 = vpop.f32.mrb[0].mxu0
        %v2053 = vadd.f32 0.0, %v2052
        %v2054 = vpop.f32.mrb[0].mxu0
        %2055 = vdwg.mxu0
        %v2057 = vsel %vm1561, %v1907, 0
        %2059 = vmatprep.subr.mxu0 0.0
        %2060 = vmatpush1.msra.mxu0 %v1478
        %2061 = vmatprep.subr.mxu0 0.0
        %2062 = vmatpush1.msra.mxu0 0.0
        %2063 = vmatprep.subr.mxu0 0.0
        %2064 = vmatpush1.msra.mxu0 0.0
        %2065 = vmatprep.subr.mxu0 0.0
        %2066 = vmatpush1.msra.mxu0 0.0
        %2067 = vmatprep.subr.mxu0 0.0
        %2068 = vmatpush1.msra.mxu0 0.0
        %2069 = vmatprep.subr.mxu0 0.0
        %2070 = vmatpush1.msra.mxu0 0.0
        %2071 = vmatprep.subr.mxu0 0.0
        %2072 = vmatpush1.msra.mxu0 0.0
        %2073 = vmatprep.subr.mxu0 0.0
        %2074 = vmatpush1.msra.mxu0 0.0
        %2075 = vmatprep.subr.mxu0 0.0
        %2076 = vmatpush1.msra.mxu0 0.0
        %2077 = vmatprep.subr.mxu0 0.0
        %2078 = vmatpush1.msra.mxu0 0.0
        %2079 = vmatprep.subr.mxu0 0.0
        %2080 = vmatpush1.msra.mxu0 0.0
        %2081 = vmatprep.subr.mxu0 0.0
        %2082 = vmatpush1.msra.mxu0 0.0
        %2083 = vmatprep.subr.mxu0 0.0
        %2084 = vmatpush1.msra.mxu0 0.0
        %2085 = vmatprep.subr.mxu0 0.0
        %2086 = vmatpush1.msra.mxu0 0.0
        %2087 = vmatprep.subr.mxu0 0.0
        %2088 = vmatpush1.msra.mxu0 0.0
        %2089 = vmatprep.subr.mxu0 0.0
        %2090 = vmatpush1.msra.mxu0 0.0
        %2091 = vmatprep.subr.mxu0 0.0
        %2092 = vmatpush1.msra.mxu0 0.0
        %2093 = vmatprep.subr.mxu0 0.0
        %2094 = vmatpush1.msra.mxu0 0.0
        %2095 = vmatprep.subr.mxu0 0.0
        %2096 = vmatpush1.msra.mxu0 0.0
        %2097 = vmatprep.subr.mxu0 0.0
        %2098 = vmatpush1.msra.mxu0 0.0
        %2099 = vmatprep.subr.mxu0 0.0
        %2100 = vmatpush1.msra.mxu0 0.0
        %2101 = vmatprep.subr.mxu0 0.0
        %2102 = vmatpush1.msra.mxu0 0.0
        %2103 = vmatprep.subr.mxu0 0.0
        %2104 = vmatpush1.msra.mxu0 0.0
        %2105 = vmatprep.subr.mxu0 0.0
        %2106 = vmatpush1.msra.mxu0 0.0
        %2107 = vmatprep.subr.mxu0 0.0
        %2108 = vmatpush1.msra.mxu0 0.0
        %2109 = vmatprep.subr.mxu0 0.0
        %2110 = vmatpush1.msra.mxu0 0.0
        %2111 = vmatprep.subr.mxu0 0.0
        %2112 = vmatpush1.msra.mxu0 0.0
        %2113 = vmatprep.subr.mxu0 0.0
        %2114 = vmatpush1.msra.mxu0 0.0
        %2115 = vmatprep.subr.mxu0 0.0
        %2116 = vmatpush1.msra.mxu0 0.0
        %2117 = vmatprep.subr.mxu0 0.0
        %2118 = vmatpush1.msra.mxu0 0.0
        %2119 = vmatprep.subr.mxu0 0.0
        %2120 = vmatpush1.msra.mxu0 0.0
        %2121 = vmatprep.subr.mxu0 0.0
        %2122 = vmatpush1.msra.mxu0 0.0
        %2123 = vmatprep.mubr.f32.mxu0 0.0
        %2124 = vmatmul.mubr.f32.gmra.mrb[0].mxu0 %v2057
        %v2125 = vpop.f32.mrb[0].mxu0
        %v2126 = vadd.f32 0.0, %v2125
        %v2127 = vpop.f32.mrb[0].mxu0
        %2128 = vdwg.mxu0
        %v2130 = vsel %vm1561, %v1909, 0
        %2132 = vmatprep.subr.mxu0 0.0
        %2133 = vmatpush1.msra.mxu0 %v1548
        %2134 = vmatprep.subr.mxu0 0.0
        %2135 = vmatpush1.msra.mxu0 0.0
        %2136 = vmatprep.subr.mxu0 0.0
        %2137 = vmatpush1.msra.mxu0 0.0
        %2138 = vmatprep.subr.mxu0 0.0
        %2139 = vmatpush1.msra.mxu0 0.0
        %2140 = vmatprep.subr.mxu0 0.0
        %2141 = vmatpush1.msra.mxu0 0.0
        %2142 = vmatprep.subr.mxu0 0.0
        %2143 = vmatpush1.msra.mxu0 0.0
        %2144 = vmatprep.subr.mxu0 0.0
        %2145 = vmatpush1.msra.mxu0 0.0
        %2146 = vmatprep.subr.mxu0 0.0
        %2147 = vmatpush1.msra.mxu0 0.0
        %2148 = vmatprep.subr.mxu0 0.0
        %2149 = vmatpush1.msra.mxu0 0.0
        %2150 = vmatprep.subr.mxu0 0.0
        %2151 = vmatpush1.msra.mxu0 0.0
        %2152 = vmatprep.subr.mxu0 0.0
        %2153 = vmatpush1.msra.mxu0 0.0
        %2154 = vmatprep.subr.mxu0 0.0
        %2155 = vmatpush1.msra.mxu0 0.0
        %2156 = vmatprep.subr.mxu0 0.0
        %2157 = vmatpush1.msra.mxu0 0.0
        %2158 = vmatprep.subr.mxu0 0.0
        %2159 = vmatpush1.msra.mxu0 0.0
        %2160 = vmatprep.subr.mxu0 0.0
        %2161 = vmatpush1.msra.mxu0 0.0
        %2162 = vmatprep.subr.mxu0 0.0
        %2163 = vmatpush1.msra.mxu0 0.0
        %2164 = vmatprep.subr.mxu0 0.0
        %2165 = vmatpush1.msra.mxu0 0.0
        %2166 = vmatprep.subr.mxu0 0.0
        %2167 = vmatpush1.msra.mxu0 0.0
        %2168 = vmatprep.subr.mxu0 0.0
        %2169 = vmatpush1.msra.mxu0 0.0
        %2170 = vmatprep.subr.mxu0 0.0
        %2171 = vmatpush1.msra.mxu0 0.0
        %2172 = vmatprep.subr.mxu0 0.0
        %2173 = vmatpush1.msra.mxu0 0.0
        %2174 = vmatprep.subr.mxu0 0.0
        %2175 = vmatpush1.msra.mxu0 0.0
        %2176 = vmatprep.subr.mxu0 0.0
        %2177 = vmatpush1.msra.mxu0 0.0
        %2178 = vmatprep.subr.mxu0 0.0
        %2179 = vmatpush1.msra.mxu0 0.0
        %2180 = vmatprep.subr.mxu0 0.0
        %2181 = vmatpush1.msra.mxu0 0.0
        %2182 = vmatprep.subr.mxu0 0.0
        %2183 = vmatpush1.msra.mxu0 0.0
        %2184 = vmatprep.subr.mxu0 0.0
        %2185 = vmatpush1.msra.mxu0 0.0
        %2186 = vmatprep.subr.mxu0 0.0
        %2187 = vmatpush1.msra.mxu0 0.0
        %2188 = vmatprep.subr.mxu0 0.0
        %2189 = vmatpush1.msra.mxu0 0.0
        %2190 = vmatprep.subr.mxu0 0.0
        %2191 = vmatpush1.msra.mxu0 0.0
        %2192 = vmatprep.subr.mxu0 0.0
        %2193 = vmatpush1.msra.mxu0 0.0
        %2194 = vmatprep.subr.mxu0 0.0
        %2195 = vmatpush1.msra.mxu0 0.0
        %2196 = vmatprep.mubr.f32.mxu0 0.0
        %2197 = vmatmul.mubr.f32.gmra.mrb[0].mxu0 %v2130
        %v2198 = vpop.f32.mrb[0].mxu0
        %v2199 = vadd.f32 0.0, %v2198
        %v2200 = vpop.f32.mrb[0].mxu0
        %2201 = vdwg.mxu0
        %v2202 = vld [vmem:[%s9] sm:$0xff]
        %v2203 = vld [vmem:[%s9 + $0x8] sm:$0xff]
        %v2204 = vld [vmem:[%s9 + $0x10] sm:$0xff]
        %v2205 = vld [vmem:[%s9 + $0x18] sm:$0xff]
        %v2207 = vsel %vm1561, %v1980, 0
        %2209 = vmatprep.subr.mxu0 0.0
        %2210 = vmatpush1.msra.mxu0 %v2202
        %2211 = vmatprep.subr.mxu0 0.0
        %2212 = vmatpush1.msra.mxu0 0.0
        %2213 = vmatprep.subr.mxu0 0.0
        %2214 = vmatpush1.msra.mxu0 0.0
        %2215 = vmatprep.subr.mxu0 0.0
        %2216 = vmatpush1.msra.mxu0 0.0
        %2217 = vmatprep.subr.mxu0 0.0
        %2218 = vmatpush1.msra.mxu0 0.0
        %2219 = vmatprep.subr.mxu0 0.0
        %2220 = vmatpush1.msra.mxu0 0.0
        %2221 = vmatprep.subr.mxu0 0.0
        %2222 = vmatpush1.msra.mxu0 0.0
        %2223 = vmatprep.subr.mxu0 0.0
        %2224 = vmatpush1.msra.mxu0 0.0
        %2225 = vmatprep.subr.mxu0 0.0
        %2226 = vmatpush1.msra.mxu0 0.0
        %2227 = vmatprep.subr.mxu0 0.0
        %2228 = vmatpush1.msra.mxu0 0.0
        %2229 = vmatprep.subr.mxu0 0.0
        %2230 = vmatpush1.msra.mxu0 0.0
        %2231 = vmatprep.subr.mxu0 0.0
        %2232 = vmatpush1.msra.mxu0 0.0
        %2233 = vmatprep.subr.mxu0 0.0
        %2234 = vmatpush1.msra.mxu0 0.0
        %2235 = vmatprep.subr.mxu0 0.0
        %2236 = vmatpush1.msra.mxu0 0.0
        %2237 = vmatprep.subr.mxu0 0.0
        %2238 = vmatpush1.msra.mxu0 0.0
        %2239 = vmatprep.subr.mxu0 0.0
        %2240 = vmatpush1.msra.mxu0 0.0
        %2241 = vmatprep.subr.mxu0 0.0
        %2242 = vmatpush1.msra.mxu0 0.0
        %2243 = vmatprep.subr.mxu0 0.0
        %2244 = vmatpush1.msra.mxu0 0.0
        %2245 = vmatprep.subr.mxu0 0.0
        %2246 = vmatpush1.msra.mxu0 0.0
        %2247 = vmatprep.subr.mxu0 0.0
        %2248 = vmatpush1.msra.mxu0 0.0
        %2249 = vmatprep.subr.mxu0 0.0
        %2250 = vmatpush1.msra.mxu0 0.0
        %2251 = vmatprep.subr.mxu0 0.0
        %2252 = vmatpush1.msra.mxu0 0.0
        %2253 = vmatprep.subr.mxu0 0.0
        %2254 = vmatpush1.msra.mxu0 0.0
        %2255 = vmatprep.subr.mxu0 0.0
        %2256 = vmatpush1.msra.mxu0 0.0
        %2257 = vmatprep.subr.mxu0 0.0
        %2258 = vmatpush1.msra.mxu0 0.0
        %2259 = vmatprep.subr.mxu0 0.0
        %2260 = vmatpush1.msra.mxu0 0.0
        %2261 = vmatprep.subr.mxu0 0.0
        %2262 = vmatpush1.msra.mxu0 0.0
        %2263 = vmatprep.subr.mxu0 0.0
        %2264 = vmatpush1.msra.mxu0 0.0
        %2265 = vmatprep.subr.mxu0 0.0
        %2266 = vmatpush1.msra.mxu0 0.0
        %2267 = vmatprep.subr.mxu0 0.0
        %2268 = vmatpush1.msra.mxu0 0.0
        %2269 = vmatprep.subr.mxu0 0.0
        %2270 = vmatpush1.msra.mxu0 0.0
        %2271 = vmatprep.subr.mxu0 0.0
        %2272 = vmatpush1.msra.mxu0 0.0
        %2273 = vmatprep.mubr.f32.mxu0 0.0
        %2274 = vmatmul.mubr.f32.gmra.mrb[0].mxu0 %v2207
        %v2275 = vpop.f32.mrb[0].mxu0
        %v2276 = vadd.f32 0.0, %v2275
        %v2277 = vpop.f32.mrb[0].mxu0
        %2278 = vdwg.mxu0
        %v2280 = vsel %vm1561, %v2053, 0
        %2282 = vmatprep.subr.mxu0 0.0
        %2283 = vmatpush1.msra.mxu0 %v2203
        %2284 = vmatprep.subr.mxu0 0.0
        %2285 = vmatpush1.msra.mxu0 0.0
        %2286 = vmatprep.subr.mxu0 0.0
        %2287 = vmatpush1.msra.mxu0 0.0
        %2288 = vmatprep.subr.mxu0 0.0
        %2289 = vmatpush1.msra.mxu0 0.0
        %2290 = vmatprep.subr.mxu0 0.0
        %2291 = vmatpush1.msra.mxu0 0.0
        %2292 = vmatprep.subr.mxu0 0.0
        %2293 = vmatpush1.msra.mxu0 0.0
        %2294 = vmatprep.subr.mxu0 0.0
        %2295 = vmatpush1.msra.mxu0 0.0
        %2296 = vmatprep.subr.mxu0 0.0
        %2297 = vmatpush1.msra.mxu0 0.0
        %2298 = vmatprep.subr.mxu0 0.0
        %2299 = vmatpush1.msra.mxu0 0.0
        %2300 = vmatprep.subr.mxu0 0.0
        %2301 = vmatpush1.msra.mxu0 0.0
        %2302 = vmatprep.subr.mxu0 0.0
        %2303 = vmatpush1.msra.mxu0 0.0
        %2304 = vmatprep.subr.mxu0 0.0
        %2305 = vmatpush1.msra.mxu0 0.0
        %2306 = vmatprep.subr.mxu0 0.0
        %2307 = vmatpush1.msra.mxu0 0.0
        %2308 = vmatprep.subr.mxu0 0.0
        %2309 = vmatpush1.msra.mxu0 0.0
        %2310 = vmatprep.subr.mxu0 0.0
        %2311 = vmatpush1.msra.mxu0 0.0
        %2312 = vmatprep.subr.mxu0 0.0
        %2313 = vmatpush1.msra.mxu0 0.0
        %2314 = vmatprep.subr.mxu0 0.0
        %2315 = vmatpush1.msra.mxu0 0.0
        %2316 = vmatprep.subr.mxu0 0.0
        %2317 = vmatpush1.msra.mxu0 0.0
        %2318 = vmatprep.subr.mxu0 0.0
        %2319 = vmatpush1.msra.mxu0 0.0
        %2320 = vmatprep.subr.mxu0 0.0
        %2321 = vmatpush1.msra.mxu0 0.0
        %2322 = vmatprep.subr.mxu0 0.0
        %2323 = vmatpush1.msra.mxu0 0.0
        %2324 = vmatprep.subr.mxu0 0.0
        %2325 = vmatpush1.msra.mxu0 0.0
        %2326 = vmatprep.subr.mxu0 0.0
        %2327 = vmatpush1.msra.mxu0 0.0
        %2328 = vmatprep.subr.mxu0 0.0
        %2329 = vmatpush1.msra.mxu0 0.0
        %2330 = vmatprep.subr.mxu0 0.0
        %2331 = vmatpush1.msra.mxu0 0.0
        %2332 = vmatprep.subr.mxu0 0.0
        %2333 = vmatpush1.msra.mxu0 0.0
        %2334 = vmatprep.subr.mxu0 0.0
        %2335 = vmatpush1.msra.mxu0 0.0
        %2336 = vmatprep.subr.mxu0 0.0
        %2337 = vmatpush1.msra.mxu0 0.0
        %2338 = vmatprep.subr.mxu0 0.0
        %2339 = vmatpush1.msra.mxu0 0.0
        %2340 = vmatprep.subr.mxu0 0.0
        %2341 = vmatpush1.msra.mxu0 0.0
        %2342 = vmatprep.subr.mxu0 0.0
        %2343 = vmatpush1.msra.mxu0 0.0
        %2344 = vmatprep.subr.mxu0 0.0
        %2345 = vmatpush1.msra.mxu0 0.0
        %2346 = vmatprep.mubr.f32.mxu0 0.0
        %2347 = vmatmul.mubr.f32.gmra.mrb[0].mxu0 %v2280
        %v2348 = vpop.f32.mrb[0].mxu0
        %v2349 = vadd.f32 0.0, %v2348
        %v2350 = vpop.f32.mrb[0].mxu0
        %2351 = vdwg.mxu0
        %v2353 = vsel %vm1561, %v2126, 0
        %2355 = vmatprep.subr.mxu0 0.0
        %2356 = vmatpush1.msra.mxu0 %v2204
        %2357 = vmatprep.subr.mxu0 0.0
        %2358 = vmatpush1.msra.mxu0 0.0
        %2359 = vmatprep.subr.mxu0 0.0
        %2360 = vmatpush1.msra.mxu0 0.0
        %2361 = vmatprep.subr.mxu0 0.0
        %2362 = vmatpush1.msra.mxu0 0.0
        %2363 = vmatprep.subr.mxu0 0.0
        %2364 = vmatpush1.msra.mxu0 0.0
        %2365 = vmatprep.subr.mxu0 0.0
        %2366 = vmatpush1.msra.mxu0 0.0
        %2367 = vmatprep.subr.mxu0 0.0
        %2368 = vmatpush1.msra.mxu0 0.0
        %2369 = vmatprep.subr.mxu0 0.0
        %2370 = vmatpush1.msra.mxu0 0.0
        %2371 = vmatprep.subr.mxu0 0.0
        %2372 = vmatpush1.msra.mxu0 0.0
        %2373 = vmatprep.subr.mxu0 0.0
        %2374 = vmatpush1.msra.mxu0 0.0
        %2375 = vmatprep.subr.mxu0 0.0
        %2376 = vmatpush1.msra.mxu0 0.0
        %2377 = vmatprep.subr.mxu0 0.0
        %2378 = vmatpush1.msra.mxu0 0.0
        %2379 = vmatprep.subr.mxu0 0.0
        %2380 = vmatpush1.msra.mxu0 0.0
        %2381 = vmatprep.subr.mxu0 0.0
        %2382 = vmatpush1.msra.mxu0 0.0
        %2383 = vmatprep.subr.mxu0 0.0
        %2384 = vmatpush1.msra.mxu0 0.0
        %2385 = vmatprep.subr.mxu0 0.0
        %2386 = vmatpush1.msra.mxu0 0.0
        %2387 = vmatprep.subr.mxu0 0.0
        %2388 = vmatpush1.msra.mxu0 0.0
        %2389 = vmatprep.subr.mxu0 0.0
        %2390 = vmatpush1.msra.mxu0 0.0
        %2391 = vmatprep.subr.mxu0 0.0
        %2392 = vmatpush1.msra.mxu0 0.0
        %2393 = vmatprep.subr.mxu0 0.0
        %2394 = vmatpush1.msra.mxu0 0.0
        %2395 = vmatprep.subr.mxu0 0.0
        %2396 = vmatpush1.msra.mxu0 0.0
        %2397 = vmatprep.subr.mxu0 0.0
        %2398 = vmatpush1.msra.mxu0 0.0
        %2399 = vmatprep.subr.mxu0 0.0
        %2400 = vmatpush1.msra.mxu0 0.0
        %2401 = vmatprep.subr.mxu0 0.0
        %2402 = vmatpush1.msra.mxu0 0.0
        %2403 = vmatprep.subr.mxu0 0.0
        %2404 = vmatpush1.msra.mxu0 0.0
        %2405 = vmatprep.subr.mxu0 0.0
        %2406 = vmatpush1.msra.mxu0 0.0
        %2407 = vmatprep.subr.mxu0 0.0
        %2408 = vmatpush1.msra.mxu0 0.0
        %2409 = vmatprep.subr.mxu0 0.0
        %2410 = vmatpush1.msra.mxu0 0.0
        %2411 = vmatprep.subr.mxu0 0.0
        %2412 = vmatpush1.msra.mxu0 0.0
        %2413 = vmatprep.subr.mxu0 0.0
        %2414 = vmatpush1.msra.mxu0 0.0
        %2415 = vmatprep.subr.mxu0 0.0
        %2416 = vmatpush1.msra.mxu0 0.0
        %2417 = vmatprep.subr.mxu0 0.0
        %2418 = vmatpush1.msra.mxu0 0.0
        %2419 = vmatprep.mubr.f32.mxu0 0.0
        %2420 = vmatmul.mubr.f32.gmra.mrb[0].mxu0 %v2353
        %v2421 = vpop.f32.mrb[0].mxu0
        %v2422 = vadd.f32 0.0, %v2421
        %v2423 = vpop.f32.mrb[0].mxu0
        %2424 = vdwg.mxu0
        %v2426 = vsel %vm1561, %v2199, 0
        %2428 = vmatprep.subr.mxu0 0.0
        %2429 = vmatpush1.msra.mxu0 %v2205
        %2430 = vmatprep.subr.mxu0 0.0
        %2431 = vmatpush1.msra.mxu0 0.0
        %2432 = vmatprep.subr.mxu0 0.0
        %2433 = vmatpush1.msra.mxu0 0.0
        %2434 = vmatprep.subr.mxu0 0.0
        %2435 = vmatpush1.msra.mxu0 0.0
        %2436 = vmatprep.subr.mxu0 0.0
        %2437 = vmatpush1.msra.mxu0 0.0
        %2438 = vmatprep.subr.mxu0 0.0
        %2439 = vmatpush1.msra.mxu0 0.0
        %2440 = vmatprep.subr.mxu0 0.0
        %2441 = vmatpush1.msra.mxu0 0.0
        %2442 = vmatprep.subr.mxu0 0.0
        %2443 = vmatpush1.msra.mxu0 0.0
        %2444 = vmatprep.subr.mxu0 0.0
        %2445 = vmatpush1.msra.mxu0 0.0
        %2446 = vmatprep.subr.mxu0 0.0
        %2447 = vmatpush1.msra.mxu0 0.0
        %2448 = vmatprep.subr.mxu0 0.0
        %2449 = vmatpush1.msra.mxu0 0.0
        %2450 = vmatprep.subr.mxu0 0.0
        %2451 = vmatpush1.msra.mxu0 0.0
        %2452 = vmatprep.subr.mxu0 0.0
        %2453 = vmatpush1.msra.mxu0 0.0
        %2454 = vmatprep.subr.mxu0 0.0
        %2455 = vmatpush1.msra.mxu0 0.0
        %2456 = vmatprep.subr.mxu0 0.0
        %2457 = vmatpush1.msra.mxu0 0.0
        %2458 = vmatprep.subr.mxu0 0.0
        %2459 = vmatpush1.msra.mxu0 0.0
        %2460 = vmatprep.subr.mxu0 0.0
        %2461 = vmatpush1.msra.mxu0 0.0
        %2462 = vmatprep.subr.mxu0 0.0
        %2463 = vmatpush1.msra.mxu0 0.0
        %2464 = vmatprep.subr.mxu0 0.0
        %2465 = vmatpush1.msra.mxu0 0.0
        %2466 = vmatprep.subr.mxu0 0.0
        %2467 = vmatpush1.msra.mxu0 0.0
        %2468 = vmatprep.subr.mxu0 0.0
        %2469 = vmatpush1.msra.mxu0 0.0
        %2470 = vmatprep.subr.mxu0 0.0
        %2471 = vmatpush1.msra.mxu0 0.0
        %2472 = vmatprep.subr.mxu0 0.0
        %2473 = vmatpush1.msra.mxu0 0.0
        %2474 = vmatprep.subr.mxu0 0.0
        %2475 = vmatpush1.msra.mxu0 0.0
        %2476 = vmatprep.subr.mxu0 0.0
        %2477 = vmatpush1.msra.mxu0 0.0
        %2478 = vmatprep.subr.mxu0 0.0
        %2479 = vmatpush1.msra.mxu0 0.0
        %2480 = vmatprep.subr.mxu0 0.0
        %2481 = vmatpush1.msra.mxu0 0.0
        %2482 = vmatprep.subr.mxu0 0.0
        %2483 = vmatpush1.msra.mxu0 0.0
        %2484 = vmatprep.subr.mxu0 0.0
        %2485 = vmatpush1.msra.mxu0 0.0
        %2486 = vmatprep.subr.mxu0 0.0
        %2487 = vmatpush1.msra.mxu0 0.0
        %2488 = vmatprep.subr.mxu0 0.0
        %2489 = vmatpush1.msra.mxu0 0.0
        %2490 = vmatprep.subr.mxu0 0.0
        %2491 = vmatpush1.msra.mxu0 0.0
        %2492 = vmatprep.mubr.f32.mxu0 0.0
        %2493 = vmatmul.mubr.f32.gmra.mrb[0].mxu0 %v2426
        %v2494 = vpop.f32.mrb[0].mxu0
        %v2495 = vadd.f32 0.0, %v2494
        %v2496 = vpop.f32.mrb[0].mxu0
        %2497 = vdwg.mxu0
        %v2498 = vsel %vm547, %v2276, 0.0
        %v2499 = vsel %vm547, %v2349, 0.0
        %v2500 = vadd.f32 %v2498, %v2499
        %v2501 = vsel %vm547, %v2422, 0.0
        %v2502 = vadd.f32 %v2500, %v2501
        %v2503 = vsel %vm547, %v2495, 0.0
        %v2504 = vadd.f32 %v2502, %v2503
        %v2505 = vld [vmem:[%s10] sm:$0x1]
        %v2507 = vlaneseq
        %v2508 = vshrl.u32 %v2507, 7
        %v2509 = vsub.s32 0, %v2508
        %v2510 = vrot.slane %v2505, %v2509
        %v2512 = vadd.f32 %v2504, %v2510
        %v2513 = vadd.f32 %v544, %v2512
        %v2514 = vld [vmem:[%s11] sm:$0x1]
        %v2515 = vld [vmem:[%s12] sm:$0x1]
        %v2516 = vsel %vm547, %v2513, 0.0
        %2517 = vadd.xlane.f32.xlu0 %v2516
        %v2518 = vpop.xlane.xlu0 %2517
        %v2519 = vmul.f32 %v2518, %v551
        %v2520 = vsub.f32 %v2513, %v2519
        %v2521 = vmul.f32 %v2520, %v2520
        %v2522 = vsel %vm547, %v2521, 0.0
        %2523 = vadd.xlane.f32.xlu0 %v2522
        %v2524 = vpop.xlane.xlu0 %2523
        %v2525 = vmul.f32 %v2524, %v551
        %v2526 = vadd.f32 %v2525, 1e-05
        %v2527 = vrsqrt.pop %v2526
        %v2528 = vmul.f32 %v2520, %v2527
        %v2530 = vlaneseq
        %v2531 = vshrl.u32 %v2530, 7
        %v2532 = vsub.s32 0, %v2531
        %v2533 = vrot.slane %v2514, %v2532
        %v2535 = vmul.f32 %v2528, %v2533
        %v2537 = vlaneseq
        %v2538 = vshrl.u32 %v2537, 7
        %v2539 = vsub.s32 0, %v2538
        %v2540 = vrot.slane %v2515, %v2539
        %v2542 = vadd.f32 %v2535, %v2540
        %v2543 = vld [vmem:[%s13] sm:$0xff]
        %v2544 = vld [vmem:[%s13 + $0x8] sm:$0xff]
        %v2545 = vld [vmem:[%s13 + $0x10] sm:$0xff]
        %v2546 = vld [vmem:[%s13 + $0x18] sm:$0xff]
        %v2547 = vld [vmem:[%s14] sm:$0x1]
        %v2549 = vlaneseq
        %v2550 = vshrl.u32 %v2549, 7
        %v2551 = vsub.s32 0, %v2550
        %v2552 = vrot.slane %v2547, %v2551
        %v2555 = vsel %vm547, %v2542, 0
        %2557 = vmatprep.subr.mxu0 0.0
        %2558 = vmatpush1.msra.mxu0 %v2543
        %2559 = vmatprep.subr.mxu0 0.0
        %2560 = vmatpush1.msra.mxu0 %v2544
        %2561 = vmatprep.subr.mxu0 0.0
        %2562 = vmatpush1.msra.mxu0 %v2545
        %2563 = vmatprep.subr.mxu0 0.0
        %2564 = vmatpush1.msra.mxu0 %v2546
        %2565 = vmatprep.subr.mxu0 0.0
        %2566 = vmatpush1.msra.mxu0 0.0
        %2567 = vmatprep.subr.mxu0 0.0
        %2568 = vmatpush1.msra.mxu0 0.0
        %2569 = vmatprep.subr.mxu0 0.0
        %2570 = vmatpush1.msra.mxu0 0.0
        %2571 = vmatprep.subr.mxu0 0.0
        %2572 = vmatpush1.msra.mxu0 0.0
        %2573 = vmatprep.subr.mxu0 0.0
        %2574 = vmatpush1.msra.mxu0 0.0
        %2575 = vmatprep.subr.mxu0 0.0
        %2576 = vmatpush1.msra.mxu0 0.0
        %2577 = vmatprep.subr.mxu0 0.0
        %2578 = vmatpush1.msra.mxu0 0.0
        %2579 = vmatprep.subr.mxu0 0.0
        %2580 = vmatpush1.msra.mxu0 0.0
        %2581 = vmatprep.subr.mxu0 0.0
        %2582 = vmatpush1.msra.mxu0 0.0
        %2583 = vmatprep.subr.mxu0 0.0
        %2584 = vmatpush1.msra.mxu0 0.0
        %2585 = vmatprep.subr.mxu0 0.0
        %2586 = vmatpush1.msra.mxu0 0.0
        %2587 = vmatprep.subr.mxu0 0.0
        %2588 = vmatpush1.msra.mxu0 0.0
        %2589 = vmatprep.subr.mxu0 0.0
        %2590 = vmatpush1.msra.mxu0 0.0
        %2591 = vmatprep.subr.mxu0 0.0
        %2592 = vmatpush1.msra.mxu0 0.0
        %2593 = vmatprep.subr.mxu0 0.0
        %2594 = vmatpush1.msra.mxu0 0.0
        %2595 = vmatprep.subr.mxu0 0.0
        %2596 = vmatpush1.msra.mxu0 0.0
        %2597 = vmatprep.subr.mxu0 0.0
        %2598 = vmatpush1.msra.mxu0 0.0
        %2599 = vmatprep.subr.mxu0 0.0
        %2600 = vmatpush1.msra.mxu0 0.0
        %2601 = vmatprep.subr.mxu0 0.0
        %2602 = vmatpush1.msra.mxu0 0.0
        %2603 = vmatprep.subr.mxu0 0.0
        %2604 = vmatpush1.msra.mxu0 0.0
        %2605 = vmatprep.subr.mxu0 0.0
        %2606 = vmatpush1.msra.mxu0 0.0
        %2607 = vmatprep.subr.mxu0 0.0
        %2608 = vmatpush1.msra.mxu0 0.0
        %2609 = vmatprep.subr.mxu0 0.0
        %2610 = vmatpush1.msra.mxu0 0.0
        %2611 = vmatprep.subr.mxu0 0.0
        %2612 = vmatpush1.msra.mxu0 0.0
        %2613 = vmatprep.subr.mxu0 0.0
        %2614 = vmatpush1.msra.mxu0 0.0
        %2615 = vmatprep.subr.mxu0 0.0
        %2616 = vmatpush1.msra.mxu0 0.0
        %2617 = vmatprep.subr.mxu0 0.0
        %2618 = vmatpush1.msra.mxu0 0.0
        %2619 = vmatprep.subr.mxu0 0.0
        %2620 = vmatpush1.msra.mxu0 0.0
        %2621 = vmatprep.mubr.f32.mxu0 0.0
        %2622 = vmatmul.mubr.f32.gmra.mrb[0].mxu0 %v2555
        %v2623 = vpop.f32.mrb[0].mxu0
        %v2624 = vadd.f32 %v2552, %v2623
        %v2625 = vpop.f32.mrb[0].mxu0
        %2626 = vdwg.mxu0
        %v2627 = vmul.f32 %v2624, %v2624
        %v2628 = vmul.f32 %v2624, 0.5
        %v2629 = vmul.f32 %v2624, 0.044715
        %v2630 = vmul.f32 %v2629, %v2627
        %v2631 = vadd.f32 %v2624, %v2630
        %v2632 = vmul.f32 %v2631, 0.7978846
        %v2633 = vtanh.pop %v2632
        %v2634 = vadd.f32 %v2633, 1.0
        %v2635 = vmul.f32 %v2628, %v2634
        %v2636 = vld [vmem:[%s15] sm:$0xff]
        %v2637 = vld [vmem:[%s15 + $0x8] sm:$0xff]
        %v2638 = vld [vmem:[%s15 + $0x10] sm:$0xff]
        %v2639 = vld [vmem:[%s15 + $0x18] sm:$0xff]
        %v2640 = vld [vmem:[%s15 + $0x20] sm:$0xff]
        %v2641 = vld [vmem:[%s15 + $0x28] sm:$0xff]
        %v2642 = vld [vmem:[%s15 + $0x30] sm:$0xff]
        %v2643 = vld [vmem:[%s15 + $0x38] sm:$0xff]
        %v2644 = vld [vmem:[%s15 + $0x40] sm:$0xff]
        %v2645 = vld [vmem:[%s15 + $0x48] sm:$0xff]
        %v2646 = vld [vmem:[%s15 + $0x50] sm:$0xff]
        %v2647 = vld [vmem:[%s15 + $0x58] sm:$0xff]
        %v2648 = vld [vmem:[%s15 + $0x60] sm:$0xff]
        %v2649 = vld [vmem:[%s15 + $0x68] sm:$0xff]
        %v2650 = vld [vmem:[%s15 + $0x70] sm:$0xff]
        %v2651 = vld [vmem:[%s15 + $0x78] sm:$0xff]
        %v2652 = vld [vmem:[%s16] sm:$0x1]
        %v2654 = vlaneseq
        %v2655 = vshrl.u32 %v2654, 7
        %v2656 = vsub.s32 0, %v2655
        %v2657 = vrot.slane %v2652, %v2656
        %2659 = vmatprep.subr.mxu0 0.0
        %2660 = vmatpush1.msra.mxu0 %v2636
        %2661 = vmatprep.subr.mxu0 0.0
        %2662 = vmatpush1.msra.mxu0 %v2637
        %2663 = vmatprep.subr.mxu0 0.0
        %2664 = vmatpush1.msra.mxu0 %v2638
        %2665 = vmatprep.subr.mxu0 0.0
        %2666 = vmatpush1.msra.mxu0 %v2639
        %2667 = vmatprep.subr.mxu0 0.0
        %2668 = vmatpush1.msra.mxu0 %v2640
        %2669 = vmatprep.subr.mxu0 0.0
        %2670 = vmatpush1.msra.mxu0 %v2641
        %2671 = vmatprep.subr.mxu0 0.0
        %2672 = vmatpush1.msra.mxu0 %v2642
        %2673 = vmatprep.subr.mxu0 0.0
        %2674 = vmatpush1.msra.mxu0 %v2643
        %2675 = vmatprep.subr.mxu0 0.0
        %2676 = vmatpush1.msra.mxu0 %v2644
        %2677 = vmatprep.subr.mxu0 0.0
        %2678 = vmatpush1.msra.mxu0 %v2645
        %2679 = vmatprep.subr.mxu0 0.0
        %2680 = vmatpush1.msra.mxu0 %v2646
        %2681 = vmatprep.subr.mxu0 0.0
        %2682 = vmatpush1.msra.mxu0 %v2647
        %2683 = vmatprep.subr.mxu0 0.0
        %2684 = vmatpush1.msra.mxu0 %v2648
        %2685 = vmatprep.subr.mxu0 0.0
        %2686 = vmatpush1.msra.mxu0 %v2649
        %2687 = vmatprep.subr.mxu0 0.0
        %2688 = vmatpush1.msra.mxu0 %v2650
        %2689 = vmatprep.subr.mxu0 0.0
        %2690 = vmatpush1.msra.mxu0 %v2651
        %2691 = vmatprep.subr.mxu0 0.0
        %2692 = vmatpush1.msra.mxu0 0.0
        %2693 = vmatprep.subr.mxu0 0.0
        %2694 = vmatpush1.msra.mxu0 0.0
        %2695 = vmatprep.subr.mxu0 0.0
        %2696 = vmatpush1.msra.mxu0 0.0
        %2697 = vmatprep.subr.mxu0 0.0
        %2698 = vmatpush1.msra.mxu0 0.0
        %2699 = vmatprep.subr.mxu0 0.0
        %2700 = vmatpush1.msra.mxu0 0.0
        %2701 = vmatprep.subr.mxu0 0.0
        %2702 = vmatpush1.msra.mxu0 0.0
        %2703 = vmatprep.subr.mxu0 0.0
        %2704 = vmatpush1.msra.mxu0 0.0
        %2705 = vmatprep.subr.mxu0 0.0
        %2706 = vmatpush1.msra.mxu0 0.0
        %2707 = vmatprep.subr.mxu0 0.0
        %2708 = vmatpush1.msra.mxu0 0.0
        %2709 = vmatprep.subr.mxu0 0.0
        %2710 = vmatpush1.msra.mxu0 0.0
        %2711 = vmatprep.subr.mxu0 0.0
        %2712 = vmatpush1.msra.mxu0 0.0
        %2713 = vmatprep.subr.mxu0 0.0
        %2714 = vmatpush1.msra.mxu0 0.0
        %2715 = vmatprep.subr.mxu0 0.0
        %2716 = vmatpush1.msra.mxu0 0.0
        %2717 = vmatprep.subr.mxu0 0.0
        %2718 = vmatpush1.msra.mxu0 0.0
        %2719 = vmatprep.subr.mxu0 0.0
        %2720 = vmatpush1.msra.mxu0 0.0
        %2721 = vmatprep.subr.mxu0 0.0
        %2722 = vmatpush1.msra.mxu0 0.0
        %2723 = vmatprep.mubr.f32.mxu0 0.0
        %2724 = vmatmul.mubr.f32.gmra.mrb[0].mxu0 %v2635
        %v2725 = vpop.f32.mrb[0].mxu0
        %v2726 = vadd.f32 %v2657, %v2725
        %v2727 = vpop.f32.mrb[0].mxu0
        %2728 = vdwg.mxu0
        %v2729 = vadd.f32 %v2513, %v2726
        %2730 = vst.msk [vmem:[%s539] sm:$0xff] %vm547, %v2729
        %s2731 = sand.u32 %s401, 1
        %s2732 = scalar_lea.sflag [#allocation3], %s2731
        %s2733 = sand.u32 %s401, 1
        %s2734 = smul.addr %s2733, 8
        %s2735 = scalar_lea.vmem [#allocation2], %s2734
        // Predicated region
        $region89: #{tpu_custom_call.1} parent=87 // pred_check
          %p2736 = pneg %p411
        $region90: #{tpu_custom_call.1} parent=87 // pred_check_branch
          %2738 = sbr.rel (%p2736) target = $region92
        $region91: #{tpu_custom_call.1} parent=87 // pred_region
          %s2740 = ssub.s32 128, 128
          %2741 = vsyncadd %s2732, %s2740
          %s2742 = smul.addr %s31, 128
          %s2743 = scalar_lea.hbm %s17, %s2742
          %s2745 = sshll.u32 %s2735, 4
          %s2746 = int_to_ptr.vmem [resolvable:$true] %s2745
          %2748 = dma.vmem_to_hbm [thread:$0]  %s2746, 128, %s2743, %s2732
        $region92: #{tpu_custom_call.1} parent=87 // pred_fallthru
          _
      $region88: #{tpu_custom_call.1} parent=5 // pred_fallthru
        _
      %p2749 = scmp.le.s32.totalorder 2, %s26
      // Predicated region
      $region93: #{tpu_custom_call.1} parent=5 // pred_check
        %p2750 = pneg %p2749
      $region94: #{tpu_custom_call.1} parent=5 // pred_check_branch
        %2752 = sbr.rel (%p2750) target = $region96
      $region95: #{tpu_custom_call.1} parent=5 // pred_region
        %s2753 = ssub.s32 %s26, 2
        // Predicated region
        $region97: #{tpu_custom_call.1} parent=95 // pred_check
          %p2754 = pneg %p417
        $region98: #{tpu_custom_call.1} parent=95 // pred_check_branch
          %2756 = sbr.rel (%p2754) target = $region100
        $region99: #{tpu_custom_call.1} parent=95 // pred_region
          %s2757 = sand.u32 %s402, 1
          %s2758 = scalar_lea.sflag [#allocation3], %s2757
          %s2759 = sand.u32 %s402, 1
          %s2760 = smul.addr %s2759, 8
          %s2761 = scalar_lea.vmem [#allocation2], %s2760
          %2762 = dma.done %s2758, 128
        $region100: #{tpu_custom_call.1} parent=95 // pred_fallthru
          _
      $region96: #{tpu_custom_call.1} parent=5 // pred_fallthru
        _
    $region6: #{tpu_custom_call.1} parent=1 // loop_footer
      %s30 = sadd.s32 1, %s26
    $region7: #{tpu_custom_call.1} parent=1 // loop_footer_branch
      %25 = sbr.rel target = $region3
    $region8: #{tpu_custom_call.1} parent=1 // loop_exit
      _
    %2763 = vsyncpa [#allocation3], 1
    %s2764 = scalar_lea.sflag [#allocation3], 1
    %2765 = vsyncpa %s2764, 1

</llo_original>
